<compile_context>
chip_gen: v7x
topology: tpu7x:2x2x1
jax: 0.10.0
libtpu: 0.0.40
codegen_flags: <defaults>
</compile_context>

<pallas_src>
import jax
import jax.numpy as jnp
from jax.experimental import pallas as pl
from jax.experimental.pallas import tpu as pltpu

IN_F = 2073
IN_PAD = 2176          # 17 * 128 — lane-aligned padding of the 2073-wide input
H1 = 2048
H2 = 1024
OUT_F = 1
TK = 512               # tile along the shared H1 axis -> 4 grid steps


def _mlp_kernel(x_ref, w1_ref, b1_ref, w2_ref, b2_ref, w3_ref, b3_ref,
                out_ref, acc_ref):
    k = pl.program_id(0)

    @pl.when(k == 0)
    def _():
        acc_ref[...] = jnp.zeros_like(acc_ref)

    # Layer 1 tile: (B, IN_PAD)bf16 @ (IN_PAD, TK)bf16 -> f32, bias + ReLU.
    h1 = jnp.dot(x_ref[...], w1_ref[...], preferred_element_type=jnp.float32)
    h1 = jnp.maximum(h1 + b1_ref[...], 0.0)

    # Layer 2 partial: (B, TK) @ (TK, H2), accumulated in f32 VMEM scratch.
    acc_ref[...] += jnp.dot(h1.astype(jnp.bfloat16), w2_ref[...],
                            preferred_element_type=jnp.float32)

    @pl.when(k == pl.num_programs(0) - 1)
    def _():
        h2 = jnp.maximum(acc_ref[...] + b2_ref[...], 0.0)
        # Layer 3 (N=1): VPU multiply + lane reduce; keeps the MXU free and
        # avoids a 1-lane masked-store matmul result.  b3 is a scalar in SMEM.
        out_ref[...] = (jnp.sum(h2 * w3_ref[...], axis=-1, keepdims=True)
                        + b3_ref[0])


def fusonnet_base_forward(x, kparams):
    """x: (B, 2073) f32; kparams from prepare_params(). Returns (B,) f32."""
    w1, b1, w2, b2, w3, b3 = kparams
    B = x.shape[0]
    B_pad = max(8, ((B + 7) // 8) * 8)
    xp = jnp.pad(x, ((0, B_pad - B), (0, IN_PAD - IN_F))).astype(jnp.bfloat16)

    out = pl.pallas_call(
        _mlp_kernel,
        out_shape=jax.ShapeDtypeStruct((B_pad, OUT_F), jnp.float32),
        grid_spec=pltpu.PrefetchScalarGridSpec(
            num_scalar_prefetch=0,
            grid=(H1 // TK,),
            in_specs=[
                pl.BlockSpec((B_pad, IN_PAD), lambda k: (0, 0)),    # x (resident)
                pl.BlockSpec((IN_PAD, TK), lambda k: (0, k)),       # w1 tile (streamed)
                pl.BlockSpec((1, TK), lambda k: (0, k)),            # b1 tile
                pl.BlockSpec((TK, H2), lambda k: (k, 0)),           # w2 tile (streamed)
                pl.BlockSpec((1, H2), lambda k: (0, 0)),            # b2 (resident)
                pl.BlockSpec((1, H2), lambda k: (0, 0)),            # w3 (resident)
                pl.BlockSpec(memory_space=pltpu.MemorySpace.SMEM),  # b3 scalar
            ],
            out_specs=pl.BlockSpec((B_pad, OUT_F), lambda k: (0, 0)),
            scratch_shapes=[pltpu.VMEM((B_pad, H2), jnp.float32)],
        ),
        compiler_params=pltpu.CompilerParams(
            dimension_semantics=("arbitrary",),   # reduction over H1 tiles
            vmem_limit_bytes=32 * 1024 * 1024,
        ),
    )(xp, w1, b1, w2, b2, w3, b3)

    # torch.flatten of the (B, 1) output -> (B,), dropping batch padding.
    return out[:B, 0]


def init_params(key):
    """Synthetic PyTorch-like init: weights (in, out) f32, biases 1-D f32."""
    k1, k2, k3, k4, k5, k6 = jax.random.split(key, 6)

    def u(k, shape, fan_in):
        bound = 1.0 / jnp.sqrt(fan_in)
        return jax.random.uniform(k, shape, jnp.float32, -bound, bound)

    w1 = u(k1, (IN_F, H1), IN_F)
    b1 = u(k2, (H1,), IN_F)
    w2 = u(k3, (H1, H2), H1)
    b2 = u(k4, (H2,), H1)
    w3 = u(k5, (H2, OUT_F), H2)
    b3 = u(k6, (OUT_F,), H2)
    return (w1, b1, w2, b2, w3, b3)


def prepare_params(params):
    """One-time conversion to kernel layout: pad IN_F, cast matmul wts to bf16."""
    w1, b1, w2, b2, w3, b3 = params
    w1p = jnp.pad(w1, ((0, IN_PAD - IN_F), (0, 0))).astype(jnp.bfloat16)
    b1p = b1.reshape(1, H1).astype(jnp.float32)
    w2p = w2.astype(jnp.bfloat16)
    b2p = b2.reshape(1, H2).astype(jnp.float32)
    w3p = w3.reshape(1, H2).astype(jnp.float32)   # used as a VPU reduce weight
    b3p = b3.reshape(1).astype(jnp.float32)       # SMEM scalar
    return (w1p, b1p, w2p, b2p, w3p, b3p)


def _reference(x, params):
    """Pure f32 reference matching the PyTorch module semantics."""
    w1, b1, w2, b2, w3, b3 = params
    h1 = jnp.maximum(x @ w1 + b1, 0.0)
    h2 = jnp.maximum(h1 @ w2 + b2, 0.0)
    return (h2 @ w3 + b3).reshape(-1)


if __name__ == "__main__":
    key = jax.random.PRNGKey(0)
    pkey, xkey = jax.random.split(key)
    params = init_params(pkey)
    kparams = prepare_params(params)

    B = 8  # small batch
    x = jax.random.normal(xkey, (B, IN_F), dtype=jnp.float32)

    y = fusonnet_base_forward(x, kparams)
    y = jax.block_until_ready(y)

    y_ref = _reference(x, params)
    assert y.shape == (B,)
    # bf16 matmul weights with f32 accumulation -> loosened tolerance vs f32 ref.
    assert jnp.allclose(y, y_ref, atol=5e-2, rtol=5e-2), (
        float(jnp.max(jnp.abs(y - y_ref))))

    print("KERNEL_OK")
</pallas_src>

<mosaic_0001>
module attributes {stable_mosaic.version = 11 : i64} {
  func.func @_mlp_kernel(%arg0: i32, %arg1: memref<8x2176xbf16, #tpu.memory_space<vmem>>, %arg2: memref<2176x512xbf16, #tpu.memory_space<vmem>>, %arg3: memref<1x512xf32, #tpu.memory_space<vmem>>, %arg4: memref<512x1024xbf16, #tpu.memory_space<vmem>>, %arg5: memref<1x1024xf32, #tpu.memory_space<vmem>>, %arg6: memref<1x1024xf32, #tpu.memory_space<vmem>>, %arg7: memref<1xf32, #tpu.memory_space<smem>>, %arg8: memref<8x1xf32, #tpu.memory_space<vmem>>, %arg9: memref<8x1024xf32, #tpu.memory_space<vmem>>) attributes {dimension_semantics = [#tpu.dimension_semantics<arbitrary>], iteration_bounds = array<i64: 4>, scalar_prefetch = 0 : i64, scratch_operands = 1 : i64, tpu.core_type = #tpu.core_type<tc>, window_params = [{pipeline_mode = #tpu.pipeline_mode<synchronous>, transform_indices = @transform_0, window_bounds = array<i64: 8, 2176>}, {transform_indices = @transform_1, window_bounds = array<i64: 2176, 512>}, {transform_indices = @transform_2, window_bounds = array<i64: 1, 512>}, {transform_indices = @transform_3, window_bounds = array<i64: 512, 1024>}, {pipeline_mode = #tpu.pipeline_mode<synchronous>, transform_indices = @transform_4, window_bounds = array<i64: 1, 1024>}, {pipeline_mode = #tpu.pipeline_mode<synchronous>, transform_indices = @transform_5, window_bounds = array<i64: 1, 1024>}, {transform_indices = @transform_6, window_bounds = array<i64: 1>}, {pipeline_mode = #tpu.pipeline_mode<synchronous>, transform_indices = @transform_7, window_bounds = array<i64: 8, 1>}]} {
    %c0_i32 = arith.constant 0 : i32
    %0 = arith.cmpi eq, %arg0, %c0_i32 : i32
    %1 = arith.extui %0 : i1 to i32
    %c0_i32_0 = arith.constant 0 : i32
    %2 = arith.cmpi ne, %1, %c0_i32_0 : i32
    scf.if %2 {
      %cst_15 = arith.constant 0.000000e+00 : f32
      %20 = vector.broadcast %cst_15 : f32 to vector<8x1024xf32>
      %c0_16 = arith.constant 0 : index
      %c0_17 = arith.constant 0 : index
      %21 = vector.load %arg9[%c0_16, %c0_17] : memref<8x1024xf32, #tpu.memory_space<vmem>>, vector<8x1024xf32>
      tpu.vector_store %arg9[%c0_16, %c0_17], %20 {strides = array<i32>} : memref<8x1024xf32, #tpu.memory_space<vmem>>, vector<8x1024xf32>,
    } else {
    }
    %c0 = arith.constant 0 : index
    %c0_1 = arith.constant 0 : index
    %3 = vector.load %arg1[%c0, %c0_1] : memref<8x2176xbf16, #tpu.memory_space<vmem>>, vector<8x2176xbf16>
    %c0_2 = arith.constant 0 : index
    %c0_3 = arith.constant 0 : index
    %4 = vector.load %arg2[%c0_2, %c0_3] : memref<2176x512xbf16, #tpu.memory_space<vmem>>, vector<2176x512xbf16>
    %cst = arith.constant dense<0.000000e+00> : vector<8x512xf32>
    %5 = tpu.matmul %3, %4, %cst {dimension_numbers = #tpu.dot_dimension_numbers<[1], [0], [0], [1], [0, 0, 1, 1], [], []>} : vector<8x2176xbf16>, vector<2176x512xbf16>, vector<8x512xf32> -> vector<8x512xf32>
    %c0_4 = arith.constant 0 : index
    %c0_5 = arith.constant 0 : index
    %6 = vector.load %arg3[%c0_4, %c0_5] : memref<1x512xf32, #tpu.memory_space<vmem>>, vector<1x512xf32>
    %7 = vector.broadcast %6 : vector<1x512xf32> to vector<8x512xf32>
    %8 = arith.addf %5, %7 : vector<8x512xf32>
    %cst_6 = arith.constant 0.000000e+00 : f32
    %9 = vector.broadcast %cst_6 : f32 to vector<8x512xf32>
    %10 = arith.maximumf %8, %9 : vector<8x512xf32>
    %c0_7 = arith.constant 0 : index
    %c0_8 = arith.constant 0 : index
    %11 = vector.load %arg9[%c0_7, %c0_8] : memref<8x1024xf32, #tpu.memory_space<vmem>>, vector<8x1024xf32>
    %12 = arith.truncf %10 : vector<8x512xf32> to vector<8x512xbf16>
    %c0_9 = arith.constant 0 : index
    %c0_10 = arith.constant 0 : index
    %13 = vector.load %arg4[%c0_9, %c0_10] : memref<512x1024xbf16, #tpu.memory_space<vmem>>, vector<512x1024xbf16>
    %cst_11 = arith.constant dense<0.000000e+00> : vector<8x1024xf32>
    %14 = tpu.matmul %12, %13, %cst_11 {dimension_numbers = #tpu.dot_dimension_numbers<[1], [0], [0], [1], [0, 0, 1, 1], [], []>} : vector<8x512xbf16>, vector<512x1024xbf16>, vector<8x1024xf32> -> vector<8x1024xf32>
    %15 = arith.addf %11, %14 : vector<8x1024xf32>
    %c0_12 = arith.constant 0 : index
    %c0_13 = arith.constant 0 : index
    %16 = vector.load %arg9[%c0_12, %c0_13] : memref<8x1024xf32, #tpu.memory_space<vmem>>, vector<8x1024xf32>
    tpu.vector_store %arg9[%c0_12, %c0_13], %15 {strides = array<i32>} : memref<8x1024xf32, #tpu.memory_space<vmem>>, vector<8x1024xf32>,
    %c3_i32 = arith.constant 3 : i32
    %17 = arith.cmpi eq, %arg0, %c3_i32 : i32
    %18 = arith.extui %17 : i1 to i32
    %c0_i32_14 = arith.constant 0 : i32
    %19 = arith.cmpi ne, %18, %c0_i32_14 : i32
    scf.if %19 {
      %c0_15 = arith.constant 0 : index
      %c0_16 = arith.constant 0 : index
      %20 = vector.load %arg9[%c0_15, %c0_16] : memref<8x1024xf32, #tpu.memory_space<vmem>>, vector<8x1024xf32>
      %c0_17 = arith.constant 0 : index
      %c0_18 = arith.constant 0 : index
      %21 = vector.load %arg5[%c0_17, %c0_18] : memref<1x1024xf32, #tpu.memory_space<vmem>>, vector<1x1024xf32>
      %22 = vector.broadcast %21 : vector<1x1024xf32> to vector<8x1024xf32>
      %23 = arith.addf %20, %22 : vector<8x1024xf32>
      %cst_19 = arith.constant 0.000000e+00 : f32
      %24 = vector.broadcast %cst_19 : f32 to vector<8x1024xf32>
      %25 = arith.maximumf %23, %24 : vector<8x1024xf32>
      %c0_20 = arith.constant 0 : index
      %c0_21 = arith.constant 0 : index
      %26 = vector.load %arg6[%c0_20, %c0_21] : memref<1x1024xf32, #tpu.memory_space<vmem>>, vector<1x1024xf32>
      %27 = vector.broadcast %26 : vector<1x1024xf32> to vector<8x1024xf32>
      %28 = arith.mulf %25, %27 : vector<8x1024xf32>
      %cst_22 = arith.constant dense<0.000000e+00> : vector<8xf32>
      %29 = vector.multi_reduction <add>, %28, %cst_22 [1] : vector<8x1024xf32> to vector<8xf32>
      %30 = vector.shape_cast %29 : vector<8xf32> to vector<8x1xf32>
      %c0_23 = arith.constant 0 : index
      %31 = memref.load %arg7[%c0_23] : memref<1xf32, #tpu.memory_space<smem>>
      %32 = vector.broadcast %31 : f32 to vector<8x1xf32>
      %33 = arith.addf %30, %32 : vector<8x1xf32>
      %c0_24 = arith.constant 0 : index
      %c0_25 = arith.constant 0 : index
      %34 = vector.load %arg8[%c0_24, %c0_25] : memref<8x1xf32, #tpu.memory_space<vmem>>, vector<8x1xf32>
      tpu.vector_store %arg8[%c0_24, %c0_25], %33 {strides = array<i32>} : memref<8x1xf32, #tpu.memory_space<vmem>>, vector<8x1xf32>,
    } else {
    }
    return
  }
  func.func @transform_0(%arg0: i32) -> (i32, i32) {
    %c0_i32 = arith.constant 0 : i32
    %c0_i32_0 = arith.constant 0 : i32
    %c0_i32_1 = arith.constant 0 : i32
    return %c0_i32, %c0_i32_0 : i32, i32
  }
  func.func @transform_1(%arg0: i32) -> (i32, i32) {
    %c0_i32 = arith.constant 0 : i32
    %c0_i32_0 = arith.constant 0 : i32
    return %c0_i32, %arg0 : i32, i32
  }
  func.func @transform_2(%arg0: i32) -> (i32, i32) {
    %c0_i32 = arith.constant 0 : i32
    %c0_i32_0 = arith.constant 0 : i32
    return %c0_i32, %arg0 : i32, i32
  }
  func.func @transform_3(%arg0: i32) -> (i32, i32) {
    %c0_i32 = arith.constant 0 : i32
    %c0_i32_0 = arith.constant 0 : i32
    return %arg0, %c0_i32 : i32, i32
  }
  func.func @transform_4(%arg0: i32) -> (i32, i32) {
    %c0_i32 = arith.constant 0 : i32
    %c0_i32_0 = arith.constant 0 : i32
    %c0_i32_1 = arith.constant 0 : i32
    return %c0_i32, %c0_i32_0 : i32, i32
  }
  func.func @transform_5(%arg0: i32) -> (i32, i32) {
    %c0_i32 = arith.constant 0 : i32
    %c0_i32_0 = arith.constant 0 : i32
    %c0_i32_1 = arith.constant 0 : i32
    return %c0_i32, %c0_i32_0 : i32, i32
  }
  func.func @transform_6(%arg0: i32) -> i32 {
    %c0_i32 = arith.constant 0 : i32
    %c0_i32_0 = arith.constant 0 : i32
    return %c0_i32 : i32
  }
  func.func @transform_7(%arg0: i32) -> (i32, i32) {
    %c0_i32 = arith.constant 0 : i32
    %c0_i32_0 = arith.constant 0 : i32
    %c0_i32_1 = arith.constant 0 : i32
    return %c0_i32, %c0_i32_0 : i32, i32
  }
}

</mosaic_0001>

<llo_original>
// kernel: tpu_custom_call.1
$region0: #{tpu_custom_call.1}
  #allocation0 [shape = 'u32[]', space=smem, size = 0x4, offset = 0x4, fixed_abs, tag = 'smem constant byte address 0x4 - core index']
  #allocation1 [shape = 'u32[144,128]{1,0:T(1,128)}', space=vmem, size = 0x12000, scoped, tag = 'internal scratch']
  #allocation2 [shape = 'f32[8,1024]{1,0:T(8,128)}', space=vmem, size = 0x8000, scoped, tag = 'scratch operand']
  #allocation3 [shape = 'f32[1]{0:T(128)S(6)}', space=smem, size = 0x200, scoped, tag = 'scoped memory for tpu_custom_call.1']
  %s0 = inlined_call_operand.hbm [shape: bf16[8,2176], index: 0, kind: input, shape index: {}]
  %s1 = inlined_call_operand.hbm [shape: bf16[2176,2048], index: 1, kind: input, shape index: {}]
  %s2 = inlined_call_operand.hbm [shape: f32[1,2048], index: 2, kind: input, shape index: {}]
  %s3 = inlined_call_operand.hbm [shape: bf16[2048,1024], index: 3, kind: input, shape index: {}]
  %s4 = inlined_call_operand.hbm [shape: f32[1,1024], index: 4, kind: input, shape index: {}]
  %s5 = inlined_call_operand.hbm [shape: f32[1,1024], index: 5, kind: input, shape index: {}]
  %s6 = inlined_call_operand.<no memory space> [shape: f32[1], index: 6, kind: input, shape index: {}]
  %s7 = inlined_call_operand.vmem [shape: f32[8,1], index: 7, kind: output, shape index: {}]
  %s8 = sld [smem:[#allocation0]]
  $region93: #{tpu_custom_call.1} parent=0
    _
  %s10 = ssub.s32 1, %s8
  %s11 = scalar_select 0, %s10, %s8
  %12 = sst [smem:[#allocation3]] %s6
  $region1: #{tpu_custom_call.1} parent=0
    #allocation4 [shape = 'u8[34816]{0}', space=vmem, size = 0x8800, scoped, tag = 'input window, operand 0, single buffered']
    #allocation5 [shape = 's32[2]{0}', space=sflag, size = 0x8, scoped, tag = 'scoped memory for tpu_custom_call.1']
    #allocation6 [shape = 'u8[4456448]{0}', space=vmem, size = 0x440000, scoped, tag = 'input window, operand 1']
    #allocation7 [shape = 's32[2]{0}', space=sflag, size = 0x8, scoped, tag = 'scoped memory for tpu_custom_call.1']
    #allocation8 [shape = 'u8[4096]{0}', space=vmem, size = 0x1000, scoped, tag = 'input window, operand 2']
    #allocation9 [shape = 'u8[2097152]{0}', space=vmem, size = 0x200000, scoped, tag = 'input window, operand 3']
    #allocation10 [shape = 's32[2]{0}', space=sflag, size = 0x8, scoped, tag = 'scoped memory for tpu_custom_call.1']
    #allocation11 [shape = 'u8[4096]{0}', space=vmem, size = 0x1000, scoped, tag = 'input window, operand 4, single buffered']
    #allocation12 [shape = 'u8[4096]{0}', space=vmem, size = 0x1000, scoped, tag = 'input window, operand 5, single buffered']
    #allocation13 [shape = 's32[1]{0}', space=sflag, size = 0x4, scoped, tag = 'scoped memory for tpu_custom_call.1']
    %13 = vsyncpa [#allocation5], 0
    %14 = vsyncpa [#allocation7], 0
    %s15 = scalar_lea.sflag [#allocation7], 1
    %16 = vsyncpa %s15, 0
    %17 = vsyncpa [#allocation10], 0
    %s18 = scalar_lea.sflag [#allocation10], 1
    %19 = vsyncpa %s18, 0
    %20 = vsyncpa [#allocation13], 0
    loop: start=0, step=1, limit=6
    $region2: #{tpu_custom_call.1} parent=1 // loop_pre_header
      _
    $region3: #{tpu_custom_call.1} parent=1 // loop_header
      %s22 = sphi 0, %s26
      %p23 = scmp.ge.s32.totalorder %s22, 6
      %s30 = sphi 0, %s30
      %s32 = sphi 0, %s30
      %s33 = sphi 0, %s32
      %s47 = sphi 0, %s33
      %s53 = sphi 0, %s55
      %s56 = sphi 0, %s53
      %s57 = sphi 0, %s56
      %s73 = sphi 0, %s57
      %s79 = sphi 0, %s81
      %s82 = sphi 0, %s79
      %s83 = sphi 0, %s82
      %s99 = sphi 0, %s83
      %s105 = sphi 0, %s107
      %s108 = sphi 0, %s105
      %s109 = sphi 0, %s108
      %s125 = sphi 0, %s109
      %s129 = sphi 0, %s129
      %s131 = sphi 0, %s129
      %s132 = sphi 0, %s131
      %s146 = sphi 0, %s132
      %s150 = sphi 0, %s150
      %s152 = sphi 0, %s150
      %s153 = sphi 0, %s152
      %s167 = sphi 0, %s153
      %s171 = sphi 0, %s171
      %s173 = sphi 0, %s171
      %s174 = sphi 0, %s173
      %s188 = sphi 0, %s174
      %s192 = sphi 0, %s192
      %s194 = sphi 0, %s192
      %s195 = sphi 0, %s194
      %s209 = sphi 0, %s195
    $region4: #{tpu_custom_call.1} parent=1 // loop_header_branch
      %25 = sbr.rel (%p23) target = $region8
    $region5: #{tpu_custom_call.1} parent=1 // loop_body
      %s27 = ssub.s32 %s22, 1
      %s28 = ssub.s32 %s22, 2
      %s29 = sadd.s32 %s22, 1
      %s31 = sadd.s32 %s30, 1
      %p34 = scmp.eq.s32.totalorder %s22, 3
      %p35 = scmp.ne.s32.totalorder %s30, %s32
      %p36 = scmp.eq.s32.totalorder %s22, 0
      %p37 = por %p35, %p36
      %p38 = scmp.ne.s32.totalorder %s30, %s32
      %p39 = scmp.eq.s32.totalorder %s27, 3
      %p40 = por %p38, %p39
      %p41 = scmp.ne.s32.totalorder %s32, %s33
      %p42 = scmp.eq.s32.totalorder %s27, 0
      %p43 = por %p41, %p42
      %p44 = scmp.ne.s32.totalorder %s32, %s33
      %p45 = scmp.eq.s32.totalorder %s28, 3
      %p46 = por %p44, %p45
      %p48 = scmp.ne.s32.totalorder %s33, %s47
      %p49 = scmp.eq.s32.totalorder %s28, 0
      %p50 = por %p48, %p49
      %s51 = ssub.s32 %s22, %s29
      %p52 = scmp.eq.s32.totalorder %s51, 0
      %s54 = sadd.s32 %s53, 1
      %s55 = scalar_select %p52, %s53, %s54
      %p58 = pneg %p52
      %p59 = scmp.eq.s32.totalorder %s22, 3
      %p60 = por %p58, %p59
      %p61 = scmp.ne.s32.totalorder %s53, %s56
      %p62 = scmp.eq.s32.totalorder %s22, 0
      %p63 = por %p61, %p62
      %p64 = scmp.ne.s32.totalorder %s53, %s56
      %p65 = scmp.eq.s32.totalorder %s27, 3
      %p66 = por %p64, %p65
      %p67 = scmp.ne.s32.totalorder %s56, %s57
      %p68 = scmp.eq.s32.totalorder %s27, 0
      %p69 = por %p67, %p68
      %p70 = scmp.ne.s32.totalorder %s56, %s57
      %p71 = scmp.eq.s32.totalorder %s28, 3
      %p72 = por %p70, %p71
      %p74 = scmp.ne.s32.totalorder %s57, %s73
      %p75 = scmp.eq.s32.totalorder %s28, 0
      %p76 = por %p74, %p75
      %s77 = ssub.s32 %s22, %s29
      %p78 = scmp.eq.s32.totalorder %s77, 0
      %s80 = sadd.s32 %s79, 1
      %s81 = scalar_select %p78, %s79, %s80
      %p84 = pneg %p78
      %p85 = scmp.eq.s32.totalorder %s22, 3
      %p86 = por %p84, %p85
      %p87 = scmp.ne.s32.totalorder %s79, %s82
      %p88 = scmp.eq.s32.totalorder %s22, 0
      %p89 = por %p87, %p88
      %p90 = scmp.ne.s32.totalorder %s79, %s82
      %p91 = scmp.eq.s32.totalorder %s27, 3
      %p92 = por %p90, %p91
      %p93 = scmp.ne.s32.totalorder %s82, %s83
      %p94 = scmp.eq.s32.totalorder %s27, 0
      %p95 = por %p93, %p94
      %p96 = scmp.ne.s32.totalorder %s82, %s83
      %p97 = scmp.eq.s32.totalorder %s28, 3
      %p98 = por %p96, %p97
      %p100 = scmp.ne.s32.totalorder %s83, %s99
      %p101 = scmp.eq.s32.totalorder %s28, 0
      %p102 = por %p100, %p101
      %s103 = ssub.s32 %s22, %s29
      %p104 = scmp.eq.s32.totalorder %s103, 0
      %s106 = sadd.s32 %s105, 1
      %s107 = scalar_select %p104, %s105, %s106
      %p110 = pneg %p104
      %p111 = scmp.eq.s32.totalorder %s22, 3
      %p112 = por %p110, %p111
      %p113 = scmp.ne.s32.totalorder %s105, %s108
      %p114 = scmp.eq.s32.totalorder %s22, 0
      %p115 = por %p113, %p114
      %p116 = scmp.ne.s32.totalorder %s105, %s108
      %p117 = scmp.eq.s32.totalorder %s27, 3
      %p118 = por %p116, %p117
      %p119 = scmp.ne.s32.totalorder %s108, %s109
      %p120 = scmp.eq.s32.totalorder %s27, 0
      %p121 = por %p119, %p120
      %p122 = scmp.ne.s32.totalorder %s108, %s109
      %p123 = scmp.eq.s32.totalorder %s28, 3
      %p124 = por %p122, %p123
      %p126 = scmp.ne.s32.totalorder %s109, %s125
      %p127 = scmp.eq.s32.totalorder %s28, 0
      %p128 = por %p126, %p127
      %s130 = sadd.s32 %s129, 1
      %p133 = scmp.eq.s32.totalorder %s22, 3
      %p134 = scmp.ne.s32.totalorder %s129, %s131
      %p135 = scmp.eq.s32.totalorder %s22, 0
      %p136 = por %p134, %p135
      %p137 = scmp.ne.s32.totalorder %s129, %s131
      %p138 = scmp.eq.s32.totalorder %s27, 3
      %p139 = por %p137, %p138
      %p140 = scmp.ne.s32.totalorder %s131, %s132
      %p141 = scmp.eq.s32.totalorder %s27, 0
      %p142 = por %p140, %p141
      %p143 = scmp.ne.s32.totalorder %s131, %s132
      %p144 = scmp.eq.s32.totalorder %s28, 3
      %p145 = por %p143, %p144
      %p147 = scmp.ne.s32.totalorder %s132, %s146
      %p148 = scmp.eq.s32.totalorder %s28, 0
      %p149 = por %p147, %p148
      %s151 = sadd.s32 %s150, 1
      %p154 = scmp.eq.s32.totalorder %s22, 3
      %p155 = scmp.ne.s32.totalorder %s150, %s152
      %p156 = scmp.eq.s32.totalorder %s22, 0
      %p157 = por %p155, %p156
      %p158 = scmp.ne.s32.totalorder %s150, %s152
      %p159 = scmp.eq.s32.totalorder %s27, 3
      %p160 = por %p158, %p159
      %p161 = scmp.ne.s32.totalorder %s152, %s153
      %p162 = scmp.eq.s32.totalorder %s27, 0
      %p163 = por %p161, %p162
      %p164 = scmp.ne.s32.totalorder %s152, %s153
      %p165 = scmp.eq.s32.totalorder %s28, 3
      %p166 = por %p164, %p165
      %p168 = scmp.ne.s32.totalorder %s153, %s167
      %p169 = scmp.eq.s32.totalorder %s28, 0
      %p170 = por %p168, %p169
      %s172 = sadd.s32 %s171, 1
      %p175 = scmp.eq.s32.totalorder %s22, 3
      %p176 = scmp.ne.s32.totalorder %s171, %s173
      %p177 = scmp.eq.s32.totalorder %s22, 0
      %p178 = por %p176, %p177
      %p179 = scmp.ne.s32.totalorder %s171, %s173
      %p180 = scmp.eq.s32.totalorder %s27, 3
      %p181 = por %p179, %p180
      %p182 = scmp.ne.s32.totalorder %s173, %s174
      %p183 = scmp.eq.s32.totalorder %s27, 0
      %p184 = por %p182, %p183
      %p185 = scmp.ne.s32.totalorder %s173, %s174
      %p186 = scmp.eq.s32.totalorder %s28, 3
      %p187 = por %p185, %p186
      %p189 = scmp.ne.s32.totalorder %s174, %s188
      %p190 = scmp.eq.s32.totalorder %s28, 0
      %p191 = por %p189, %p190
      %s193 = sadd.s32 %s192, 1
      %p196 = scmp.eq.s32.totalorder %s22, 3
      %p197 = scmp.ne.s32.totalorder %s192, %s194
      %p198 = scmp.eq.s32.totalorder %s22, 0
      %p199 = por %p197, %p198
      %p200 = scmp.ne.s32.totalorder %s192, %s194
      %p201 = scmp.eq.s32.totalorder %s27, 3
      %p202 = por %p200, %p201
      %p203 = scmp.ne.s32.totalorder %s194, %s195
      %p204 = scmp.eq.s32.totalorder %s27, 0
      %p205 = por %p203, %p204
      %p206 = scmp.ne.s32.totalorder %s194, %s195
      %p207 = scmp.eq.s32.totalorder %s28, 3
      %p208 = por %p206, %p207
      %p210 = scmp.ne.s32.totalorder %s195, %s209
      %p211 = scmp.eq.s32.totalorder %s28, 0
      %p212 = por %p210, %p211
      %p213 = scmp.le.s32.totalorder 1, %s22
      %p214 = scmp.lt.s32.totalorder %s22, 5
      %p215 = pnand %p213, %p214
      %p216 = pneg %p215
      // Predicated region
      $region9: #{tpu_custom_call.1} parent=5 // pred_check
        _
      $region10: #{tpu_custom_call.1} parent=5 // pred_check_branch
        %218 = sbr.rel (%p215) target = $region12
      $region11: #{tpu_custom_call.1} parent=5 // pred_region
        %s219 = ssub.s32 %s22, 1
        // Predicated region
        $region13: #{tpu_custom_call.1} parent=11 // pred_check
          %p220 = pneg %p43
        $region14: #{tpu_custom_call.1} parent=11 // pred_check_branch
          %222 = sbr.rel (%p220) target = $region16
        $region15: #{tpu_custom_call.1} parent=11 // pred_region
          %s224 = ssub.s32 1088, 1088
          %225 = vsyncadd [#allocation5], %s224
          %s227 = sshll.u32 [#allocation4], 4
          %s228 = int_to_ptr.vmem [resolvable:$true] %s227
          %230 = dma.hbm_to_vmem [thread:$0]  %s0, 1088, %s228, [#allocation5]
        $region16: #{tpu_custom_call.1} parent=11 // pred_fallthru
          _
        // Predicated region
        $region17: #{tpu_custom_call.1} parent=11 // pred_check
          %p231 = pneg %p142
        $region18: #{tpu_custom_call.1} parent=11 // pred_check_branch
          %233 = sbr.rel (%p231) target = $region20
        $region19: #{tpu_custom_call.1} parent=11 // pred_region
          %s235 = ssub.s32 128, 128
          %236 = vsyncadd [#allocation10], %s235
          %s238 = sshll.u32 [#allocation11], 4
          %s239 = int_to_ptr.vmem [resolvable:$true] %s238
          %241 = dma.hbm_to_vmem [thread:$0]  %s4, 128, %s239, [#allocation10]
        $region20: #{tpu_custom_call.1} parent=11 // pred_fallthru
          _
        // Predicated region
        $region21: #{tpu_custom_call.1} parent=11 // pred_check
          %p242 = pneg %p163
        $region22: #{tpu_custom_call.1} parent=11 // pred_check_branch
          %244 = sbr.rel (%p242) target = $region24
        $region23: #{tpu_custom_call.1} parent=11 // pred_region
          %s246 = ssub.s32 128, 128
          %247 = vsyncadd [#allocation13], %s246
          %s249 = sshll.u32 [#allocation12], 4
          %s250 = int_to_ptr.vmem [resolvable:$true] %s249
          %252 = dma.hbm_to_vmem [thread:$0]  %s5, 128, %s250, [#allocation13]
        $region24: #{tpu_custom_call.1} parent=11 // pred_fallthru
          _
        // Predicated region
        $region25: #{tpu_custom_call.1} parent=11 // pred_check
          %p253 = pneg %p184
        $region26: #{tpu_custom_call.1} parent=11 // pred_check_branch
          %255 = sbr.rel (%p253) target = $region28
        $region27: #{tpu_custom_call.1} parent=11 // pred_region
          _
        $region28: #{tpu_custom_call.1} parent=11 // pred_fallthru
          _
      $region12: #{tpu_custom_call.1} parent=5 // pred_fallthru
        _
      %p256 = scmp.lt.s32.totalorder %s22, 4
      // Predicated region
      $region29: #{tpu_custom_call.1} parent=5 // pred_check
        %p257 = pneg %p256
      $region30: #{tpu_custom_call.1} parent=5 // pred_check_branch
        %259 = sbr.rel (%p257) target = $region32
      $region31: #{tpu_custom_call.1} parent=5 // pred_region
        // Predicated region
        $region33: #{tpu_custom_call.1} parent=31 // pred_check
          %p260 = pneg %p63
        $region34: #{tpu_custom_call.1} parent=31 // pred_check_branch
          %262 = sbr.rel (%p260) target = $region36
        $region35: #{tpu_custom_call.1} parent=31 // pred_region
          %s263 = sand.u32 %s22, 1
          %s264 = scalar_lea.sflag [#allocation7], %s263
          %s265 = sand.u32 %s53, 1
          %s266 = smul.addr %s265, 4352
          %s267 = scalar_lea.vmem [#allocation6], %s266
          %s268 = smul.u32 4, %s22
          %s270 = ssub.s32 69632, 69632
          %271 = vsyncadd %s264, %s270
          %s272 = smul.addr %s268, 64
          %s273 = scalar_lea.hbm %s1, %s272
          %s274 = sshll.u32 %s267, 4
          %s275 = int_to_ptr.vmem [resolvable:$true] %s274
          %280 = dma.hbm_to_vmem [thread:$0]  %s273, 69632, %s275, %s264, 1024, 256, 16
        $region36: #{tpu_custom_call.1} parent=31 // pred_fallthru
          _
        // Predicated region
        $region37: #{tpu_custom_call.1} parent=31 // pred_check
          %p281 = pneg %p89
        $region38: #{tpu_custom_call.1} parent=31 // pred_check_branch
          %283 = sbr.rel (%p281) target = $region40
        $region39: #{tpu_custom_call.1} parent=31 // pred_region
          %s284 = sand.u32 %s22, 1
          %s285 = scalar_lea.sflag [#allocation7], %s284
          %s286 = sand.u32 %s79, 1
          %s287 = smul.addr %s286, 4
          %s288 = scalar_lea.vmem [#allocation8], %s287
          %s289 = smul.u32 4, %s22
          %s291 = ssub.s32 64, 64
          %292 = vsyncadd %s285, %s291
          %s293 = smul.addr %s289, 16
          %s294 = scalar_lea.hbm %s2, %s293
          %s296 = sshll.u32 %s288, 4
          %s297 = int_to_ptr.vmem [resolvable:$true] %s296
          %299 = dma.hbm_to_vmem [thread:$0]  %s294, 64, %s297, %s285
        $region40: #{tpu_custom_call.1} parent=31 // pred_fallthru
          _
        // Predicated region
        $region41: #{tpu_custom_call.1} parent=31 // pred_check
          %p300 = pneg %p115
        $region42: #{tpu_custom_call.1} parent=31 // pred_check_branch
          %302 = sbr.rel (%p300) target = $region44
        $region43: #{tpu_custom_call.1} parent=31 // pred_region
          %s303 = sand.u32 %s22, 1
          %s304 = scalar_lea.sflag [#allocation10], %s303
          %s305 = sand.u32 %s105, 1
          %s306 = smul.addr %s305, 2048
          %s307 = scalar_lea.vmem [#allocation9], %s306
          %s308 = smul.u32 64, %s22
          %s310 = ssub.s32 32768, 32768
          %311 = vsyncadd %s304, %s310
          %s312 = smul.addr %s308, 8
          %s313 = smul.addr %s312, 64
          %s314 = scalar_lea.hbm %s3, %s313
          %s315 = sshll.u32 %s307, 4
          %s316 = int_to_ptr.vmem [resolvable:$true] %s315
          %321 = dma.hbm_to_vmem [thread:$0]  %s314, 32768, %s316, %s304, 512, 512, 32
        $region44: #{tpu_custom_call.1} parent=31 // pred_fallthru
          _
      $region32: #{tpu_custom_call.1} parent=5 // pred_fallthru
        _
      %p322 = scmp.le.s32.totalorder 1, %s22
      %p323 = scmp.lt.s32.totalorder %s22, 5
      %p324 = pnand %p322, %p323
      %p325 = pneg %p324
      // Predicated region
      $region45: #{tpu_custom_call.1} parent=5 // pred_check
        _
      $region46: #{tpu_custom_call.1} parent=5 // pred_check_branch
        %327 = sbr.rel (%p324) target = $region48
      $region47: #{tpu_custom_call.1} parent=5 // pred_region
        %s328 = ssub.s32 %s22, 1
        // Predicated region
        $region49: #{tpu_custom_call.1} parent=47 // pred_check
          %p329 = pneg %p43
        $region50: #{tpu_custom_call.1} parent=47 // pred_check_branch
          %331 = sbr.rel (%p329) target = $region52
        $region51: #{tpu_custom_call.1} parent=47 // pred_region
          %332 = dma.done [#allocation5], 1088
        $region52: #{tpu_custom_call.1} parent=47 // pred_fallthru
          _
        %s333 = sand.u32 %s27, 1
        %s334 = scalar_lea.sflag [#allocation7], %s333
        %s335 = sand.u32 %s56, 1
        %s336 = smul.addr %s335, 4352
        %s337 = scalar_lea.vmem [#allocation6], %s336
        // Predicated region
        $region53: #{tpu_custom_call.1} parent=47 // pred_check
          %p338 = pneg %p69
        $region54: #{tpu_custom_call.1} parent=47 // pred_check_branch
          %340 = sbr.rel (%p338) target = $region56
        $region55: #{tpu_custom_call.1} parent=47 // pred_region
          %341 = dma.done %s334, 69632
        $region56: #{tpu_custom_call.1} parent=47 // pred_fallthru
          _
        %s342 = sand.u32 %s27, 1
        %s343 = scalar_lea.sflag [#allocation7], %s342
        %s344 = sand.u32 %s82, 1
        %s345 = smul.addr %s344, 4
        %s346 = scalar_lea.vmem [#allocation8], %s345
        // Predicated region
        $region57: #{tpu_custom_call.1} parent=47 // pred_check
          %p347 = pneg %p95
        $region58: #{tpu_custom_call.1} parent=47 // pred_check_branch
          %349 = sbr.rel (%p347) target = $region60
        $region59: #{tpu_custom_call.1} parent=47 // pred_region
          %350 = dma.done %s343, 64
        $region60: #{tpu_custom_call.1} parent=47 // pred_fallthru
          _
        %s351 = sand.u32 %s27, 1
        %s352 = scalar_lea.sflag [#allocation10], %s351
        %s353 = sand.u32 %s108, 1
        %s354 = smul.addr %s353, 2048
        %s355 = scalar_lea.vmem [#allocation9], %s354
        // Predicated region
        $region61: #{tpu_custom_call.1} parent=47 // pred_check
          %p356 = pneg %p121
        $region62: #{tpu_custom_call.1} parent=47 // pred_check_branch
          %358 = sbr.rel (%p356) target = $region64
        $region63: #{tpu_custom_call.1} parent=47 // pred_region
          %359 = dma.done %s352, 32768
        $region64: #{tpu_custom_call.1} parent=47 // pred_fallthru
          _
        // Predicated region
        $region65: #{tpu_custom_call.1} parent=47 // pred_check
          %p360 = pneg %p142
        $region66: #{tpu_custom_call.1} parent=47 // pred_check_branch
          %362 = sbr.rel (%p360) target = $region68
        $region67: #{tpu_custom_call.1} parent=47 // pred_region
          %363 = dma.done [#allocation10], 128
        $region68: #{tpu_custom_call.1} parent=47 // pred_fallthru
          _
        // Predicated region
        $region69: #{tpu_custom_call.1} parent=47 // pred_check
          %p364 = pneg %p163
        $region70: #{tpu_custom_call.1} parent=47 // pred_check_branch
          %366 = sbr.rel (%p364) target = $region72
        $region71: #{tpu_custom_call.1} parent=47 // pred_region
          %367 = dma.done [#allocation13], 128
        $region72: #{tpu_custom_call.1} parent=47 // pred_fallthru
          _
        %p368 = pneg %p43
        %p369 = pneg %p40
        %s370 = sand.u32 %s27, 1
        %s371 = scalar_lea.sflag [#allocation7], %s370
        %s372 = sand.u32 %s56, 1
        %s373 = smul.addr %s372, 4352
        %s374 = scalar_lea.vmem [#allocation6], %s373
        %p375 = pneg %p69
        %p376 = pneg %p66
        %s377 = sand.u32 %s27, 1
        %s378 = scalar_lea.sflag [#allocation7], %s377
        %s379 = sand.u32 %s82, 1
        %s380 = smul.addr %s379, 4
        %s381 = scalar_lea.vmem [#allocation8], %s380
        %p382 = pneg %p95
        %p383 = pneg %p92
        %s384 = sand.u32 %s27, 1
        %s385 = scalar_lea.sflag [#allocation10], %s384
        %s386 = sand.u32 %s108, 1
        %s387 = smul.addr %s386, 2048
        %s388 = scalar_lea.vmem [#allocation9], %s387
        %p389 = pneg %p121
        %p390 = pneg %p118
        %p391 = pneg %p142
        %p392 = pneg %p139
        %p393 = pneg %p163
        %p394 = pneg %p160
        %p395 = pneg %p184
        %p396 = pneg %p181
        %p397 = pneg %p205
        %p398 = pneg %p202
        %s399 = smul.u32 4, %s27
        %s400 = smul.u32 4, %s27
        %s401 = smul.u32 64, %s27
        %p403 = scmp.eq.s32.totalorder %s27, 0
        // Predicated region
        $region73: #{tpu_custom_call.1} parent=47 // pred_check
          %p404 = pneg %p403
        $region74: #{tpu_custom_call.1} parent=47 // pred_check_branch
          %406 = sbr.rel (%p404) target = $region76
        $region75: #{tpu_custom_call.1} parent=47 // pred_region
          %407 = vst [vmem:[#allocation2] sm:$0xff] 0.0
          %408 = vst [vmem:[#allocation2 + $0x8] sm:$0xff] 0.0
          %409 = vst [vmem:[#allocation2 + $0x10] sm:$0xff] 0.0
          %410 = vst [vmem:[#allocation2 + $0x18] sm:$0xff] 0.0
          %411 = vst [vmem:[#allocation2 + $0x20] sm:$0xff] 0.0
          %412 = vst [vmem:[#allocation2 + $0x28] sm:$0xff] 0.0
          %413 = vst [vmem:[#allocation2 + $0x30] sm:$0xff] 0.0
          %414 = vst [vmem:[#allocation2 + $0x38] sm:$0xff] 0.0
        $region76: #{tpu_custom_call.1} parent=47 // pred_fallthru
          _
        %v415 = vld [vmem:[#allocation4] sm:$0xff]
        %v416 = vld [vmem:[#allocation4 + $0x8] sm:$0xff]
        %v417 = vld [vmem:[#allocation4 + $0x10] sm:$0xff]
        %v418 = vld [vmem:[#allocation4 + $0x18] sm:$0xff]
        %v419 = vld [vmem:[#allocation4 + $0x20] sm:$0xff]
        %v420 = vld [vmem:[#allocation4 + $0x28] sm:$0xff]
        %v421 = vld [vmem:[#allocation4 + $0x30] sm:$0xff]
        %v422 = vld [vmem:[#allocation4 + $0x38] sm:$0xff]
        %v423 = vld [vmem:[#allocation4 + $0x40] sm:$0xf]
        %v424 = vld [vmem:[%s337] sm:$0xff]
        %v425 = vld [vmem:[%s337 + $0x8] sm:$0xff]
        %v426 = vld [vmem:[%s337 + $0x10] sm:$0xff]
        %v427 = vld [vmem:[%s337 + $0x18] sm:$0xff]
        %v428 = vld [vmem:[%s337 + $0x20] sm:$0xff]
        %v429 = vld [vmem:[%s337 + $0x28] sm:$0xff]
        %v430 = vld [vmem:[%s337 + $0x30] sm:$0xff]
        %v431 = vld [vmem:[%s337 + $0x38] sm:$0xff]
        %v432 = vld [vmem:[%s337 + $0x40] sm:$0xff]
        %v433 = vld [vmem:[%s337 + $0x48] sm:$0xff]
        %v434 = vld [vmem:[%s337 + $0x50] sm:$0xff]
        %v435 = vld [vmem:[%s337 + $0x58] sm:$0xff]
        %v436 = vld [vmem:[%s337 + $0x60] sm:$0xff]
        %v437 = vld [vmem:[%s337 + $0x68] sm:$0xff]
        %v438 = vld [vmem:[%s337 + $0x70] sm:$0xff]
        %v439 = vld [vmem:[%s337 + $0x78] sm:$0xff]
        %v440 = vld [vmem:[%s337 + $0x80] sm:$0xff]
        %v441 = vld [vmem:[%s337 + $0x88] sm:$0xff]
        %v442 = vld [vmem:[%s337 + $0x90] sm:$0xff]
        %v443 = vld [vmem:[%s337 + $0x98] sm:$0xff]
        %v444 = vld [vmem:[%s337 + $0xa0] sm:$0xff]
        %v445 = vld [vmem:[%s337 + $0xa8] sm:$0xff]
        %v446 = vld [vmem:[%s337 + $0xb0] sm:$0xff]
        %v447 = vld [vmem:[%s337 + $0xb8] sm:$0xff]
        %v448 = vld [vmem:[%s337 + $0xc0] sm:$0xff]
        %v449 = vld [vmem:[%s337 + $0xc8] sm:$0xff]
        %v450 = vld [vmem:[%s337 + $0xd0] sm:$0xff]
        %v451 = vld [vmem:[%s337 + $0xd8] sm:$0xff]
        %v452 = vld [vmem:[%s337 + $0xe0] sm:$0xff]
        %v453 = vld [vmem:[%s337 + $0xe8] sm:$0xff]
        %v454 = vld [vmem:[%s337 + $0xf0] sm:$0xff]
        %v455 = vld [vmem:[%s337 + $0xf8] sm:$0xff]
        %v456 = vld [vmem:[%s337 + $0x100] sm:$0xff]
        %v457 = vld [vmem:[%s337 + $0x108] sm:$0xff]
        %v458 = vld [vmem:[%s337 + $0x110] sm:$0xff]
        %v459 = vld [vmem:[%s337 + $0x118] sm:$0xff]
        %v460 = vld [vmem:[%s337 + $0x120] sm:$0xff]
        %v461 = vld [vmem:[%s337 + $0x128] sm:$0xff]
        %v462 = vld [vmem:[%s337 + $0x130] sm:$0xff]
        %v463 = vld [vmem:[%s337 + $0x138] sm:$0xff]
        %v464 = vld [vmem:[%s337 + $0x140] sm:$0xff]
        %v465 = vld [vmem:[%s337 + $0x148] sm:$0xff]
        %v466 = vld [vmem:[%s337 + $0x150] sm:$0xff]
        %v467 = vld [vmem:[%s337 + $0x158] sm:$0xff]
        %v468 = vld [vmem:[%s337 + $0x160] sm:$0xff]
        %v469 = vld [vmem:[%s337 + $0x168] sm:$0xff]
        %v470 = vld [vmem:[%s337 + $0x170] sm:$0xff]
        %v471 = vld [vmem:[%s337 + $0x178] sm:$0xff]
        %v472 = vld [vmem:[%s337 + $0x180] sm:$0xff]
        %v473 = vld [vmem:[%s337 + $0x188] sm:$0xff]
        %v474 = vld [vmem:[%s337 + $0x190] sm:$0xff]
        %v475 = vld [vmem:[%s337 + $0x198] sm:$0xff]
        %v476 = vld [vmem:[%s337 + $0x1a0] sm:$0xff]
        %v477 = vld [vmem:[%s337 + $0x1a8] sm:$0xff]
        %v478 = vld [vmem:[%s337 + $0x1b0] sm:$0xff]
        %v479 = vld [vmem:[%s337 + $0x1b8] sm:$0xff]
        %v480 = vld [vmem:[%s337 + $0x1c0] sm:$0xff]
        %v481 = vld [vmem:[%s337 + $0x1c8] sm:$0xff]
        %v482 = vld [vmem:[%s337 + $0x1d0] sm:$0xff]
        %v483 = vld [vmem:[%s337 + $0x1d8] sm:$0xff]
        %v484 = vld [vmem:[%s337 + $0x1e0] sm:$0xff]
        %v485 = vld [vmem:[%s337 + $0x1e8] sm:$0xff]
        %v486 = vld [vmem:[%s337 + $0x1f0] sm:$0xff]
        %v487 = vld [vmem:[%s337 + $0x1f8] sm:$0xff]
        %v488 = vld [vmem:[%s337 + $0x200] sm:$0xff]
        %v489 = vld [vmem:[%s337 + $0x208] sm:$0xff]
        %v490 = vld [vmem:[%s337 + $0x210] sm:$0xff]
        %v491 = vld [vmem:[%s337 + $0x218] sm:$0xff]
        %v492 = vld [vmem:[%s337 + $0x220] sm:$0xff]
        %v493 = vld [vmem:[%s337 + $0x228] sm:$0xff]
        %v494 = vld [vmem:[%s337 + $0x230] sm:$0xff]
        %v495 = vld [vmem:[%s337 + $0x238] sm:$0xff]
        %v496 = vld [vmem:[%s337 + $0x240] sm:$0xff]
        %v497 = vld [vmem:[%s337 + $0x248] sm:$0xff]
        %v498 = vld [vmem:[%s337 + $0x250] sm:$0xff]
        %v499 = vld [vmem:[%s337 + $0x258] sm:$0xff]
        %v500 = vld [vmem:[%s337 + $0x260] sm:$0xff]
        %v501 = vld [vmem:[%s337 + $0x268] sm:$0xff]
        %v502 = vld [vmem:[%s337 + $0x270] sm:$0xff]
        %v503 = vld [vmem:[%s337 + $0x278] sm:$0xff]
        %v504 = vld [vmem:[%s337 + $0x280] sm:$0xff]
        %v505 = vld [vmem:[%s337 + $0x288] sm:$0xff]
        %v506 = vld [vmem:[%s337 + $0x290] sm:$0xff]
        %v507 = vld [vmem:[%s337 + $0x298] sm:$0xff]
        %v508 = vld [vmem:[%s337 + $0x2a0] sm:$0xff]
        %v509 = vld [vmem:[%s337 + $0x2a8] sm:$0xff]
        %v510 = vld [vmem:[%s337 + $0x2b0] sm:$0xff]
        %v511 = vld [vmem:[%s337 + $0x2b8] sm:$0xff]
        %v512 = vld [vmem:[%s337 + $0x2c0] sm:$0xff]
        %v513 = vld [vmem:[%s337 + $0x2c8] sm:$0xff]
        %v514 = vld [vmem:[%s337 + $0x2d0] sm:$0xff]
        %v515 = vld [vmem:[%s337 + $0x2d8] sm:$0xff]
        %v516 = vld [vmem:[%s337 + $0x2e0] sm:$0xff]
        %v517 = vld [vmem:[%s337 + $0x2e8] sm:$0xff]
        %v518 = vld [vmem:[%s337 + $0x2f0] sm:$0xff]
        %v519 = vld [vmem:[%s337 + $0x2f8] sm:$0xff]
        %v520 = vld [vmem:[%s337 + $0x300] sm:$0xff]
        %v521 = vld [vmem:[%s337 + $0x308] sm:$0xff]
        %v522 = vld [vmem:[%s337 + $0x310] sm:$0xff]
        %v523 = vld [vmem:[%s337 + $0x318] sm:$0xff]
        %v524 = vld [vmem:[%s337 + $0x320] sm:$0xff]
        %v525 = vld [vmem:[%s337 + $0x328] sm:$0xff]
        %v526 = vld [vmem:[%s337 + $0x330] sm:$0xff]
        %v527 = vld [vmem:[%s337 + $0x338] sm:$0xff]
        %v528 = vld [vmem:[%s337 + $0x340] sm:$0xff]
        %v529 = vld [vmem:[%s337 + $0x348] sm:$0xff]
        %v530 = vld [vmem:[%s337 + $0x350] sm:$0xff]
        %v531 = vld [vmem:[%s337 + $0x358] sm:$0xff]
        %v532 = vld [vmem:[%s337 + $0x360] sm:$0xff]
        %v533 = vld [vmem:[%s337 + $0x368] sm:$0xff]
        %v534 = vld [vmem:[%s337 + $0x370] sm:$0xff]
        %v535 = vld [vmem:[%s337 + $0x378] sm:$0xff]
        %v536 = vld [vmem:[%s337 + $0x380] sm:$0xff]
        %v537 = vld [vmem:[%s337 + $0x388] sm:$0xff]
        %v538 = vld [vmem:[%s337 + $0x390] sm:$0xff]
        %v539 = vld [vmem:[%s337 + $0x398] sm:$0xff]
        %v540 = vld [vmem:[%s337 + $0x3a0] sm:$0xff]
        %v541 = vld [vmem:[%s337 + $0x3a8] sm:$0xff]
        %v542 = vld [vmem:[%s337 + $0x3b0] sm:$0xff]
        %v543 = vld [vmem:[%s337 + $0x3b8] sm:$0xff]
        %v544 = vld [vmem:[%s337 + $0x3c0] sm:$0xff]
        %v545 = vld [vmem:[%s337 + $0x3c8] sm:$0xff]
        %v546 = vld [vmem:[%s337 + $0x3d0] sm:$0xff]
        %v547 = vld [vmem:[%s337 + $0x3d8] sm:$0xff]
        %v548 = vld [vmem:[%s337 + $0x3e0] sm:$0xff]
        %v549 = vld [vmem:[%s337 + $0x3e8] sm:$0xff]
        %v550 = vld [vmem:[%s337 + $0x3f0] sm:$0xff]
        %v551 = vld [vmem:[%s337 + $0x3f8] sm:$0xff]
        %v552 = vld [vmem:[%s337 + $0x400] sm:$0xff]
        %v553 = vld [vmem:[%s337 + $0x408] sm:$0xff]
        %v554 = vld [vmem:[%s337 + $0x410] sm:$0xff]
        %v555 = vld [vmem:[%s337 + $0x418] sm:$0xff]
        %v556 = vld [vmem:[%s337 + $0x420] sm:$0xff]
        %v557 = vld [vmem:[%s337 + $0x428] sm:$0xff]
        %v558 = vld [vmem:[%s337 + $0x430] sm:$0xff]
        %v559 = vld [vmem:[%s337 + $0x438] sm:$0xff]
        %v560 = vld [vmem:[%s337 + $0x440] sm:$0xff]
        %v561 = vld [vmem:[%s337 + $0x448] sm:$0xff]
        %v562 = vld [vmem:[%s337 + $0x450] sm:$0xff]
        %v563 = vld [vmem:[%s337 + $0x458] sm:$0xff]
        %v564 = vld [vmem:[%s337 + $0x460] sm:$0xff]
        %v565 = vld [vmem:[%s337 + $0x468] sm:$0xff]
        %v566 = vld [vmem:[%s337 + $0x470] sm:$0xff]
        %v567 = vld [vmem:[%s337 + $0x478] sm:$0xff]
        %v568 = vld [vmem:[%s337 + $0x480] sm:$0xff]
        %v569 = vld [vmem:[%s337 + $0x488] sm:$0xff]
        %v570 = vld [vmem:[%s337 + $0x490] sm:$0xff]
        %v571 = vld [vmem:[%s337 + $0x498] sm:$0xff]
        %v572 = vld [vmem:[%s337 + $0x4a0] sm:$0xff]
        %v573 = vld [vmem:[%s337 + $0x4a8] sm:$0xff]
        %v574 = vld [vmem:[%s337 + $0x4b0] sm:$0xff]
        %v575 = vld [vmem:[%s337 + $0x4b8] sm:$0xff]
        %v576 = vld [vmem:[%s337 + $0x4c0] sm:$0xff]
        %v577 = vld [vmem:[%s337 + $0x4c8] sm:$0xff]
        %v578 = vld [vmem:[%s337 + $0x4d0] sm:$0xff]
        %v579 = vld [vmem:[%s337 + $0x4d8] sm:$0xff]
        %v580 = vld [vmem:[%s337 + $0x4e0] sm:$0xff]
        %v581 = vld [vmem:[%s337 + $0x4e8] sm:$0xff]
        %v582 = vld [vmem:[%s337 + $0x4f0] sm:$0xff]
        %v583 = vld [vmem:[%s337 + $0x4f8] sm:$0xff]
        %v584 = vld [vmem:[%s337 + $0x500] sm:$0xff]
        %v585 = vld [vmem:[%s337 + $0x508] sm:$0xff]
        %v586 = vld [vmem:[%s337 + $0x510] sm:$0xff]
        %v587 = vld [vmem:[%s337 + $0x518] sm:$0xff]
        %v588 = vld [vmem:[%s337 + $0x520] sm:$0xff]
        %v589 = vld [vmem:[%s337 + $0x528] sm:$0xff]
        %v590 = vld [vmem:[%s337 + $0x530] sm:$0xff]
        %v591 = vld [vmem:[%s337 + $0x538] sm:$0xff]
        %v592 = vld [vmem:[%s337 + $0x540] sm:$0xff]
        %v593 = vld [vmem:[%s337 + $0x548] sm:$0xff]
        %v594 = vld [vmem:[%s337 + $0x550] sm:$0xff]
        %v595 = vld [vmem:[%s337 + $0x558] sm:$0xff]
        %v596 = vld [vmem:[%s337 + $0x560] sm:$0xff]
        %v597 = vld [vmem:[%s337 + $0x568] sm:$0xff]
        %v598 = vld [vmem:[%s337 + $0x570] sm:$0xff]
        %v599 = vld [vmem:[%s337 + $0x578] sm:$0xff]
        %v600 = vld [vmem:[%s337 + $0x580] sm:$0xff]
        %v601 = vld [vmem:[%s337 + $0x588] sm:$0xff]
        %v602 = vld [vmem:[%s337 + $0x590] sm:$0xff]
        %v603 = vld [vmem:[%s337 + $0x598] sm:$0xff]
        %v604 = vld [vmem:[%s337 + $0x5a0] sm:$0xff]
        %v605 = vld [vmem:[%s337 + $0x5a8] sm:$0xff]
        %v606 = vld [vmem:[%s337 + $0x5b0] sm:$0xff]
        %v607 = vld [vmem:[%s337 + $0x5b8] sm:$0xff]
        %v608 = vld [vmem:[%s337 + $0x5c0] sm:$0xff]
        %v609 = vld [vmem:[%s337 + $0x5c8] sm:$0xff]
        %v610 = vld [vmem:[%s337 + $0x5d0] sm:$0xff]
        %v611 = vld [vmem:[%s337 + $0x5d8] sm:$0xff]
        %v612 = vld [vmem:[%s337 + $0x5e0] sm:$0xff]
        %v613 = vld [vmem:[%s337 + $0x5e8] sm:$0xff]
        %v614 = vld [vmem:[%s337 + $0x5f0] sm:$0xff]
        %v615 = vld [vmem:[%s337 + $0x5f8] sm:$0xff]
        %v616 = vld [vmem:[%s337 + $0x600] sm:$0xff]
        %v617 = vld [vmem:[%s337 + $0x608] sm:$0xff]
        %v618 = vld [vmem:[%s337 + $0x610] sm:$0xff]
        %v619 = vld [vmem:[%s337 + $0x618] sm:$0xff]
        %v620 = vld [vmem:[%s337 + $0x620] sm:$0xff]
        %v621 = vld [vmem:[%s337 + $0x628] sm:$0xff]
        %v622 = vld [vmem:[%s337 + $0x630] sm:$0xff]
        %v623 = vld [vmem:[%s337 + $0x638] sm:$0xff]
        %v624 = vld [vmem:[%s337 + $0x640] sm:$0xff]
        %v625 = vld [vmem:[%s337 + $0x648] sm:$0xff]
        %v626 = vld [vmem:[%s337 + $0x650] sm:$0xff]
        %v627 = vld [vmem:[%s337 + $0x658] sm:$0xff]
        %v628 = vld [vmem:[%s337 + $0x660] sm:$0xff]
        %v629 = vld [vmem:[%s337 + $0x668] sm:$0xff]
        %v630 = vld [vmem:[%s337 + $0x670] sm:$0xff]
        %v631 = vld [vmem:[%s337 + $0x678] sm:$0xff]
        %v632 = vld [vmem:[%s337 + $0x680] sm:$0xff]
        %v633 = vld [vmem:[%s337 + $0x688] sm:$0xff]
        %v634 = vld [vmem:[%s337 + $0x690] sm:$0xff]
        %v635 = vld [vmem:[%s337 + $0x698] sm:$0xff]
        %v636 = vld [vmem:[%s337 + $0x6a0] sm:$0xff]
        %v637 = vld [vmem:[%s337 + $0x6a8] sm:$0xff]
        %v638 = vld [vmem:[%s337 + $0x6b0] sm:$0xff]
        %v639 = vld [vmem:[%s337 + $0x6b8] sm:$0xff]
        %v640 = vld [vmem:[%s337 + $0x6c0] sm:$0xff]
        %v641 = vld [vmem:[%s337 + $0x6c8] sm:$0xff]
        %v642 = vld [vmem:[%s337 + $0x6d0] sm:$0xff]
        %v643 = vld [vmem:[%s337 + $0x6d8] sm:$0xff]
        %v644 = vld [vmem:[%s337 + $0x6e0] sm:$0xff]
        %v645 = vld [vmem:[%s337 + $0x6e8] sm:$0xff]
        %v646 = vld [vmem:[%s337 + $0x6f0] sm:$0xff]
        %v647 = vld [vmem:[%s337 + $0x6f8] sm:$0xff]
        %v648 = vld [vmem:[%s337 + $0x700] sm:$0xff]
        %v649 = vld [vmem:[%s337 + $0x708] sm:$0xff]
        %v650 = vld [vmem:[%s337 + $0x710] sm:$0xff]
        %v651 = vld [vmem:[%s337 + $0x718] sm:$0xff]
        %v652 = vld [vmem:[%s337 + $0x720] sm:$0xff]
        %v653 = vld [vmem:[%s337 + $0x728] sm:$0xff]
        %v654 = vld [vmem:[%s337 + $0x730] sm:$0xff]
        %v655 = vld [vmem:[%s337 + $0x738] sm:$0xff]
        %v656 = vld [vmem:[%s337 + $0x740] sm:$0xff]
        %v657 = vld [vmem:[%s337 + $0x748] sm:$0xff]
        %v658 = vld [vmem:[%s337 + $0x750] sm:$0xff]
        %v659 = vld [vmem:[%s337 + $0x758] sm:$0xff]
        %v660 = vld [vmem:[%s337 + $0x760] sm:$0xff]
        %v661 = vld [vmem:[%s337 + $0x768] sm:$0xff]
        %v662 = vld [vmem:[%s337 + $0x770] sm:$0xff]
        %v663 = vld [vmem:[%s337 + $0x778] sm:$0xff]
        %v664 = vld [vmem:[%s337 + $0x780] sm:$0xff]
        %v665 = vld [vmem:[%s337 + $0x788] sm:$0xff]
        %v666 = vld [vmem:[%s337 + $0x790] sm:$0xff]
        %v667 = vld [vmem:[%s337 + $0x798] sm:$0xff]
        %v668 = vld [vmem:[%s337 + $0x7a0] sm:$0xff]
        %v669 = vld [vmem:[%s337 + $0x7a8] sm:$0xff]
        %v670 = vld [vmem:[%s337 + $0x7b0] sm:$0xff]
        %v671 = vld [vmem:[%s337 + $0x7b8] sm:$0xff]
        %v672 = vld [vmem:[%s337 + $0x7c0] sm:$0xff]
        %v673 = vld [vmem:[%s337 + $0x7c8] sm:$0xff]
        %v674 = vld [vmem:[%s337 + $0x7d0] sm:$0xff]
        %v675 = vld [vmem:[%s337 + $0x7d8] sm:$0xff]
        %v676 = vld [vmem:[%s337 + $0x7e0] sm:$0xff]
        %v677 = vld [vmem:[%s337 + $0x7e8] sm:$0xff]
        %v678 = vld [vmem:[%s337 + $0x7f0] sm:$0xff]
        %v679 = vld [vmem:[%s337 + $0x7f8] sm:$0xff]
        %v680 = vld [vmem:[%s337 + $0x800] sm:$0xff]
        %v681 = vld [vmem:[%s337 + $0x808] sm:$0xff]
        %v682 = vld [vmem:[%s337 + $0x810] sm:$0xff]
        %v683 = vld [vmem:[%s337 + $0x818] sm:$0xff]
        %v684 = vld [vmem:[%s337 + $0x820] sm:$0xff]
        %v685 = vld [vmem:[%s337 + $0x828] sm:$0xff]
        %v686 = vld [vmem:[%s337 + $0x830] sm:$0xff]
        %v687 = vld [vmem:[%s337 + $0x838] sm:$0xff]
        %v688 = vld [vmem:[%s337 + $0x840] sm:$0xff]
        %v689 = vld [vmem:[%s337 + $0x848] sm:$0xff]
        %v690 = vld [vmem:[%s337 + $0x850] sm:$0xff]
        %v691 = vld [vmem:[%s337 + $0x858] sm:$0xff]
        %v692 = vld [vmem:[%s337 + $0x860] sm:$0xff]
        %v693 = vld [vmem:[%s337 + $0x868] sm:$0xff]
        %v694 = vld [vmem:[%s337 + $0x870] sm:$0xff]
        %v695 = vld [vmem:[%s337 + $0x878] sm:$0xff]
        %v696 = vld [vmem:[%s337 + $0x880] sm:$0xff]
        %v697 = vld [vmem:[%s337 + $0x888] sm:$0xff]
        %v698 = vld [vmem:[%s337 + $0x890] sm:$0xff]
        %v699 = vld [vmem:[%s337 + $0x898] sm:$0xff]
        %v700 = vld [vmem:[%s337 + $0x8a0] sm:$0xff]
        %v701 = vld [vmem:[%s337 + $0x8a8] sm:$0xff]
        %v702 = vld [vmem:[%s337 + $0x8b0] sm:$0xff]
        %v703 = vld [vmem:[%s337 + $0x8b8] sm:$0xff]
        %v704 = vld [vmem:[%s337 + $0x8c0] sm:$0xff]
        %v705 = vld [vmem:[%s337 + $0x8c8] sm:$0xff]
        %v706 = vld [vmem:[%s337 + $0x8d0] sm:$0xff]
        %v707 = vld [vmem:[%s337 + $0x8d8] sm:$0xff]
        %v708 = vld [vmem:[%s337 + $0x8e0] sm:$0xff]
        %v709 = vld [vmem:[%s337 + $0x8e8] sm:$0xff]
        %v710 = vld [vmem:[%s337 + $0x8f0] sm:$0xff]
        %v711 = vld [vmem:[%s337 + $0x8f8] sm:$0xff]
        %v712 = vld [vmem:[%s337 + $0x900] sm:$0xff]
        %v713 = vld [vmem:[%s337 + $0x908] sm:$0xff]
        %v714 = vld [vmem:[%s337 + $0x910] sm:$0xff]
        %v715 = vld [vmem:[%s337 + $0x918] sm:$0xff]
        %v716 = vld [vmem:[%s337 + $0x920] sm:$0xff]
        %v717 = vld [vmem:[%s337 + $0x928] sm:$0xff]
        %v718 = vld [vmem:[%s337 + $0x930] sm:$0xff]
        %v719 = vld [vmem:[%s337 + $0x938] sm:$0xff]
        %v720 = vld [vmem:[%s337 + $0x940] sm:$0xff]
        %v721 = vld [vmem:[%s337 + $0x948] sm:$0xff]
        %v722 = vld [vmem:[%s337 + $0x950] sm:$0xff]
        %v723 = vld [vmem:[%s337 + $0x958] sm:$0xff]
        %v724 = vld [vmem:[%s337 + $0x960] sm:$0xff]
        %v725 = vld [vmem:[%s337 + $0x968] sm:$0xff]
        %v726 = vld [vmem:[%s337 + $0x970] sm:$0xff]
        %v727 = vld [vmem:[%s337 + $0x978] sm:$0xff]
        %v728 = vld [vmem:[%s337 + $0x980] sm:$0xff]
        %v729 = vld [vmem:[%s337 + $0x988] sm:$0xff]
        %v730 = vld [vmem:[%s337 + $0x990] sm:$0xff]
        %v731 = vld [vmem:[%s337 + $0x998] sm:$0xff]
        %v732 = vld [vmem:[%s337 + $0x9a0] sm:$0xff]
        %v733 = vld [vmem:[%s337 + $0x9a8] sm:$0xff]
        %v734 = vld [vmem:[%s337 + $0x9b0] sm:$0xff]
        %v735 = vld [vmem:[%s337 + $0x9b8] sm:$0xff]
        %v736 = vld [vmem:[%s337 + $0x9c0] sm:$0xff]
        %v737 = vld [vmem:[%s337 + $0x9c8] sm:$0xff]
        %v738 = vld [vmem:[%s337 + $0x9d0] sm:$0xff]
        %v739 = vld [vmem:[%s337 + $0x9d8] sm:$0xff]
        %v740 = vld [vmem:[%s337 + $0x9e0] sm:$0xff]
        %v741 = vld [vmem:[%s337 + $0x9e8] sm:$0xff]
        %v742 = vld [vmem:[%s337 + $0x9f0] sm:$0xff]
        %v743 = vld [vmem:[%s337 + $0x9f8] sm:$0xff]
        %v744 = vld [vmem:[%s337 + $0xa00] sm:$0xff]
        %v745 = vld [vmem:[%s337 + $0xa08] sm:$0xff]
        %v746 = vld [vmem:[%s337 + $0xa10] sm:$0xff]
        %v747 = vld [vmem:[%s337 + $0xa18] sm:$0xff]
        %v748 = vld [vmem:[%s337 + $0xa20] sm:$0xff]
        %v749 = vld [vmem:[%s337 + $0xa28] sm:$0xff]
        %v750 = vld [vmem:[%s337 + $0xa30] sm:$0xff]
        %v751 = vld [vmem:[%s337 + $0xa38] sm:$0xff]
        %v752 = vld [vmem:[%s337 + $0xa40] sm:$0xff]
        %v753 = vld [vmem:[%s337 + $0xa48] sm:$0xff]
        %v754 = vld [vmem:[%s337 + $0xa50] sm:$0xff]
        %v755 = vld [vmem:[%s337 + $0xa58] sm:$0xff]
        %v756 = vld [vmem:[%s337 + $0xa60] sm:$0xff]
        %v757 = vld [vmem:[%s337 + $0xa68] sm:$0xff]
        %v758 = vld [vmem:[%s337 + $0xa70] sm:$0xff]
        %v759 = vld [vmem:[%s337 + $0xa78] sm:$0xff]
        %v760 = vld [vmem:[%s337 + $0xa80] sm:$0xff]
        %v761 = vld [vmem:[%s337 + $0xa88] sm:$0xff]
        %v762 = vld [vmem:[%s337 + $0xa90] sm:$0xff]
        %v763 = vld [vmem:[%s337 + $0xa98] sm:$0xff]
        %v764 = vld [vmem:[%s337 + $0xaa0] sm:$0xff]
        %v765 = vld [vmem:[%s337 + $0xaa8] sm:$0xff]
        %v766 = vld [vmem:[%s337 + $0xab0] sm:$0xff]
        %v767 = vld [vmem:[%s337 + $0xab8] sm:$0xff]
        %v768 = vld [vmem:[%s337 + $0xac0] sm:$0xff]
        %v769 = vld [vmem:[%s337 + $0xac8] sm:$0xff]
        %v770 = vld [vmem:[%s337 + $0xad0] sm:$0xff]
        %v771 = vld [vmem:[%s337 + $0xad8] sm:$0xff]
        %v772 = vld [vmem:[%s337 + $0xae0] sm:$0xff]
        %v773 = vld [vmem:[%s337 + $0xae8] sm:$0xff]
        %v774 = vld [vmem:[%s337 + $0xaf0] sm:$0xff]
        %v775 = vld [vmem:[%s337 + $0xaf8] sm:$0xff]
        %v776 = vld [vmem:[%s337 + $0xb00] sm:$0xff]
        %v777 = vld [vmem:[%s337 + $0xb08] sm:$0xff]
        %v778 = vld [vmem:[%s337 + $0xb10] sm:$0xff]
        %v779 = vld [vmem:[%s337 + $0xb18] sm:$0xff]
        %v780 = vld [vmem:[%s337 + $0xb20] sm:$0xff]
        %v781 = vld [vmem:[%s337 + $0xb28] sm:$0xff]
        %v782 = vld [vmem:[%s337 + $0xb30] sm:$0xff]
        %v783 = vld [vmem:[%s337 + $0xb38] sm:$0xff]
        %v784 = vld [vmem:[%s337 + $0xb40] sm:$0xff]
        %v785 = vld [vmem:[%s337 + $0xb48] sm:$0xff]
        %v786 = vld [vmem:[%s337 + $0xb50] sm:$0xff]
        %v787 = vld [vmem:[%s337 + $0xb58] sm:$0xff]
        %v788 = vld [vmem:[%s337 + $0xb60] sm:$0xff]
        %v789 = vld [vmem:[%s337 + $0xb68] sm:$0xff]
        %v790 = vld [vmem:[%s337 + $0xb70] sm:$0xff]
        %v791 = vld [vmem:[%s337 + $0xb78] sm:$0xff]
        %v792 = vld [vmem:[%s337 + $0xb80] sm:$0xff]
        %v793 = vld [vmem:[%s337 + $0xb88] sm:$0xff]
        %v794 = vld [vmem:[%s337 + $0xb90] sm:$0xff]
        %v795 = vld [vmem:[%s337 + $0xb98] sm:$0xff]
        %v796 = vld [vmem:[%s337 + $0xba0] sm:$0xff]
        %v797 = vld [vmem:[%s337 + $0xba8] sm:$0xff]
        %v798 = vld [vmem:[%s337 + $0xbb0] sm:$0xff]
        %v799 = vld [vmem:[%s337 + $0xbb8] sm:$0xff]
        %v800 = vld [vmem:[%s337 + $0xbc0] sm:$0xff]
        %v801 = vld [vmem:[%s337 + $0xbc8] sm:$0xff]
        %v802 = vld [vmem:[%s337 + $0xbd0] sm:$0xff]
        %v803 = vld [vmem:[%s337 + $0xbd8] sm:$0xff]
        %v804 = vld [vmem:[%s337 + $0xbe0] sm:$0xff]
        %v805 = vld [vmem:[%s337 + $0xbe8] sm:$0xff]
        %v806 = vld [vmem:[%s337 + $0xbf0] sm:$0xff]
        %v807 = vld [vmem:[%s337 + $0xbf8] sm:$0xff]
        %v808 = vld [vmem:[%s337 + $0xc00] sm:$0xff]
        %v809 = vld [vmem:[%s337 + $0xc08] sm:$0xff]
        %v810 = vld [vmem:[%s337 + $0xc10] sm:$0xff]
        %v811 = vld [vmem:[%s337 + $0xc18] sm:$0xff]
        %v812 = vld [vmem:[%s337 + $0xc20] sm:$0xff]
        %v813 = vld [vmem:[%s337 + $0xc28] sm:$0xff]
        %v814 = vld [vmem:[%s337 + $0xc30] sm:$0xff]
        %v815 = vld [vmem:[%s337 + $0xc38] sm:$0xff]
        %v816 = vld [vmem:[%s337 + $0xc40] sm:$0xff]
        %v817 = vld [vmem:[%s337 + $0xc48] sm:$0xff]
        %v818 = vld [vmem:[%s337 + $0xc50] sm:$0xff]
        %v819 = vld [vmem:[%s337 + $0xc58] sm:$0xff]
        %v820 = vld [vmem:[%s337 + $0xc60] sm:$0xff]
        %v821 = vld [vmem:[%s337 + $0xc68] sm:$0xff]
        %v822 = vld [vmem:[%s337 + $0xc70] sm:$0xff]
        %v823 = vld [vmem:[%s337 + $0xc78] sm:$0xff]
        %v824 = vld [vmem:[%s337 + $0xc80] sm:$0xff]
        %v825 = vld [vmem:[%s337 + $0xc88] sm:$0xff]
        %v826 = vld [vmem:[%s337 + $0xc90] sm:$0xff]
        %v827 = vld [vmem:[%s337 + $0xc98] sm:$0xff]
        %v828 = vld [vmem:[%s337 + $0xca0] sm:$0xff]
        %v829 = vld [vmem:[%s337 + $0xca8] sm:$0xff]
        %v830 = vld [vmem:[%s337 + $0xcb0] sm:$0xff]
        %v831 = vld [vmem:[%s337 + $0xcb8] sm:$0xff]
        %v832 = vld [vmem:[%s337 + $0xcc0] sm:$0xff]
        %v833 = vld [vmem:[%s337 + $0xcc8] sm:$0xff]
        %v834 = vld [vmem:[%s337 + $0xcd0] sm:$0xff]
        %v835 = vld [vmem:[%s337 + $0xcd8] sm:$0xff]
        %v836 = vld [vmem:[%s337 + $0xce0] sm:$0xff]
        %v837 = vld [vmem:[%s337 + $0xce8] sm:$0xff]
        %v838 = vld [vmem:[%s337 + $0xcf0] sm:$0xff]
        %v839 = vld [vmem:[%s337 + $0xcf8] sm:$0xff]
        %v840 = vld [vmem:[%s337 + $0xd00] sm:$0xff]
        %v841 = vld [vmem:[%s337 + $0xd08] sm:$0xff]
        %v842 = vld [vmem:[%s337 + $0xd10] sm:$0xff]
        %v843 = vld [vmem:[%s337 + $0xd18] sm:$0xff]
        %v844 = vld [vmem:[%s337 + $0xd20] sm:$0xff]
        %v845 = vld [vmem:[%s337 + $0xd28] sm:$0xff]
        %v846 = vld [vmem:[%s337 + $0xd30] sm:$0xff]
        %v847 = vld [vmem:[%s337 + $0xd38] sm:$0xff]
        %v848 = vld [vmem:[%s337 + $0xd40] sm:$0xff]
        %v849 = vld [vmem:[%s337 + $0xd48] sm:$0xff]
        %v850 = vld [vmem:[%s337 + $0xd50] sm:$0xff]
        %v851 = vld [vmem:[%s337 + $0xd58] sm:$0xff]
        %v852 = vld [vmem:[%s337 + $0xd60] sm:$0xff]
        %v853 = vld [vmem:[%s337 + $0xd68] sm:$0xff]
        %v854 = vld [vmem:[%s337 + $0xd70] sm:$0xff]
        %v855 = vld [vmem:[%s337 + $0xd78] sm:$0xff]
        %v856 = vld [vmem:[%s337 + $0xd80] sm:$0xff]
        %v857 = vld [vmem:[%s337 + $0xd88] sm:$0xff]
        %v858 = vld [vmem:[%s337 + $0xd90] sm:$0xff]
        %v859 = vld [vmem:[%s337 + $0xd98] sm:$0xff]
        %v860 = vld [vmem:[%s337 + $0xda0] sm:$0xff]
        %v861 = vld [vmem:[%s337 + $0xda8] sm:$0xff]
        %v862 = vld [vmem:[%s337 + $0xdb0] sm:$0xff]
        %v863 = vld [vmem:[%s337 + $0xdb8] sm:$0xff]
        %v864 = vld [vmem:[%s337 + $0xdc0] sm:$0xff]
        %v865 = vld [vmem:[%s337 + $0xdc8] sm:$0xff]
        %v866 = vld [vmem:[%s337 + $0xdd0] sm:$0xff]
        %v867 = vld [vmem:[%s337 + $0xdd8] sm:$0xff]
        %v868 = vld [vmem:[%s337 + $0xde0] sm:$0xff]
        %v869 = vld [vmem:[%s337 + $0xde8] sm:$0xff]
        %v870 = vld [vmem:[%s337 + $0xdf0] sm:$0xff]
        %v871 = vld [vmem:[%s337 + $0xdf8] sm:$0xff]
        %v872 = vld [vmem:[%s337 + $0xe00] sm:$0xff]
        %v873 = vld [vmem:[%s337 + $0xe08] sm:$0xff]
        %v874 = vld [vmem:[%s337 + $0xe10] sm:$0xff]
        %v875 = vld [vmem:[%s337 + $0xe18] sm:$0xff]
        %v876 = vld [vmem:[%s337 + $0xe20] sm:$0xff]
        %v877 = vld [vmem:[%s337 + $0xe28] sm:$0xff]
        %v878 = vld [vmem:[%s337 + $0xe30] sm:$0xff]
        %v879 = vld [vmem:[%s337 + $0xe38] sm:$0xff]
        %v880 = vld [vmem:[%s337 + $0xe40] sm:$0xff]
        %v881 = vld [vmem:[%s337 + $0xe48] sm:$0xff]
        %v882 = vld [vmem:[%s337 + $0xe50] sm:$0xff]
        %v883 = vld [vmem:[%s337 + $0xe58] sm:$0xff]
        %v884 = vld [vmem:[%s337 + $0xe60] sm:$0xff]
        %v885 = vld [vmem:[%s337 + $0xe68] sm:$0xff]
        %v886 = vld [vmem:[%s337 + $0xe70] sm:$0xff]
        %v887 = vld [vmem:[%s337 + $0xe78] sm:$0xff]
        %v888 = vld [vmem:[%s337 + $0xe80] sm:$0xff]
        %v889 = vld [vmem:[%s337 + $0xe88] sm:$0xff]
        %v890 = vld [vmem:[%s337 + $0xe90] sm:$0xff]
        %v891 = vld [vmem:[%s337 + $0xe98] sm:$0xff]
        %v892 = vld [vmem:[%s337 + $0xea0] sm:$0xff]
        %v893 = vld [vmem:[%s337 + $0xea8] sm:$0xff]
        %v894 = vld [vmem:[%s337 + $0xeb0] sm:$0xff]
        %v895 = vld [vmem:[%s337 + $0xeb8] sm:$0xff]
        %v896 = vld [vmem:[%s337 + $0xec0] sm:$0xff]
        %v897 = vld [vmem:[%s337 + $0xec8] sm:$0xff]
        %v898 = vld [vmem:[%s337 + $0xed0] sm:$0xff]
        %v899 = vld [vmem:[%s337 + $0xed8] sm:$0xff]
        %v900 = vld [vmem:[%s337 + $0xee0] sm:$0xff]
        %v901 = vld [vmem:[%s337 + $0xee8] sm:$0xff]
        %v902 = vld [vmem:[%s337 + $0xef0] sm:$0xff]
        %v903 = vld [vmem:[%s337 + $0xef8] sm:$0xff]
        %v904 = vld [vmem:[%s337 + $0xf00] sm:$0xff]
        %v905 = vld [vmem:[%s337 + $0xf08] sm:$0xff]
        %v906 = vld [vmem:[%s337 + $0xf10] sm:$0xff]
        %v907 = vld [vmem:[%s337 + $0xf18] sm:$0xff]
        %v908 = vld [vmem:[%s337 + $0xf20] sm:$0xff]
        %v909 = vld [vmem:[%s337 + $0xf28] sm:$0xff]
        %v910 = vld [vmem:[%s337 + $0xf30] sm:$0xff]
        %v911 = vld [vmem:[%s337 + $0xf38] sm:$0xff]
        %v912 = vld [vmem:[%s337 + $0xf40] sm:$0xff]
        %v913 = vld [vmem:[%s337 + $0xf48] sm:$0xff]
        %v914 = vld [vmem:[%s337 + $0xf50] sm:$0xff]
        %v915 = vld [vmem:[%s337 + $0xf58] sm:$0xff]
        %v916 = vld [vmem:[%s337 + $0xf60] sm:$0xff]
        %v917 = vld [vmem:[%s337 + $0xf68] sm:$0xff]
        %v918 = vld [vmem:[%s337 + $0xf70] sm:$0xff]
        %v919 = vld [vmem:[%s337 + $0xf78] sm:$0xff]
        %v920 = vld [vmem:[%s337 + $0xf80] sm:$0xff]
        %v921 = vld [vmem:[%s337 + $0xf88] sm:$0xff]
        %v922 = vld [vmem:[%s337 + $0xf90] sm:$0xff]
        %v923 = vld [vmem:[%s337 + $0xf98] sm:$0xff]
        %v924 = vld [vmem:[%s337 + $0xfa0] sm:$0xff]
        %v925 = vld [vmem:[%s337 + $0xfa8] sm:$0xff]
        %v926 = vld [vmem:[%s337 + $0xfb0] sm:$0xff]
        %v927 = vld [vmem:[%s337 + $0xfb8] sm:$0xff]
        %v928 = vld [vmem:[%s337 + $0xfc0] sm:$0xff]
        %v929 = vld [vmem:[%s337 + $0xfc8] sm:$0xff]
        %v930 = vld [vmem:[%s337 + $0xfd0] sm:$0xff]
        %v931 = vld [vmem:[%s337 + $0xfd8] sm:$0xff]
        %v932 = vld [vmem:[%s337 + $0xfe0] sm:$0xff]
        %v933 = vld [vmem:[%s337 + $0xfe8] sm:$0xff]
        %v934 = vld [vmem:[%s337 + $0xff0] sm:$0xff]
        %v935 = vld [vmem:[%s337 + $0xff8] sm:$0xff]
        %v936 = vld [vmem:[%s337 + $0x1000] sm:$0xff]
        %v937 = vld [vmem:[%s337 + $0x1008] sm:$0xff]
        %v938 = vld [vmem:[%s337 + $0x1010] sm:$0xff]
        %v939 = vld [vmem:[%s337 + $0x1018] sm:$0xff]
        %v940 = vld [vmem:[%s337 + $0x1020] sm:$0xff]
        %v941 = vld [vmem:[%s337 + $0x1028] sm:$0xff]
        %v942 = vld [vmem:[%s337 + $0x1030] sm:$0xff]
        %v943 = vld [vmem:[%s337 + $0x1038] sm:$0xff]
        %v944 = vld [vmem:[%s337 + $0x1040] sm:$0xff]
        %v945 = vld [vmem:[%s337 + $0x1048] sm:$0xff]
        %v946 = vld [vmem:[%s337 + $0x1050] sm:$0xff]
        %v947 = vld [vmem:[%s337 + $0x1058] sm:$0xff]
        %v948 = vld [vmem:[%s337 + $0x1060] sm:$0xff]
        %v949 = vld [vmem:[%s337 + $0x1068] sm:$0xff]
        %v950 = vld [vmem:[%s337 + $0x1070] sm:$0xff]
        %v951 = vld [vmem:[%s337 + $0x1078] sm:$0xff]
        %v952 = vld [vmem:[%s337 + $0x1080] sm:$0xff]
        %v953 = vld [vmem:[%s337 + $0x1088] sm:$0xff]
        %v954 = vld [vmem:[%s337 + $0x1090] sm:$0xff]
        %v955 = vld [vmem:[%s337 + $0x1098] sm:$0xff]
        %v956 = vld [vmem:[%s337 + $0x10a0] sm:$0xff]
        %v957 = vld [vmem:[%s337 + $0x10a8] sm:$0xff]
        %v958 = vld [vmem:[%s337 + $0x10b0] sm:$0xff]
        %v959 = vld [vmem:[%s337 + $0x10b8] sm:$0xff]
        %v960 = vld [vmem:[%s337 + $0x10c0] sm:$0xff]
        %v961 = vld [vmem:[%s337 + $0x10c8] sm:$0xff]
        %v962 = vld [vmem:[%s337 + $0x10d0] sm:$0xff]
        %v963 = vld [vmem:[%s337 + $0x10d8] sm:$0xff]
        %v964 = vld [vmem:[%s337 + $0x10e0] sm:$0xff]
        %v965 = vld [vmem:[%s337 + $0x10e8] sm:$0xff]
        %v966 = vld [vmem:[%s337 + $0x10f0] sm:$0xff]
        %v967 = vld [vmem:[%s337 + $0x10f8] sm:$0xff]
        %v968 = vld [vmem:[%s346] sm:$0xf]
        %v970 = vlaneseq
        %v971 = vshrl.u32 %v970, 7
        %v972 = vsub.s32 0, %v971
        %v973 = vrot.slane %v968, %v972
        %v974 = vlaneseq
        %v975 = vshrl.u32 %v974, 7
        %v976 = vsub.s32 1, %v975
        %v977 = vrot.slane %v968, %v976
        %v978 = vlaneseq
        %v979 = vshrl.u32 %v978, 7
        %v980 = vsub.s32 2, %v979
        %v981 = vrot.slane %v968, %v980
        %v982 = vlaneseq
        %v983 = vshrl.u32 %v982, 7
        %v984 = vsub.s32 3, %v983
        %v985 = vrot.slane %v968, %v984
        %v999 = vunpack.c.l.b16 %v415
        %v1000 = vunpack.c.h.b16 %v415
        %v1001 = vunpack.c.l.b16 %v416
        %v1002 = vunpack.c.h.b16 %v416
        %v1003 = vunpack.c.l.b16 %v417
        %v1004 = vunpack.c.h.b16 %v417
        %v1005 = vunpack.c.l.b16 %v418
        %v1006 = vunpack.c.h.b16 %v418
        %v1007 = vunpack.c.l.b16 %v419
        %v1008 = vunpack.c.h.b16 %v419
        %v1009 = vunpack.c.l.b16 %v420
        %v1010 = vunpack.c.h.b16 %v420
        %v1011 = vunpack.c.l.b16 %v421
        %v1012 = vunpack.c.h.b16 %v421
        %v1013 = vunpack.c.l.b16 %v422
        %v1014 = vunpack.c.h.b16 %v422
        %v1015 = vunpack.c.l.b16 %v423
        %v1016 = vpack.c.b16 %v999, %v999
        %v1017 = vpack.c.b16 %v1000, %v1000
        %v1018 = vpack.c.b16 %v1001, %v1001
        %v1019 = vpack.c.b16 %v1002, %v1002
        %v1020 = vpack.c.b16 %v1003, %v1003
        %v1021 = vpack.c.b16 %v1004, %v1004
        %v1022 = vpack.c.b16 %v1005, %v1005
        %v1023 = vpack.c.b16 %v1006, %v1006
        %v1024 = vpack.c.b16 %v1007, %v1007
        %v1025 = vpack.c.b16 %v1008, %v1008
        %v1026 = vpack.c.b16 %v1009, %v1009
        %v1027 = vpack.c.b16 %v1010, %v1010
        %v1028 = vpack.c.b16 %v1011, %v1011
        %v1029 = vpack.c.b16 %v1012, %v1012
        %v1030 = vpack.c.b16 %v1013, %v1013
        %v1031 = vpack.c.b16 %v1014, %v1014
        %v1032 = vpack.c.b16 %v1015, %v1015
        %v1594 = vunpack.c.l.b16 %v424
        %v1595 = vunpack.c.h.b16 %v424
        %v1596 = vunpack.c.l.b16 %v425
        %v1597 = vunpack.c.h.b16 %v425
        %v1598 = vunpack.c.l.b16 %v426
        %v1599 = vunpack.c.h.b16 %v426
        %v1600 = vunpack.c.l.b16 %v427
        %v1601 = vunpack.c.h.b16 %v427
        %v1602 = vunpack.c.l.b16 %v428
        %v1603 = vunpack.c.h.b16 %v428
        %v1604 = vunpack.c.l.b16 %v429
        %v1605 = vunpack.c.h.b16 %v429
        %v1606 = vunpack.c.l.b16 %v430
        %v1607 = vunpack.c.h.b16 %v430
        %v1608 = vunpack.c.l.b16 %v431
        %v1609 = vunpack.c.h.b16 %v431
        %v1610 = vunpack.c.l.b16 %v432
        %v1611 = vunpack.c.h.b16 %v432
        %v1612 = vunpack.c.l.b16 %v433
        %v1613 = vunpack.c.h.b16 %v433
        %v1614 = vunpack.c.l.b16 %v434
        %v1615 = vunpack.c.h.b16 %v434
        %v1616 = vunpack.c.l.b16 %v435
        %v1617 = vunpack.c.h.b16 %v435
        %v1618 = vunpack.c.l.b16 %v436
        %v1619 = vunpack.c.h.b16 %v436
        %v1620 = vunpack.c.l.b16 %v437
        %v1621 = vunpack.c.h.b16 %v437
        %v1622 = vunpack.c.l.b16 %v438
        %v1623 = vunpack.c.h.b16 %v438
        %v1624 = vunpack.c.l.b16 %v439
        %v1625 = vunpack.c.h.b16 %v439
        %v1626 = vunpack.c.l.b16 %v440
        %v1627 = vunpack.c.h.b16 %v440
        %v1628 = vunpack.c.l.b16 %v441
        %v1629 = vunpack.c.h.b16 %v441
        %v1630 = vunpack.c.l.b16 %v442
        %v1631 = vunpack.c.h.b16 %v442
        %v1632 = vunpack.c.l.b16 %v443
        %v1633 = vunpack.c.h.b16 %v443
        %v1634 = vunpack.c.l.b16 %v444
        %v1635 = vunpack.c.h.b16 %v444
        %v1636 = vunpack.c.l.b16 %v445
        %v1637 = vunpack.c.h.b16 %v445
        %v1638 = vunpack.c.l.b16 %v446
        %v1639 = vunpack.c.h.b16 %v446
        %v1640 = vunpack.c.l.b16 %v447
        %v1641 = vunpack.c.h.b16 %v447
        %v1642 = vunpack.c.l.b16 %v448
        %v1643 = vunpack.c.h.b16 %v448
        %v1644 = vunpack.c.l.b16 %v449
        %v1645 = vunpack.c.h.b16 %v449
        %v1646 = vunpack.c.l.b16 %v450
        %v1647 = vunpack.c.h.b16 %v450
        %v1648 = vunpack.c.l.b16 %v451
        %v1649 = vunpack.c.h.b16 %v451
        %v1650 = vunpack.c.l.b16 %v452
        %v1651 = vunpack.c.h.b16 %v452
        %v1652 = vunpack.c.l.b16 %v453
        %v1653 = vunpack.c.h.b16 %v453
        %v1654 = vunpack.c.l.b16 %v454
        %v1655 = vunpack.c.h.b16 %v454
        %v1656 = vunpack.c.l.b16 %v455
        %v1657 = vunpack.c.h.b16 %v455
        %v1658 = vunpack.c.l.b16 %v456
        %v1659 = vunpack.c.h.b16 %v456
        %v1660 = vunpack.c.l.b16 %v457
        %v1661 = vunpack.c.h.b16 %v457
        %v1662 = vunpack.c.l.b16 %v458
        %v1663 = vunpack.c.h.b16 %v458
        %v1664 = vunpack.c.l.b16 %v459
        %v1665 = vunpack.c.h.b16 %v459
        %v1666 = vunpack.c.l.b16 %v460
        %v1667 = vunpack.c.h.b16 %v460
        %v1668 = vunpack.c.l.b16 %v461
        %v1669 = vunpack.c.h.b16 %v461
        %v1670 = vunpack.c.l.b16 %v462
        %v1671 = vunpack.c.h.b16 %v462
        %v1672 = vunpack.c.l.b16 %v463
        %v1673 = vunpack.c.h.b16 %v463
        %v1674 = vunpack.c.l.b16 %v464
        %v1675 = vunpack.c.h.b16 %v464
        %v1676 = vunpack.c.l.b16 %v465
        %v1677 = vunpack.c.h.b16 %v465
        %v1678 = vunpack.c.l.b16 %v466
        %v1679 = vunpack.c.h.b16 %v466
        %v1680 = vunpack.c.l.b16 %v467
        %v1681 = vunpack.c.h.b16 %v467
        %v1682 = vunpack.c.l.b16 %v468
        %v1683 = vunpack.c.h.b16 %v468
        %v1684 = vunpack.c.l.b16 %v469
        %v1685 = vunpack.c.h.b16 %v469
        %v1686 = vunpack.c.l.b16 %v470
        %v1687 = vunpack.c.h.b16 %v470
        %v1688 = vunpack.c.l.b16 %v471
        %v1689 = vunpack.c.h.b16 %v471
        %v1690 = vunpack.c.l.b16 %v472
        %v1691 = vunpack.c.h.b16 %v472
        %v1692 = vunpack.c.l.b16 %v473
        %v1693 = vunpack.c.h.b16 %v473
        %v1694 = vunpack.c.l.b16 %v474
        %v1695 = vunpack.c.h.b16 %v474
        %v1696 = vunpack.c.l.b16 %v475
        %v1697 = vunpack.c.h.b16 %v475
        %v1698 = vunpack.c.l.b16 %v476
        %v1699 = vunpack.c.h.b16 %v476
        %v1700 = vunpack.c.l.b16 %v477
        %v1701 = vunpack.c.h.b16 %v477
        %v1702 = vunpack.c.l.b16 %v478
        %v1703 = vunpack.c.h.b16 %v478
        %v1704 = vunpack.c.l.b16 %v479
        %v1705 = vunpack.c.h.b16 %v479
        %v1706 = vunpack.c.l.b16 %v480
        %v1707 = vunpack.c.h.b16 %v480
        %v1708 = vunpack.c.l.b16 %v481
        %v1709 = vunpack.c.h.b16 %v481
        %v1710 = vunpack.c.l.b16 %v482
        %v1711 = vunpack.c.h.b16 %v482
        %v1712 = vunpack.c.l.b16 %v483
        %v1713 = vunpack.c.h.b16 %v483
        %v1714 = vunpack.c.l.b16 %v484
        %v1715 = vunpack.c.h.b16 %v484
        %v1716 = vunpack.c.l.b16 %v485
        %v1717 = vunpack.c.h.b16 %v485
        %v1718 = vunpack.c.l.b16 %v486
        %v1719 = vunpack.c.h.b16 %v486
        %v1720 = vunpack.c.l.b16 %v487
        %v1721 = vunpack.c.h.b16 %v487
        %v1722 = vunpack.c.l.b16 %v488
        %v1723 = vunpack.c.h.b16 %v488
        %v1724 = vunpack.c.l.b16 %v489
        %v1725 = vunpack.c.h.b16 %v489
        %v1726 = vunpack.c.l.b16 %v490
        %v1727 = vunpack.c.h.b16 %v490
        %v1728 = vunpack.c.l.b16 %v491
        %v1729 = vunpack.c.h.b16 %v491
        %v1730 = vunpack.c.l.b16 %v492
        %v1731 = vunpack.c.h.b16 %v492
        %v1732 = vunpack.c.l.b16 %v493
        %v1733 = vunpack.c.h.b16 %v493
        %v1734 = vunpack.c.l.b16 %v494
        %v1735 = vunpack.c.h.b16 %v494
        %v1736 = vunpack.c.l.b16 %v495
        %v1737 = vunpack.c.h.b16 %v495
        %v1738 = vunpack.c.l.b16 %v496
        %v1739 = vunpack.c.h.b16 %v496
        %v1740 = vunpack.c.l.b16 %v497
        %v1741 = vunpack.c.h.b16 %v497
        %v1742 = vunpack.c.l.b16 %v498
        %v1743 = vunpack.c.h.b16 %v498
        %v1744 = vunpack.c.l.b16 %v499
        %v1745 = vunpack.c.h.b16 %v499
        %v1746 = vunpack.c.l.b16 %v500
        %v1747 = vunpack.c.h.b16 %v500
        %v1748 = vunpack.c.l.b16 %v501
        %v1749 = vunpack.c.h.b16 %v501
        %v1750 = vunpack.c.l.b16 %v502
        %v1751 = vunpack.c.h.b16 %v502
        %v1752 = vunpack.c.l.b16 %v503
        %v1753 = vunpack.c.h.b16 %v503
        %v1754 = vunpack.c.l.b16 %v504
        %v1755 = vunpack.c.h.b16 %v504
        %v1756 = vunpack.c.l.b16 %v505
        %v1757 = vunpack.c.h.b16 %v505
        %v1758 = vunpack.c.l.b16 %v506
        %v1759 = vunpack.c.h.b16 %v506
        %v1760 = vunpack.c.l.b16 %v507
        %v1761 = vunpack.c.h.b16 %v507
        %v1762 = vunpack.c.l.b16 %v508
        %v1763 = vunpack.c.h.b16 %v508
        %v1764 = vunpack.c.l.b16 %v509
        %v1765 = vunpack.c.h.b16 %v509
        %v1766 = vunpack.c.l.b16 %v510
        %v1767 = vunpack.c.h.b16 %v510
        %v1768 = vunpack.c.l.b16 %v511
        %v1769 = vunpack.c.h.b16 %v511
        %v1770 = vunpack.c.l.b16 %v512
        %v1771 = vunpack.c.h.b16 %v512
        %v1772 = vunpack.c.l.b16 %v513
        %v1773 = vunpack.c.h.b16 %v513
        %v1774 = vunpack.c.l.b16 %v514
        %v1775 = vunpack.c.h.b16 %v514
        %v1776 = vunpack.c.l.b16 %v515
        %v1777 = vunpack.c.h.b16 %v515
        %v1778 = vunpack.c.l.b16 %v516
        %v1779 = vunpack.c.h.b16 %v516
        %v1780 = vunpack.c.l.b16 %v517
        %v1781 = vunpack.c.h.b16 %v517
        %v1782 = vunpack.c.l.b16 %v518
        %v1783 = vunpack.c.h.b16 %v518
        %v1784 = vunpack.c.l.b16 %v519
        %v1785 = vunpack.c.h.b16 %v519
        %v1786 = vunpack.c.l.b16 %v520
        %v1787 = vunpack.c.h.b16 %v520
        %v1788 = vunpack.c.l.b16 %v521
        %v1789 = vunpack.c.h.b16 %v521
        %v1790 = vunpack.c.l.b16 %v522
        %v1791 = vunpack.c.h.b16 %v522
        %v1792 = vunpack.c.l.b16 %v523
        %v1793 = vunpack.c.h.b16 %v523
        %v1794 = vunpack.c.l.b16 %v524
        %v1795 = vunpack.c.h.b16 %v524
        %v1796 = vunpack.c.l.b16 %v525
        %v1797 = vunpack.c.h.b16 %v525
        %v1798 = vunpack.c.l.b16 %v526
        %v1799 = vunpack.c.h.b16 %v526
        %v1800 = vunpack.c.l.b16 %v527
        %v1801 = vunpack.c.h.b16 %v527
        %v1802 = vunpack.c.l.b16 %v528
        %v1803 = vunpack.c.h.b16 %v528
        %v1804 = vunpack.c.l.b16 %v529
        %v1805 = vunpack.c.h.b16 %v529
        %v1806 = vunpack.c.l.b16 %v530
        %v1807 = vunpack.c.h.b16 %v530
        %v1808 = vunpack.c.l.b16 %v531
        %v1809 = vunpack.c.h.b16 %v531
        %v1810 = vunpack.c.l.b16 %v532
        %v1811 = vunpack.c.h.b16 %v532
        %v1812 = vunpack.c.l.b16 %v533
        %v1813 = vunpack.c.h.b16 %v533
        %v1814 = vunpack.c.l.b16 %v534
        %v1815 = vunpack.c.h.b16 %v534
        %v1816 = vunpack.c.l.b16 %v535
        %v1817 = vunpack.c.h.b16 %v535
        %v1818 = vunpack.c.l.b16 %v536
        %v1819 = vunpack.c.h.b16 %v536
        %v1820 = vunpack.c.l.b16 %v537
        %v1821 = vunpack.c.h.b16 %v537
        %v1822 = vunpack.c.l.b16 %v538
        %v1823 = vunpack.c.h.b16 %v538
        %v1824 = vunpack.c.l.b16 %v539
        %v1825 = vunpack.c.h.b16 %v539
        %v1826 = vunpack.c.l.b16 %v540
        %v1827 = vunpack.c.h.b16 %v540
        %v1828 = vunpack.c.l.b16 %v541
        %v1829 = vunpack.c.h.b16 %v541
        %v1830 = vunpack.c.l.b16 %v542
        %v1831 = vunpack.c.h.b16 %v542
        %v1832 = vunpack.c.l.b16 %v543
        %v1833 = vunpack.c.h.b16 %v543
        %v1834 = vunpack.c.l.b16 %v544
        %v1835 = vunpack.c.h.b16 %v544
        %v1836 = vunpack.c.l.b16 %v545
        %v1837 = vunpack.c.h.b16 %v545
        %v1838 = vunpack.c.l.b16 %v546
        %v1839 = vunpack.c.h.b16 %v546
        %v1840 = vunpack.c.l.b16 %v547
        %v1841 = vunpack.c.h.b16 %v547
        %v1842 = vunpack.c.l.b16 %v548
        %v1843 = vunpack.c.h.b16 %v548
        %v1844 = vunpack.c.l.b16 %v549
        %v1845 = vunpack.c.h.b16 %v549
        %v1846 = vunpack.c.l.b16 %v550
        %v1847 = vunpack.c.h.b16 %v550
        %v1848 = vunpack.c.l.b16 %v551
        %v1849 = vunpack.c.h.b16 %v551
        %v1850 = vunpack.c.l.b16 %v552
        %v1851 = vunpack.c.h.b16 %v552
        %v1852 = vunpack.c.l.b16 %v553
        %v1853 = vunpack.c.h.b16 %v553
        %v1854 = vunpack.c.l.b16 %v554
        %v1855 = vunpack.c.h.b16 %v554
        %v1856 = vunpack.c.l.b16 %v555
        %v1857 = vunpack.c.h.b16 %v555
        %v1858 = vunpack.c.l.b16 %v556
        %v1859 = vunpack.c.h.b16 %v556
        %v1860 = vunpack.c.l.b16 %v557
        %v1861 = vunpack.c.h.b16 %v557
        %v1862 = vunpack.c.l.b16 %v558
        %v1863 = vunpack.c.h.b16 %v558
        %v1864 = vunpack.c.l.b16 %v559
        %v1865 = vunpack.c.h.b16 %v559
        %v1866 = vunpack.c.l.b16 %v560
        %v1867 = vunpack.c.h.b16 %v560
        %v1868 = vunpack.c.l.b16 %v561
        %v1869 = vunpack.c.h.b16 %v561
        %v1870 = vunpack.c.l.b16 %v562
        %v1871 = vunpack.c.h.b16 %v562
        %v1872 = vunpack.c.l.b16 %v563
        %v1873 = vunpack.c.h.b16 %v563
        %v1874 = vunpack.c.l.b16 %v564
        %v1875 = vunpack.c.h.b16 %v564
        %v1876 = vunpack.c.l.b16 %v565
        %v1877 = vunpack.c.h.b16 %v565
        %v1878 = vunpack.c.l.b16 %v566
        %v1879 = vunpack.c.h.b16 %v566
        %v1880 = vunpack.c.l.b16 %v567
        %v1881 = vunpack.c.h.b16 %v567
        %v1882 = vunpack.c.l.b16 %v568
        %v1883 = vunpack.c.h.b16 %v568
        %v1884 = vunpack.c.l.b16 %v569
        %v1885 = vunpack.c.h.b16 %v569
        %v1886 = vunpack.c.l.b16 %v570
        %v1887 = vunpack.c.h.b16 %v570
        %v1888 = vunpack.c.l.b16 %v571
        %v1889 = vunpack.c.h.b16 %v571
        %v1890 = vunpack.c.l.b16 %v572
        %v1891 = vunpack.c.h.b16 %v572
        %v1892 = vunpack.c.l.b16 %v573
        %v1893 = vunpack.c.h.b16 %v573
        %v1894 = vunpack.c.l.b16 %v574
        %v1895 = vunpack.c.h.b16 %v574
        %v1896 = vunpack.c.l.b16 %v575
        %v1897 = vunpack.c.h.b16 %v575
        %v1898 = vunpack.c.l.b16 %v576
        %v1899 = vunpack.c.h.b16 %v576
        %v1900 = vunpack.c.l.b16 %v577
        %v1901 = vunpack.c.h.b16 %v577
        %v1902 = vunpack.c.l.b16 %v578
        %v1903 = vunpack.c.h.b16 %v578
        %v1904 = vunpack.c.l.b16 %v579
        %v1905 = vunpack.c.h.b16 %v579
        %v1906 = vunpack.c.l.b16 %v580
        %v1907 = vunpack.c.h.b16 %v580
        %v1908 = vunpack.c.l.b16 %v581
        %v1909 = vunpack.c.h.b16 %v581
        %v1910 = vunpack.c.l.b16 %v582
        %v1911 = vunpack.c.h.b16 %v582
        %v1912 = vunpack.c.l.b16 %v583
        %v1913 = vunpack.c.h.b16 %v583
        %v1914 = vunpack.c.l.b16 %v584
        %v1915 = vunpack.c.h.b16 %v584
        %v1916 = vunpack.c.l.b16 %v585
        %v1917 = vunpack.c.h.b16 %v585
        %v1918 = vunpack.c.l.b16 %v586
        %v1919 = vunpack.c.h.b16 %v586
        %v1920 = vunpack.c.l.b16 %v587
        %v1921 = vunpack.c.h.b16 %v587
        %v1922 = vunpack.c.l.b16 %v588
        %v1923 = vunpack.c.h.b16 %v588
        %v1924 = vunpack.c.l.b16 %v589
        %v1925 = vunpack.c.h.b16 %v589
        %v1926 = vunpack.c.l.b16 %v590
        %v1927 = vunpack.c.h.b16 %v590
        %v1928 = vunpack.c.l.b16 %v591
        %v1929 = vunpack.c.h.b16 %v591
        %v1930 = vunpack.c.l.b16 %v592
        %v1931 = vunpack.c.h.b16 %v592
        %v1932 = vunpack.c.l.b16 %v593
        %v1933 = vunpack.c.h.b16 %v593
        %v1934 = vunpack.c.l.b16 %v594
        %v1935 = vunpack.c.h.b16 %v594
        %v1936 = vunpack.c.l.b16 %v595
        %v1937 = vunpack.c.h.b16 %v595
        %v1938 = vunpack.c.l.b16 %v596
        %v1939 = vunpack.c.h.b16 %v596
        %v1940 = vunpack.c.l.b16 %v597
        %v1941 = vunpack.c.h.b16 %v597
        %v1942 = vunpack.c.l.b16 %v598
        %v1943 = vunpack.c.h.b16 %v598
        %v1944 = vunpack.c.l.b16 %v599
        %v1945 = vunpack.c.h.b16 %v599
        %v1946 = vunpack.c.l.b16 %v600
        %v1947 = vunpack.c.h.b16 %v600
        %v1948 = vunpack.c.l.b16 %v601
        %v1949 = vunpack.c.h.b16 %v601
        %v1950 = vunpack.c.l.b16 %v602
        %v1951 = vunpack.c.h.b16 %v602
        %v1952 = vunpack.c.l.b16 %v603
        %v1953 = vunpack.c.h.b16 %v603
        %v1954 = vunpack.c.l.b16 %v604
        %v1955 = vunpack.c.h.b16 %v604
        %v1956 = vunpack.c.l.b16 %v605
        %v1957 = vunpack.c.h.b16 %v605
        %v1958 = vunpack.c.l.b16 %v606
        %v1959 = vunpack.c.h.b16 %v606
        %v1960 = vunpack.c.l.b16 %v607
        %v1961 = vunpack.c.h.b16 %v607
        %v1962 = vunpack.c.l.b16 %v608
        %v1963 = vunpack.c.h.b16 %v608
        %v1964 = vunpack.c.l.b16 %v609
        %v1965 = vunpack.c.h.b16 %v609
        %v1966 = vunpack.c.l.b16 %v610
        %v1967 = vunpack.c.h.b16 %v610
        %v1968 = vunpack.c.l.b16 %v611
        %v1969 = vunpack.c.h.b16 %v611
        %v1970 = vunpack.c.l.b16 %v612
        %v1971 = vunpack.c.h.b16 %v612
        %v1972 = vunpack.c.l.b16 %v613
        %v1973 = vunpack.c.h.b16 %v613
        %v1974 = vunpack.c.l.b16 %v614
        %v1975 = vunpack.c.h.b16 %v614
        %v1976 = vunpack.c.l.b16 %v615
        %v1977 = vunpack.c.h.b16 %v615
        %v1978 = vunpack.c.l.b16 %v616
        %v1979 = vunpack.c.h.b16 %v616
        %v1980 = vunpack.c.l.b16 %v617
        %v1981 = vunpack.c.h.b16 %v617
        %v1982 = vunpack.c.l.b16 %v618
        %v1983 = vunpack.c.h.b16 %v618
        %v1984 = vunpack.c.l.b16 %v619
        %v1985 = vunpack.c.h.b16 %v619
        %v1986 = vunpack.c.l.b16 %v620
        %v1987 = vunpack.c.h.b16 %v620
        %v1988 = vunpack.c.l.b16 %v621
        %v1989 = vunpack.c.h.b16 %v621
        %v1990 = vunpack.c.l.b16 %v622
        %v1991 = vunpack.c.h.b16 %v622
        %v1992 = vunpack.c.l.b16 %v623
        %v1993 = vunpack.c.h.b16 %v623
        %v1994 = vunpack.c.l.b16 %v624
        %v1995 = vunpack.c.h.b16 %v624
        %v1996 = vunpack.c.l.b16 %v625
        %v1997 = vunpack.c.h.b16 %v625
        %v1998 = vunpack.c.l.b16 %v626
        %v1999 = vunpack.c.h.b16 %v626
        %v2000 = vunpack.c.l.b16 %v627
        %v2001 = vunpack.c.h.b16 %v627
        %v2002 = vunpack.c.l.b16 %v628
        %v2003 = vunpack.c.h.b16 %v628
        %v2004 = vunpack.c.l.b16 %v629
        %v2005 = vunpack.c.h.b16 %v629
        %v2006 = vunpack.c.l.b16 %v630
        %v2007 = vunpack.c.h.b16 %v630
        %v2008 = vunpack.c.l.b16 %v631
        %v2009 = vunpack.c.h.b16 %v631
        %v2010 = vunpack.c.l.b16 %v632
        %v2011 = vunpack.c.h.b16 %v632
        %v2012 = vunpack.c.l.b16 %v633
        %v2013 = vunpack.c.h.b16 %v633
        %v2014 = vunpack.c.l.b16 %v634
        %v2015 = vunpack.c.h.b16 %v634
        %v2016 = vunpack.c.l.b16 %v635
        %v2017 = vunpack.c.h.b16 %v635
        %v2018 = vunpack.c.l.b16 %v636
        %v2019 = vunpack.c.h.b16 %v636
        %v2020 = vunpack.c.l.b16 %v637
        %v2021 = vunpack.c.h.b16 %v637
        %v2022 = vunpack.c.l.b16 %v638
        %v2023 = vunpack.c.h.b16 %v638
        %v2024 = vunpack.c.l.b16 %v639
        %v2025 = vunpack.c.h.b16 %v639
        %v2026 = vunpack.c.l.b16 %v640
        %v2027 = vunpack.c.h.b16 %v640
        %v2028 = vunpack.c.l.b16 %v641
        %v2029 = vunpack.c.h.b16 %v641
        %v2030 = vunpack.c.l.b16 %v642
        %v2031 = vunpack.c.h.b16 %v642
        %v2032 = vunpack.c.l.b16 %v643
        %v2033 = vunpack.c.h.b16 %v643
        %v2034 = vunpack.c.l.b16 %v644
        %v2035 = vunpack.c.h.b16 %v644
        %v2036 = vunpack.c.l.b16 %v645
        %v2037 = vunpack.c.h.b16 %v645
        %v2038 = vunpack.c.l.b16 %v646
        %v2039 = vunpack.c.h.b16 %v646
        %v2040 = vunpack.c.l.b16 %v647
        %v2041 = vunpack.c.h.b16 %v647
        %v2042 = vunpack.c.l.b16 %v648
        %v2043 = vunpack.c.h.b16 %v648
        %v2044 = vunpack.c.l.b16 %v649
        %v2045 = vunpack.c.h.b16 %v649
        %v2046 = vunpack.c.l.b16 %v650
        %v2047 = vunpack.c.h.b16 %v650
        %v2048 = vunpack.c.l.b16 %v651
        %v2049 = vunpack.c.h.b16 %v651
        %v2050 = vunpack.c.l.b16 %v652
        %v2051 = vunpack.c.h.b16 %v652
        %v2052 = vunpack.c.l.b16 %v653
        %v2053 = vunpack.c.h.b16 %v653
        %v2054 = vunpack.c.l.b16 %v654
        %v2055 = vunpack.c.h.b16 %v654
        %v2056 = vunpack.c.l.b16 %v655
        %v2057 = vunpack.c.h.b16 %v655
        %v2058 = vunpack.c.l.b16 %v656
        %v2059 = vunpack.c.h.b16 %v656
        %v2060 = vunpack.c.l.b16 %v657
        %v2061 = vunpack.c.h.b16 %v657
        %v2062 = vunpack.c.l.b16 %v658
        %v2063 = vunpack.c.h.b16 %v658
        %v2064 = vunpack.c.l.b16 %v659
        %v2065 = vunpack.c.h.b16 %v659
        %v2066 = vunpack.c.l.b16 %v660
        %v2067 = vunpack.c.h.b16 %v660
        %v2068 = vunpack.c.l.b16 %v661
        %v2069 = vunpack.c.h.b16 %v661
        %v2070 = vunpack.c.l.b16 %v662
        %v2071 = vunpack.c.h.b16 %v662
        %v2072 = vunpack.c.l.b16 %v663
        %v2073 = vunpack.c.h.b16 %v663
        %v2074 = vunpack.c.l.b16 %v664
        %v2075 = vunpack.c.h.b16 %v664
        %v2076 = vunpack.c.l.b16 %v665
        %v2077 = vunpack.c.h.b16 %v665
        %v2078 = vunpack.c.l.b16 %v666
        %v2079 = vunpack.c.h.b16 %v666
        %v2080 = vunpack.c.l.b16 %v667
        %v2081 = vunpack.c.h.b16 %v667
        %v2082 = vunpack.c.l.b16 %v668
        %v2083 = vunpack.c.h.b16 %v668
        %v2084 = vunpack.c.l.b16 %v669
        %v2085 = vunpack.c.h.b16 %v669
        %v2086 = vunpack.c.l.b16 %v670
        %v2087 = vunpack.c.h.b16 %v670
        %v2088 = vunpack.c.l.b16 %v671
        %v2089 = vunpack.c.h.b16 %v671
        %v2090 = vunpack.c.l.b16 %v672
        %v2091 = vunpack.c.h.b16 %v672
        %v2092 = vunpack.c.l.b16 %v673
        %v2093 = vunpack.c.h.b16 %v673
        %v2094 = vunpack.c.l.b16 %v674
        %v2095 = vunpack.c.h.b16 %v674
        %v2096 = vunpack.c.l.b16 %v675
        %v2097 = vunpack.c.h.b16 %v675
        %v2098 = vunpack.c.l.b16 %v676
        %v2099 = vunpack.c.h.b16 %v676
        %v2100 = vunpack.c.l.b16 %v677
        %v2101 = vunpack.c.h.b16 %v677
        %v2102 = vunpack.c.l.b16 %v678
        %v2103 = vunpack.c.h.b16 %v678
        %v2104 = vunpack.c.l.b16 %v679
        %v2105 = vunpack.c.h.b16 %v679
        %v2106 = vunpack.c.l.b16 %v680
        %v2107 = vunpack.c.h.b16 %v680
        %v2108 = vunpack.c.l.b16 %v681
        %v2109 = vunpack.c.h.b16 %v681
        %v2110 = vunpack.c.l.b16 %v682
        %v2111 = vunpack.c.h.b16 %v682
        %v2112 = vunpack.c.l.b16 %v683
        %v2113 = vunpack.c.h.b16 %v683
        %v2114 = vunpack.c.l.b16 %v684
        %v2115 = vunpack.c.h.b16 %v684
        %v2116 = vunpack.c.l.b16 %v685
        %v2117 = vunpack.c.h.b16 %v685
        %v2118 = vunpack.c.l.b16 %v686
        %v2119 = vunpack.c.h.b16 %v686
        %v2120 = vunpack.c.l.b16 %v687
        %v2121 = vunpack.c.h.b16 %v687
        %v2122 = vunpack.c.l.b16 %v688
        %v2123 = vunpack.c.h.b16 %v688
        %v2124 = vunpack.c.l.b16 %v689
        %v2125 = vunpack.c.h.b16 %v689
        %v2126 = vunpack.c.l.b16 %v690
        %v2127 = vunpack.c.h.b16 %v690
        %v2128 = vunpack.c.l.b16 %v691
        %v2129 = vunpack.c.h.b16 %v691
        %v2130 = vunpack.c.l.b16 %v692
        %v2131 = vunpack.c.h.b16 %v692
        %v2132 = vunpack.c.l.b16 %v693
        %v2133 = vunpack.c.h.b16 %v693
        %v2134 = vunpack.c.l.b16 %v694
        %v2135 = vunpack.c.h.b16 %v694
        %v2136 = vunpack.c.l.b16 %v695
        %v2137 = vunpack.c.h.b16 %v695
        %v2138 = vunpack.c.l.b16 %v696
        %v2139 = vunpack.c.h.b16 %v696
        %v2140 = vunpack.c.l.b16 %v697
        %v2141 = vunpack.c.h.b16 %v697
        %v2142 = vunpack.c.l.b16 %v698
        %v2143 = vunpack.c.h.b16 %v698
        %v2144 = vunpack.c.l.b16 %v699
        %v2145 = vunpack.c.h.b16 %v699
        %v2146 = vunpack.c.l.b16 %v700
        %v2147 = vunpack.c.h.b16 %v700
        %v2148 = vunpack.c.l.b16 %v701
        %v2149 = vunpack.c.h.b16 %v701
        %v2150 = vunpack.c.l.b16 %v702
        %v2151 = vunpack.c.h.b16 %v702
        %v2152 = vunpack.c.l.b16 %v703
        %v2153 = vunpack.c.h.b16 %v703
        %v2154 = vunpack.c.l.b16 %v704
        %v2155 = vunpack.c.h.b16 %v704
        %v2156 = vunpack.c.l.b16 %v705
        %v2157 = vunpack.c.h.b16 %v705
        %v2158 = vunpack.c.l.b16 %v706
        %v2159 = vunpack.c.h.b16 %v706
        %v2160 = vunpack.c.l.b16 %v707
        %v2161 = vunpack.c.h.b16 %v707
        %v2162 = vunpack.c.l.b16 %v708
        %v2163 = vunpack.c.h.b16 %v708
        %v2164 = vunpack.c.l.b16 %v709
        %v2165 = vunpack.c.h.b16 %v709
        %v2166 = vunpack.c.l.b16 %v710
        %v2167 = vunpack.c.h.b16 %v710
        %v2168 = vunpack.c.l.b16 %v711
        %v2169 = vunpack.c.h.b16 %v711
        %v2170 = vunpack.c.l.b16 %v712
        %v2171 = vunpack.c.h.b16 %v712
        %v2172 = vunpack.c.l.b16 %v713
        %v2173 = vunpack.c.h.b16 %v713
        %v2174 = vunpack.c.l.b16 %v714
        %v2175 = vunpack.c.h.b16 %v714
        %v2176 = vunpack.c.l.b16 %v715
        %v2177 = vunpack.c.h.b16 %v715
        %v2178 = vunpack.c.l.b16 %v716
        %v2179 = vunpack.c.h.b16 %v716
        %v2180 = vunpack.c.l.b16 %v717
        %v2181 = vunpack.c.h.b16 %v717
        %v2182 = vunpack.c.l.b16 %v718
        %v2183 = vunpack.c.h.b16 %v718
        %v2184 = vunpack.c.l.b16 %v719
        %v2185 = vunpack.c.h.b16 %v719
        %v2186 = vunpack.c.l.b16 %v720
        %v2187 = vunpack.c.h.b16 %v720
        %v2188 = vunpack.c.l.b16 %v721
        %v2189 = vunpack.c.h.b16 %v721
        %v2190 = vunpack.c.l.b16 %v722
        %v2191 = vunpack.c.h.b16 %v722
        %v2192 = vunpack.c.l.b16 %v723
        %v2193 = vunpack.c.h.b16 %v723
        %v2194 = vunpack.c.l.b16 %v724
        %v2195 = vunpack.c.h.b16 %v724
        %v2196 = vunpack.c.l.b16 %v725
        %v2197 = vunpack.c.h.b16 %v725
        %v2198 = vunpack.c.l.b16 %v726
        %v2199 = vunpack.c.h.b16 %v726
        %v2200 = vunpack.c.l.b16 %v727
        %v2201 = vunpack.c.h.b16 %v727
        %v2202 = vunpack.c.l.b16 %v728
        %v2203 = vunpack.c.h.b16 %v728
        %v2204 = vunpack.c.l.b16 %v729
        %v2205 = vunpack.c.h.b16 %v729
        %v2206 = vunpack.c.l.b16 %v730
        %v2207 = vunpack.c.h.b16 %v730
        %v2208 = vunpack.c.l.b16 %v731
        %v2209 = vunpack.c.h.b16 %v731
        %v2210 = vunpack.c.l.b16 %v732
        %v2211 = vunpack.c.h.b16 %v732
        %v2212 = vunpack.c.l.b16 %v733
        %v2213 = vunpack.c.h.b16 %v733
        %v2214 = vunpack.c.l.b16 %v734
        %v2215 = vunpack.c.h.b16 %v734
        %v2216 = vunpack.c.l.b16 %v735
        %v2217 = vunpack.c.h.b16 %v735
        %v2218 = vunpack.c.l.b16 %v736
        %v2219 = vunpack.c.h.b16 %v736
        %v2220 = vunpack.c.l.b16 %v737
        %v2221 = vunpack.c.h.b16 %v737
        %v2222 = vunpack.c.l.b16 %v738
        %v2223 = vunpack.c.h.b16 %v738
        %v2224 = vunpack.c.l.b16 %v739
        %v2225 = vunpack.c.h.b16 %v739
        %v2226 = vunpack.c.l.b16 %v740
        %v2227 = vunpack.c.h.b16 %v740
        %v2228 = vunpack.c.l.b16 %v741
        %v2229 = vunpack.c.h.b16 %v741
        %v2230 = vunpack.c.l.b16 %v742
        %v2231 = vunpack.c.h.b16 %v742
        %v2232 = vunpack.c.l.b16 %v743
        %v2233 = vunpack.c.h.b16 %v743
        %v2234 = vunpack.c.l.b16 %v744
        %v2235 = vunpack.c.h.b16 %v744
        %v2236 = vunpack.c.l.b16 %v745
        %v2237 = vunpack.c.h.b16 %v745
        %v2238 = vunpack.c.l.b16 %v746
        %v2239 = vunpack.c.h.b16 %v746
        %v2240 = vunpack.c.l.b16 %v747
        %v2241 = vunpack.c.h.b16 %v747
        %v2242 = vunpack.c.l.b16 %v748
        %v2243 = vunpack.c.h.b16 %v748
        %v2244 = vunpack.c.l.b16 %v749
        %v2245 = vunpack.c.h.b16 %v749
        %v2246 = vunpack.c.l.b16 %v750
        %v2247 = vunpack.c.h.b16 %v750
        %v2248 = vunpack.c.l.b16 %v751
        %v2249 = vunpack.c.h.b16 %v751
        %v2250 = vunpack.c.l.b16 %v752
        %v2251 = vunpack.c.h.b16 %v752
        %v2252 = vunpack.c.l.b16 %v753
        %v2253 = vunpack.c.h.b16 %v753
        %v2254 = vunpack.c.l.b16 %v754
        %v2255 = vunpack.c.h.b16 %v754
        %v2256 = vunpack.c.l.b16 %v755
        %v2257 = vunpack.c.h.b16 %v755
        %v2258 = vunpack.c.l.b16 %v756
        %v2259 = vunpack.c.h.b16 %v756
        %v2260 = vunpack.c.l.b16 %v757
        %v2261 = vunpack.c.h.b16 %v757
        %v2262 = vunpack.c.l.b16 %v758
        %v2263 = vunpack.c.h.b16 %v758
        %v2264 = vunpack.c.l.b16 %v759
        %v2265 = vunpack.c.h.b16 %v759
        %v2266 = vunpack.c.l.b16 %v760
        %v2267 = vunpack.c.h.b16 %v760
        %v2268 = vunpack.c.l.b16 %v761
        %v2269 = vunpack.c.h.b16 %v761
        %v2270 = vunpack.c.l.b16 %v762
        %v2271 = vunpack.c.h.b16 %v762
        %v2272 = vunpack.c.l.b16 %v763
        %v2273 = vunpack.c.h.b16 %v763
        %v2274 = vunpack.c.l.b16 %v764
        %v2275 = vunpack.c.h.b16 %v764
        %v2276 = vunpack.c.l.b16 %v765
        %v2277 = vunpack.c.h.b16 %v765
        %v2278 = vunpack.c.l.b16 %v766
        %v2279 = vunpack.c.h.b16 %v766
        %v2280 = vunpack.c.l.b16 %v767
        %v2281 = vunpack.c.h.b16 %v767
        %v2282 = vunpack.c.l.b16 %v768
        %v2283 = vunpack.c.h.b16 %v768
        %v2284 = vunpack.c.l.b16 %v769
        %v2285 = vunpack.c.h.b16 %v769
        %v2286 = vunpack.c.l.b16 %v770
        %v2287 = vunpack.c.h.b16 %v770
        %v2288 = vunpack.c.l.b16 %v771
        %v2289 = vunpack.c.h.b16 %v771
        %v2290 = vunpack.c.l.b16 %v772
        %v2291 = vunpack.c.h.b16 %v772
        %v2292 = vunpack.c.l.b16 %v773
        %v2293 = vunpack.c.h.b16 %v773
        %v2294 = vunpack.c.l.b16 %v774
        %v2295 = vunpack.c.h.b16 %v774
        %v2296 = vunpack.c.l.b16 %v775
        %v2297 = vunpack.c.h.b16 %v775
        %v2298 = vunpack.c.l.b16 %v776
        %v2299 = vunpack.c.h.b16 %v776
        %v2300 = vunpack.c.l.b16 %v777
        %v2301 = vunpack.c.h.b16 %v777
        %v2302 = vunpack.c.l.b16 %v778
        %v2303 = vunpack.c.h.b16 %v778
        %v2304 = vunpack.c.l.b16 %v779
        %v2305 = vunpack.c.h.b16 %v779
        %v2306 = vunpack.c.l.b16 %v780
        %v2307 = vunpack.c.h.b16 %v780
        %v2308 = vunpack.c.l.b16 %v781
        %v2309 = vunpack.c.h.b16 %v781
        %v2310 = vunpack.c.l.b16 %v782
        %v2311 = vunpack.c.h.b16 %v782
        %v2312 = vunpack.c.l.b16 %v783
        %v2313 = vunpack.c.h.b16 %v783
        %v2314 = vunpack.c.l.b16 %v784
        %v2315 = vunpack.c.h.b16 %v784
        %v2316 = vunpack.c.l.b16 %v785
        %v2317 = vunpack.c.h.b16 %v785
        %v2318 = vunpack.c.l.b16 %v786
        %v2319 = vunpack.c.h.b16 %v786
        %v2320 = vunpack.c.l.b16 %v787
        %v2321 = vunpack.c.h.b16 %v787
        %v2322 = vunpack.c.l.b16 %v788
        %v2323 = vunpack.c.h.b16 %v788
        %v2324 = vunpack.c.l.b16 %v789
        %v2325 = vunpack.c.h.b16 %v789
        %v2326 = vunpack.c.l.b16 %v790
        %v2327 = vunpack.c.h.b16 %v790
        %v2328 = vunpack.c.l.b16 %v791
        %v2329 = vunpack.c.h.b16 %v791
        %v2330 = vunpack.c.l.b16 %v792
        %v2331 = vunpack.c.h.b16 %v792
        %v2332 = vunpack.c.l.b16 %v793
        %v2333 = vunpack.c.h.b16 %v793
        %v2334 = vunpack.c.l.b16 %v794
        %v2335 = vunpack.c.h.b16 %v794
        %v2336 = vunpack.c.l.b16 %v795
        %v2337 = vunpack.c.h.b16 %v795
        %v2338 = vunpack.c.l.b16 %v796
        %v2339 = vunpack.c.h.b16 %v796
        %v2340 = vunpack.c.l.b16 %v797
        %v2341 = vunpack.c.h.b16 %v797
        %v2342 = vunpack.c.l.b16 %v798
        %v2343 = vunpack.c.h.b16 %v798
        %v2344 = vunpack.c.l.b16 %v799
        %v2345 = vunpack.c.h.b16 %v799
        %v2346 = vunpack.c.l.b16 %v800
        %v2347 = vunpack.c.h.b16 %v800
        %v2348 = vunpack.c.l.b16 %v801
        %v2349 = vunpack.c.h.b16 %v801
        %v2350 = vunpack.c.l.b16 %v802
        %v2351 = vunpack.c.h.b16 %v802
        %v2352 = vunpack.c.l.b16 %v803
        %v2353 = vunpack.c.h.b16 %v803
        %v2354 = vunpack.c.l.b16 %v804
        %v2355 = vunpack.c.h.b16 %v804
        %v2356 = vunpack.c.l.b16 %v805
        %v2357 = vunpack.c.h.b16 %v805
        %v2358 = vunpack.c.l.b16 %v806
        %v2359 = vunpack.c.h.b16 %v806
        %v2360 = vunpack.c.l.b16 %v807
        %v2361 = vunpack.c.h.b16 %v807
        %v2362 = vunpack.c.l.b16 %v808
        %v2363 = vunpack.c.h.b16 %v808
        %v2364 = vunpack.c.l.b16 %v809
        %v2365 = vunpack.c.h.b16 %v809
        %v2366 = vunpack.c.l.b16 %v810
        %v2367 = vunpack.c.h.b16 %v810
        %v2368 = vunpack.c.l.b16 %v811
        %v2369 = vunpack.c.h.b16 %v811
        %v2370 = vunpack.c.l.b16 %v812
        %v2371 = vunpack.c.h.b16 %v812
        %v2372 = vunpack.c.l.b16 %v813
        %v2373 = vunpack.c.h.b16 %v813
        %v2374 = vunpack.c.l.b16 %v814
        %v2375 = vunpack.c.h.b16 %v814
        %v2376 = vunpack.c.l.b16 %v815
        %v2377 = vunpack.c.h.b16 %v815
        %v2378 = vunpack.c.l.b16 %v816
        %v2379 = vunpack.c.h.b16 %v816
        %v2380 = vunpack.c.l.b16 %v817
        %v2381 = vunpack.c.h.b16 %v817
        %v2382 = vunpack.c.l.b16 %v818
        %v2383 = vunpack.c.h.b16 %v818
        %v2384 = vunpack.c.l.b16 %v819
        %v2385 = vunpack.c.h.b16 %v819
        %v2386 = vunpack.c.l.b16 %v820
        %v2387 = vunpack.c.h.b16 %v820
        %v2388 = vunpack.c.l.b16 %v821
        %v2389 = vunpack.c.h.b16 %v821
        %v2390 = vunpack.c.l.b16 %v822
        %v2391 = vunpack.c.h.b16 %v822
        %v2392 = vunpack.c.l.b16 %v823
        %v2393 = vunpack.c.h.b16 %v823
        %v2394 = vunpack.c.l.b16 %v824
        %v2395 = vunpack.c.h.b16 %v824
        %v2396 = vunpack.c.l.b16 %v825
        %v2397 = vunpack.c.h.b16 %v825
        %v2398 = vunpack.c.l.b16 %v826
        %v2399 = vunpack.c.h.b16 %v826
        %v2400 = vunpack.c.l.b16 %v827
        %v2401 = vunpack.c.h.b16 %v827
        %v2402 = vunpack.c.l.b16 %v828
        %v2403 = vunpack.c.h.b16 %v828
        %v2404 = vunpack.c.l.b16 %v829
        %v2405 = vunpack.c.h.b16 %v829
        %v2406 = vunpack.c.l.b16 %v830
        %v2407 = vunpack.c.h.b16 %v830
        %v2408 = vunpack.c.l.b16 %v831
        %v2409 = vunpack.c.h.b16 %v831
        %v2410 = vunpack.c.l.b16 %v832
        %v2411 = vunpack.c.h.b16 %v832
        %v2412 = vunpack.c.l.b16 %v833
        %v2413 = vunpack.c.h.b16 %v833
        %v2414 = vunpack.c.l.b16 %v834
        %v2415 = vunpack.c.h.b16 %v834
        %v2416 = vunpack.c.l.b16 %v835
        %v2417 = vunpack.c.h.b16 %v835
        %v2418 = vunpack.c.l.b16 %v836
        %v2419 = vunpack.c.h.b16 %v836
        %v2420 = vunpack.c.l.b16 %v837
        %v2421 = vunpack.c.h.b16 %v837
        %v2422 = vunpack.c.l.b16 %v838
        %v2423 = vunpack.c.h.b16 %v838
        %v2424 = vunpack.c.l.b16 %v839
        %v2425 = vunpack.c.h.b16 %v839
        %v2426 = vunpack.c.l.b16 %v840
        %v2427 = vunpack.c.h.b16 %v840
        %v2428 = vunpack.c.l.b16 %v841
        %v2429 = vunpack.c.h.b16 %v841
        %v2430 = vunpack.c.l.b16 %v842
        %v2431 = vunpack.c.h.b16 %v842
        %v2432 = vunpack.c.l.b16 %v843
        %v2433 = vunpack.c.h.b16 %v843
        %v2434 = vunpack.c.l.b16 %v844
        %v2435 = vunpack.c.h.b16 %v844
        %v2436 = vunpack.c.l.b16 %v845
        %v2437 = vunpack.c.h.b16 %v845
        %v2438 = vunpack.c.l.b16 %v846
        %v2439 = vunpack.c.h.b16 %v846
        %v2440 = vunpack.c.l.b16 %v847
        %v2441 = vunpack.c.h.b16 %v847
        %v2442 = vunpack.c.l.b16 %v848
        %v2443 = vunpack.c.h.b16 %v848
        %v2444 = vunpack.c.l.b16 %v849
        %v2445 = vunpack.c.h.b16 %v849
        %v2446 = vunpack.c.l.b16 %v850
        %v2447 = vunpack.c.h.b16 %v850
        %v2448 = vunpack.c.l.b16 %v851
        %v2449 = vunpack.c.h.b16 %v851
        %v2450 = vunpack.c.l.b16 %v852
        %v2451 = vunpack.c.h.b16 %v852
        %v2452 = vunpack.c.l.b16 %v853
        %v2453 = vunpack.c.h.b16 %v853
        %v2454 = vunpack.c.l.b16 %v854
        %v2455 = vunpack.c.h.b16 %v854
        %v2456 = vunpack.c.l.b16 %v855
        %v2457 = vunpack.c.h.b16 %v855
        %v2458 = vunpack.c.l.b16 %v856
        %v2459 = vunpack.c.h.b16 %v856
        %v2460 = vunpack.c.l.b16 %v857
        %v2461 = vunpack.c.h.b16 %v857
        %v2462 = vunpack.c.l.b16 %v858
        %v2463 = vunpack.c.h.b16 %v858
        %v2464 = vunpack.c.l.b16 %v859
        %v2465 = vunpack.c.h.b16 %v859
        %v2466 = vunpack.c.l.b16 %v860
        %v2467 = vunpack.c.h.b16 %v860
        %v2468 = vunpack.c.l.b16 %v861
        %v2469 = vunpack.c.h.b16 %v861
        %v2470 = vunpack.c.l.b16 %v862
        %v2471 = vunpack.c.h.b16 %v862
        %v2472 = vunpack.c.l.b16 %v863
        %v2473 = vunpack.c.h.b16 %v863
        %v2474 = vunpack.c.l.b16 %v864
        %v2475 = vunpack.c.h.b16 %v864
        %v2476 = vunpack.c.l.b16 %v865
        %v2477 = vunpack.c.h.b16 %v865
        %v2478 = vunpack.c.l.b16 %v866
        %v2479 = vunpack.c.h.b16 %v866
        %v2480 = vunpack.c.l.b16 %v867
        %v2481 = vunpack.c.h.b16 %v867
        %v2482 = vunpack.c.l.b16 %v868
        %v2483 = vunpack.c.h.b16 %v868
        %v2484 = vunpack.c.l.b16 %v869
        %v2485 = vunpack.c.h.b16 %v869
        %v2486 = vunpack.c.l.b16 %v870
        %v2487 = vunpack.c.h.b16 %v870
        %v2488 = vunpack.c.l.b16 %v871
        %v2489 = vunpack.c.h.b16 %v871
        %v2490 = vunpack.c.l.b16 %v872
        %v2491 = vunpack.c.h.b16 %v872
        %v2492 = vunpack.c.l.b16 %v873
        %v2493 = vunpack.c.h.b16 %v873
        %v2494 = vunpack.c.l.b16 %v874
        %v2495 = vunpack.c.h.b16 %v874
        %v2496 = vunpack.c.l.b16 %v875
        %v2497 = vunpack.c.h.b16 %v875
        %v2498 = vunpack.c.l.b16 %v876
        %v2499 = vunpack.c.h.b16 %v876
        %v2500 = vunpack.c.l.b16 %v877
        %v2501 = vunpack.c.h.b16 %v877
        %v2502 = vunpack.c.l.b16 %v878
        %v2503 = vunpack.c.h.b16 %v878
        %v2504 = vunpack.c.l.b16 %v879
        %v2505 = vunpack.c.h.b16 %v879
        %v2506 = vunpack.c.l.b16 %v880
        %v2507 = vunpack.c.h.b16 %v880
        %v2508 = vunpack.c.l.b16 %v881
        %v2509 = vunpack.c.h.b16 %v881
        %v2510 = vunpack.c.l.b16 %v882
        %v2511 = vunpack.c.h.b16 %v882
        %v2512 = vunpack.c.l.b16 %v883
        %v2513 = vunpack.c.h.b16 %v883
        %v2514 = vunpack.c.l.b16 %v884
        %v2515 = vunpack.c.h.b16 %v884
        %v2516 = vunpack.c.l.b16 %v885
        %v2517 = vunpack.c.h.b16 %v885
        %v2518 = vunpack.c.l.b16 %v886
        %v2519 = vunpack.c.h.b16 %v886
        %v2520 = vunpack.c.l.b16 %v887
        %v2521 = vunpack.c.h.b16 %v887
        %v2522 = vunpack.c.l.b16 %v888
        %v2523 = vunpack.c.h.b16 %v888
        %v2524 = vunpack.c.l.b16 %v889
        %v2525 = vunpack.c.h.b16 %v889
        %v2526 = vunpack.c.l.b16 %v890
        %v2527 = vunpack.c.h.b16 %v890
        %v2528 = vunpack.c.l.b16 %v891
        %v2529 = vunpack.c.h.b16 %v891
        %v2530 = vunpack.c.l.b16 %v892
        %v2531 = vunpack.c.h.b16 %v892
        %v2532 = vunpack.c.l.b16 %v893
        %v2533 = vunpack.c.h.b16 %v893
        %v2534 = vunpack.c.l.b16 %v894
        %v2535 = vunpack.c.h.b16 %v894
        %v2536 = vunpack.c.l.b16 %v895
        %v2537 = vunpack.c.h.b16 %v895
        %v2538 = vunpack.c.l.b16 %v896
        %v2539 = vunpack.c.h.b16 %v896
        %v2540 = vunpack.c.l.b16 %v897
        %v2541 = vunpack.c.h.b16 %v897
        %v2542 = vunpack.c.l.b16 %v898
        %v2543 = vunpack.c.h.b16 %v898
        %v2544 = vunpack.c.l.b16 %v899
        %v2545 = vunpack.c.h.b16 %v899
        %v2546 = vunpack.c.l.b16 %v900
        %v2547 = vunpack.c.h.b16 %v900
        %v2548 = vunpack.c.l.b16 %v901
        %v2549 = vunpack.c.h.b16 %v901
        %v2550 = vunpack.c.l.b16 %v902
        %v2551 = vunpack.c.h.b16 %v902
        %v2552 = vunpack.c.l.b16 %v903
        %v2553 = vunpack.c.h.b16 %v903
        %v2554 = vunpack.c.l.b16 %v904
        %v2555 = vunpack.c.h.b16 %v904
        %v2556 = vunpack.c.l.b16 %v905
        %v2557 = vunpack.c.h.b16 %v905
        %v2558 = vunpack.c.l.b16 %v906
        %v2559 = vunpack.c.h.b16 %v906
        %v2560 = vunpack.c.l.b16 %v907
        %v2561 = vunpack.c.h.b16 %v907
        %v2562 = vunpack.c.l.b16 %v908
        %v2563 = vunpack.c.h.b16 %v908
        %v2564 = vunpack.c.l.b16 %v909
        %v2565 = vunpack.c.h.b16 %v909
        %v2566 = vunpack.c.l.b16 %v910
        %v2567 = vunpack.c.h.b16 %v910
        %v2568 = vunpack.c.l.b16 %v911
        %v2569 = vunpack.c.h.b16 %v911
        %v2570 = vunpack.c.l.b16 %v912
        %v2571 = vunpack.c.h.b16 %v912
        %v2572 = vunpack.c.l.b16 %v913
        %v2573 = vunpack.c.h.b16 %v913
        %v2574 = vunpack.c.l.b16 %v914
        %v2575 = vunpack.c.h.b16 %v914
        %v2576 = vunpack.c.l.b16 %v915
        %v2577 = vunpack.c.h.b16 %v915
        %v2578 = vunpack.c.l.b16 %v916
        %v2579 = vunpack.c.h.b16 %v916
        %v2580 = vunpack.c.l.b16 %v917
        %v2581 = vunpack.c.h.b16 %v917
        %v2582 = vunpack.c.l.b16 %v918
        %v2583 = vunpack.c.h.b16 %v918
        %v2584 = vunpack.c.l.b16 %v919
        %v2585 = vunpack.c.h.b16 %v919
        %v2586 = vunpack.c.l.b16 %v920
        %v2587 = vunpack.c.h.b16 %v920
        %v2588 = vunpack.c.l.b16 %v921
        %v2589 = vunpack.c.h.b16 %v921
        %v2590 = vunpack.c.l.b16 %v922
        %v2591 = vunpack.c.h.b16 %v922
        %v2592 = vunpack.c.l.b16 %v923
        %v2593 = vunpack.c.h.b16 %v923
        %v2594 = vunpack.c.l.b16 %v924
        %v2595 = vunpack.c.h.b16 %v924
        %v2596 = vunpack.c.l.b16 %v925
        %v2597 = vunpack.c.h.b16 %v925
        %v2598 = vunpack.c.l.b16 %v926
        %v2599 = vunpack.c.h.b16 %v926
        %v2600 = vunpack.c.l.b16 %v927
        %v2601 = vunpack.c.h.b16 %v927
        %v2602 = vunpack.c.l.b16 %v928
        %v2603 = vunpack.c.h.b16 %v928
        %v2604 = vunpack.c.l.b16 %v929
        %v2605 = vunpack.c.h.b16 %v929
        %v2606 = vunpack.c.l.b16 %v930
        %v2607 = vunpack.c.h.b16 %v930
        %v2608 = vunpack.c.l.b16 %v931
        %v2609 = vunpack.c.h.b16 %v931
        %v2610 = vunpack.c.l.b16 %v932
        %v2611 = vunpack.c.h.b16 %v932
        %v2612 = vunpack.c.l.b16 %v933
        %v2613 = vunpack.c.h.b16 %v933
        %v2614 = vunpack.c.l.b16 %v934
        %v2615 = vunpack.c.h.b16 %v934
        %v2616 = vunpack.c.l.b16 %v935
        %v2617 = vunpack.c.h.b16 %v935
        %v2618 = vunpack.c.l.b16 %v936
        %v2619 = vunpack.c.h.b16 %v936
        %v2620 = vunpack.c.l.b16 %v937
        %v2621 = vunpack.c.h.b16 %v937
        %v2622 = vunpack.c.l.b16 %v938
        %v2623 = vunpack.c.h.b16 %v938
        %v2624 = vunpack.c.l.b16 %v939
        %v2625 = vunpack.c.h.b16 %v939
        %v2626 = vunpack.c.l.b16 %v940
        %v2627 = vunpack.c.h.b16 %v940
        %v2628 = vunpack.c.l.b16 %v941
        %v2629 = vunpack.c.h.b16 %v941
        %v2630 = vunpack.c.l.b16 %v942
        %v2631 = vunpack.c.h.b16 %v942
        %v2632 = vunpack.c.l.b16 %v943
        %v2633 = vunpack.c.h.b16 %v943
        %v2634 = vunpack.c.l.b16 %v944
        %v2635 = vunpack.c.h.b16 %v944
        %v2636 = vunpack.c.l.b16 %v945
        %v2637 = vunpack.c.h.b16 %v945
        %v2638 = vunpack.c.l.b16 %v946
        %v2639 = vunpack.c.h.b16 %v946
        %v2640 = vunpack.c.l.b16 %v947
        %v2641 = vunpack.c.h.b16 %v947
        %v2642 = vunpack.c.l.b16 %v948
        %v2643 = vunpack.c.h.b16 %v948
        %v2644 = vunpack.c.l.b16 %v949
        %v2645 = vunpack.c.h.b16 %v949
        %v2646 = vunpack.c.l.b16 %v950
        %v2647 = vunpack.c.h.b16 %v950
        %v2648 = vunpack.c.l.b16 %v951
        %v2649 = vunpack.c.h.b16 %v951
        %v2650 = vunpack.c.l.b16 %v952
        %v2651 = vunpack.c.h.b16 %v952
        %v2652 = vunpack.c.l.b16 %v953
        %v2653 = vunpack.c.h.b16 %v953
        %v2654 = vunpack.c.l.b16 %v954
        %v2655 = vunpack.c.h.b16 %v954
        %v2656 = vunpack.c.l.b16 %v955
        %v2657 = vunpack.c.h.b16 %v955
        %v2658 = vunpack.c.l.b16 %v956
        %v2659 = vunpack.c.h.b16 %v956
        %v2660 = vunpack.c.l.b16 %v957
        %v2661 = vunpack.c.h.b16 %v957
        %v2662 = vunpack.c.l.b16 %v958
        %v2663 = vunpack.c.h.b16 %v958
        %v2664 = vunpack.c.l.b16 %v959
        %v2665 = vunpack.c.h.b16 %v959
        %v2666 = vunpack.c.l.b16 %v960
        %v2667 = vunpack.c.h.b16 %v960
        %v2668 = vunpack.c.l.b16 %v961
        %v2669 = vunpack.c.h.b16 %v961
        %v2670 = vunpack.c.l.b16 %v962
        %v2671 = vunpack.c.h.b16 %v962
        %v2672 = vunpack.c.l.b16 %v963
        %v2673 = vunpack.c.h.b16 %v963
        %v2674 = vunpack.c.l.b16 %v964
        %v2675 = vunpack.c.h.b16 %v964
        %v2676 = vunpack.c.l.b16 %v965
        %v2677 = vunpack.c.h.b16 %v965
        %v2678 = vunpack.c.l.b16 %v966
        %v2679 = vunpack.c.h.b16 %v966
        %v2680 = vunpack.c.l.b16 %v967
        %v2681 = vunpack.c.h.b16 %v967
        %v2682 = vpack.c.b16 %v1598, %v1594
        %v2683 = vpack.c.b16 %v1599, %v1595
        %v2684 = vpack.c.b16 %v1600, %v1596
        %v2685 = vpack.c.b16 %v1601, %v1597
        %v2686 = vpack.c.b16 %v1606, %v1602
        %v2687 = vpack.c.b16 %v1607, %v1603
        %v2688 = vpack.c.b16 %v1608, %v1604
        %v2689 = vpack.c.b16 %v1609, %v1605
        %v2690 = vpack.c.b16 %v1614, %v1610
        %v2691 = vpack.c.b16 %v1615, %v1611
        %v2692 = vpack.c.b16 %v1616, %v1612
        %v2693 = vpack.c.b16 %v1617, %v1613
        %v2694 = vpack.c.b16 %v1622, %v1618
        %v2695 = vpack.c.b16 %v1623, %v1619
        %v2696 = vpack.c.b16 %v1624, %v1620
        %v2697 = vpack.c.b16 %v1625, %v1621
        %v2698 = vpack.c.b16 %v1630, %v1626
        %v2699 = vpack.c.b16 %v1631, %v1627
        %v2700 = vpack.c.b16 %v1632, %v1628
        %v2701 = vpack.c.b16 %v1633, %v1629
        %v2702 = vpack.c.b16 %v1638, %v1634
        %v2703 = vpack.c.b16 %v1639, %v1635
        %v2704 = vpack.c.b16 %v1640, %v1636
        %v2705 = vpack.c.b16 %v1641, %v1637
        %v2706 = vpack.c.b16 %v1646, %v1642
        %v2707 = vpack.c.b16 %v1647, %v1643
        %v2708 = vpack.c.b16 %v1648, %v1644
        %v2709 = vpack.c.b16 %v1649, %v1645
        %v2710 = vpack.c.b16 %v1654, %v1650
        %v2711 = vpack.c.b16 %v1655, %v1651
        %v2712 = vpack.c.b16 %v1656, %v1652
        %v2713 = vpack.c.b16 %v1657, %v1653
        %v2714 = vpack.c.b16 %v1662, %v1658
        %v2715 = vpack.c.b16 %v1663, %v1659
        %v2716 = vpack.c.b16 %v1664, %v1660
        %v2717 = vpack.c.b16 %v1665, %v1661
        %v2718 = vpack.c.b16 %v1670, %v1666
        %v2719 = vpack.c.b16 %v1671, %v1667
        %v2720 = vpack.c.b16 %v1672, %v1668
        %v2721 = vpack.c.b16 %v1673, %v1669
        %v2722 = vpack.c.b16 %v1678, %v1674
        %v2723 = vpack.c.b16 %v1679, %v1675
        %v2724 = vpack.c.b16 %v1680, %v1676
        %v2725 = vpack.c.b16 %v1681, %v1677
        %v2726 = vpack.c.b16 %v1686, %v1682
        %v2727 = vpack.c.b16 %v1687, %v1683
        %v2728 = vpack.c.b16 %v1688, %v1684
        %v2729 = vpack.c.b16 %v1689, %v1685
        %v2730 = vpack.c.b16 %v1694, %v1690
        %v2731 = vpack.c.b16 %v1695, %v1691
        %v2732 = vpack.c.b16 %v1696, %v1692
        %v2733 = vpack.c.b16 %v1697, %v1693
        %v2734 = vpack.c.b16 %v1702, %v1698
        %v2735 = vpack.c.b16 %v1703, %v1699
        %v2736 = vpack.c.b16 %v1704, %v1700
        %v2737 = vpack.c.b16 %v1705, %v1701
        %v2738 = vpack.c.b16 %v1710, %v1706
        %v2739 = vpack.c.b16 %v1711, %v1707
        %v2740 = vpack.c.b16 %v1712, %v1708
        %v2741 = vpack.c.b16 %v1713, %v1709
        %v2742 = vpack.c.b16 %v1718, %v1714
        %v2743 = vpack.c.b16 %v1719, %v1715
        %v2744 = vpack.c.b16 %v1720, %v1716
        %v2745 = vpack.c.b16 %v1721, %v1717
        %v2746 = vpack.c.b16 %v1726, %v1722
        %v2747 = vpack.c.b16 %v1727, %v1723
        %v2748 = vpack.c.b16 %v1728, %v1724
        %v2749 = vpack.c.b16 %v1729, %v1725
        %v2750 = vpack.c.b16 %v1734, %v1730
        %v2751 = vpack.c.b16 %v1735, %v1731
        %v2752 = vpack.c.b16 %v1736, %v1732
        %v2753 = vpack.c.b16 %v1737, %v1733
        %v2754 = vpack.c.b16 %v1742, %v1738
        %v2755 = vpack.c.b16 %v1743, %v1739
        %v2756 = vpack.c.b16 %v1744, %v1740
        %v2757 = vpack.c.b16 %v1745, %v1741
        %v2758 = vpack.c.b16 %v1750, %v1746
        %v2759 = vpack.c.b16 %v1751, %v1747
        %v2760 = vpack.c.b16 %v1752, %v1748
        %v2761 = vpack.c.b16 %v1753, %v1749
        %v2762 = vpack.c.b16 %v1758, %v1754
        %v2763 = vpack.c.b16 %v1759, %v1755
        %v2764 = vpack.c.b16 %v1760, %v1756
        %v2765 = vpack.c.b16 %v1761, %v1757
        %v2766 = vpack.c.b16 %v1766, %v1762
        %v2767 = vpack.c.b16 %v1767, %v1763
        %v2768 = vpack.c.b16 %v1768, %v1764
        %v2769 = vpack.c.b16 %v1769, %v1765
        %v2770 = vpack.c.b16 %v1774, %v1770
        %v2771 = vpack.c.b16 %v1775, %v1771
        %v2772 = vpack.c.b16 %v1776, %v1772
        %v2773 = vpack.c.b16 %v1777, %v1773
        %v2774 = vpack.c.b16 %v1782, %v1778
        %v2775 = vpack.c.b16 %v1783, %v1779
        %v2776 = vpack.c.b16 %v1784, %v1780
        %v2777 = vpack.c.b16 %v1785, %v1781
        %v2778 = vpack.c.b16 %v1790, %v1786
        %v2779 = vpack.c.b16 %v1791, %v1787
        %v2780 = vpack.c.b16 %v1792, %v1788
        %v2781 = vpack.c.b16 %v1793, %v1789
        %v2782 = vpack.c.b16 %v1798, %v1794
        %v2783 = vpack.c.b16 %v1799, %v1795
        %v2784 = vpack.c.b16 %v1800, %v1796
        %v2785 = vpack.c.b16 %v1801, %v1797
        %v2786 = vpack.c.b16 %v1806, %v1802
        %v2787 = vpack.c.b16 %v1807, %v1803
        %v2788 = vpack.c.b16 %v1808, %v1804
        %v2789 = vpack.c.b16 %v1809, %v1805
        %v2790 = vpack.c.b16 %v1814, %v1810
        %v2791 = vpack.c.b16 %v1815, %v1811
        %v2792 = vpack.c.b16 %v1816, %v1812
        %v2793 = vpack.c.b16 %v1817, %v1813
        %v2794 = vpack.c.b16 %v1822, %v1818
        %v2795 = vpack.c.b16 %v1823, %v1819
        %v2796 = vpack.c.b16 %v1824, %v1820
        %v2797 = vpack.c.b16 %v1825, %v1821
        %v2798 = vpack.c.b16 %v1830, %v1826
        %v2799 = vpack.c.b16 %v1831, %v1827
        %v2800 = vpack.c.b16 %v1832, %v1828
        %v2801 = vpack.c.b16 %v1833, %v1829
        %v2802 = vpack.c.b16 %v1838, %v1834
        %v2803 = vpack.c.b16 %v1839, %v1835
        %v2804 = vpack.c.b16 %v1840, %v1836
        %v2805 = vpack.c.b16 %v1841, %v1837
        %v2806 = vpack.c.b16 %v1846, %v1842
        %v2807 = vpack.c.b16 %v1847, %v1843
        %v2808 = vpack.c.b16 %v1848, %v1844
        %v2809 = vpack.c.b16 %v1849, %v1845
        %v2810 = vpack.c.b16 %v1854, %v1850
        %v2811 = vpack.c.b16 %v1855, %v1851
        %v2812 = vpack.c.b16 %v1856, %v1852
        %v2813 = vpack.c.b16 %v1857, %v1853
        %v2814 = vpack.c.b16 %v1862, %v1858
        %v2815 = vpack.c.b16 %v1863, %v1859
        %v2816 = vpack.c.b16 %v1864, %v1860
        %v2817 = vpack.c.b16 %v1865, %v1861
        %v2818 = vpack.c.b16 %v1870, %v1866
        %v2819 = vpack.c.b16 %v1871, %v1867
        %v2820 = vpack.c.b16 %v1872, %v1868
        %v2821 = vpack.c.b16 %v1873, %v1869
        %v2822 = vpack.c.b16 %v1878, %v1874
        %v2823 = vpack.c.b16 %v1879, %v1875
        %v2824 = vpack.c.b16 %v1880, %v1876
        %v2825 = vpack.c.b16 %v1881, %v1877
        %v2826 = vpack.c.b16 %v1886, %v1882
        %v2827 = vpack.c.b16 %v1887, %v1883
        %v2828 = vpack.c.b16 %v1888, %v1884
        %v2829 = vpack.c.b16 %v1889, %v1885
        %v2830 = vpack.c.b16 %v1894, %v1890
        %v2831 = vpack.c.b16 %v1895, %v1891
        %v2832 = vpack.c.b16 %v1896, %v1892
        %v2833 = vpack.c.b16 %v1897, %v1893
        %v2834 = vpack.c.b16 %v1902, %v1898
        %v2835 = vpack.c.b16 %v1903, %v1899
        %v2836 = vpack.c.b16 %v1904, %v1900
        %v2837 = vpack.c.b16 %v1905, %v1901
        %v2838 = vpack.c.b16 %v1910, %v1906
        %v2839 = vpack.c.b16 %v1911, %v1907
        %v2840 = vpack.c.b16 %v1912, %v1908
        %v2841 = vpack.c.b16 %v1913, %v1909
        %v2842 = vpack.c.b16 %v1918, %v1914
        %v2843 = vpack.c.b16 %v1919, %v1915
        %v2844 = vpack.c.b16 %v1920, %v1916
        %v2845 = vpack.c.b16 %v1921, %v1917
        %v2846 = vpack.c.b16 %v1926, %v1922
        %v2847 = vpack.c.b16 %v1927, %v1923
        %v2848 = vpack.c.b16 %v1928, %v1924
        %v2849 = vpack.c.b16 %v1929, %v1925
        %v2850 = vpack.c.b16 %v1934, %v1930
        %v2851 = vpack.c.b16 %v1935, %v1931
        %v2852 = vpack.c.b16 %v1936, %v1932
        %v2853 = vpack.c.b16 %v1937, %v1933
        %v2854 = vpack.c.b16 %v1942, %v1938
        %v2855 = vpack.c.b16 %v1943, %v1939
        %v2856 = vpack.c.b16 %v1944, %v1940
        %v2857 = vpack.c.b16 %v1945, %v1941
        %v2858 = vpack.c.b16 %v1950, %v1946
        %v2859 = vpack.c.b16 %v1951, %v1947
        %v2860 = vpack.c.b16 %v1952, %v1948
        %v2861 = vpack.c.b16 %v1953, %v1949
        %v2862 = vpack.c.b16 %v1958, %v1954
        %v2863 = vpack.c.b16 %v1959, %v1955
        %v2864 = vpack.c.b16 %v1960, %v1956
        %v2865 = vpack.c.b16 %v1961, %v1957
        %v2866 = vpack.c.b16 %v1966, %v1962
        %v2867 = vpack.c.b16 %v1967, %v1963
        %v2868 = vpack.c.b16 %v1968, %v1964
        %v2869 = vpack.c.b16 %v1969, %v1965
        %v2870 = vpack.c.b16 %v1974, %v1970
        %v2871 = vpack.c.b16 %v1975, %v1971
        %v2872 = vpack.c.b16 %v1976, %v1972
        %v2873 = vpack.c.b16 %v1977, %v1973
        %v2874 = vpack.c.b16 %v1982, %v1978
        %v2875 = vpack.c.b16 %v1983, %v1979
        %v2876 = vpack.c.b16 %v1984, %v1980
        %v2877 = vpack.c.b16 %v1985, %v1981
        %v2878 = vpack.c.b16 %v1990, %v1986
        %v2879 = vpack.c.b16 %v1991, %v1987
        %v2880 = vpack.c.b16 %v1992, %v1988
        %v2881 = vpack.c.b16 %v1993, %v1989
        %v2882 = vpack.c.b16 %v1998, %v1994
        %v2883 = vpack.c.b16 %v1999, %v1995
        %v2884 = vpack.c.b16 %v2000, %v1996
        %v2885 = vpack.c.b16 %v2001, %v1997
        %v2886 = vpack.c.b16 %v2006, %v2002
        %v2887 = vpack.c.b16 %v2007, %v2003
        %v2888 = vpack.c.b16 %v2008, %v2004
        %v2889 = vpack.c.b16 %v2009, %v2005
        %v2890 = vpack.c.b16 %v2014, %v2010
        %v2891 = vpack.c.b16 %v2015, %v2011
        %v2892 = vpack.c.b16 %v2016, %v2012
        %v2893 = vpack.c.b16 %v2017, %v2013
        %v2894 = vpack.c.b16 %v2022, %v2018
        %v2895 = vpack.c.b16 %v2023, %v2019
        %v2896 = vpack.c.b16 %v2024, %v2020
        %v2897 = vpack.c.b16 %v2025, %v2021
        %v2898 = vpack.c.b16 %v2030, %v2026
        %v2899 = vpack.c.b16 %v2031, %v2027
        %v2900 = vpack.c.b16 %v2032, %v2028
        %v2901 = vpack.c.b16 %v2033, %v2029
        %v2902 = vpack.c.b16 %v2038, %v2034
        %v2903 = vpack.c.b16 %v2039, %v2035
        %v2904 = vpack.c.b16 %v2040, %v2036
        %v2905 = vpack.c.b16 %v2041, %v2037
        %v2906 = vpack.c.b16 %v2046, %v2042
        %v2907 = vpack.c.b16 %v2047, %v2043
        %v2908 = vpack.c.b16 %v2048, %v2044
        %v2909 = vpack.c.b16 %v2049, %v2045
        %v2910 = vpack.c.b16 %v2054, %v2050
        %v2911 = vpack.c.b16 %v2055, %v2051
        %v2912 = vpack.c.b16 %v2056, %v2052
        %v2913 = vpack.c.b16 %v2057, %v2053
        %v2914 = vpack.c.b16 %v2062, %v2058
        %v2915 = vpack.c.b16 %v2063, %v2059
        %v2916 = vpack.c.b16 %v2064, %v2060
        %v2917 = vpack.c.b16 %v2065, %v2061
        %v2918 = vpack.c.b16 %v2070, %v2066
        %v2919 = vpack.c.b16 %v2071, %v2067
        %v2920 = vpack.c.b16 %v2072, %v2068
        %v2921 = vpack.c.b16 %v2073, %v2069
        %v2922 = vpack.c.b16 %v2078, %v2074
        %v2923 = vpack.c.b16 %v2079, %v2075
        %v2924 = vpack.c.b16 %v2080, %v2076
        %v2925 = vpack.c.b16 %v2081, %v2077
        %v2926 = vpack.c.b16 %v2086, %v2082
        %v2927 = vpack.c.b16 %v2087, %v2083
        %v2928 = vpack.c.b16 %v2088, %v2084
        %v2929 = vpack.c.b16 %v2089, %v2085
        %v2930 = vpack.c.b16 %v2094, %v2090
        %v2931 = vpack.c.b16 %v2095, %v2091
        %v2932 = vpack.c.b16 %v2096, %v2092
        %v2933 = vpack.c.b16 %v2097, %v2093
        %v2934 = vpack.c.b16 %v2102, %v2098
        %v2935 = vpack.c.b16 %v2103, %v2099
        %v2936 = vpack.c.b16 %v2104, %v2100
        %v2937 = vpack.c.b16 %v2105, %v2101
        %v2938 = vpack.c.b16 %v2110, %v2106
        %v2939 = vpack.c.b16 %v2111, %v2107
        %v2940 = vpack.c.b16 %v2112, %v2108
        %v2941 = vpack.c.b16 %v2113, %v2109
        %v2942 = vpack.c.b16 %v2118, %v2114
        %v2943 = vpack.c.b16 %v2119, %v2115
        %v2944 = vpack.c.b16 %v2120, %v2116
        %v2945 = vpack.c.b16 %v2121, %v2117
        %v2946 = vpack.c.b16 %v2126, %v2122
        %v2947 = vpack.c.b16 %v2127, %v2123
        %v2948 = vpack.c.b16 %v2128, %v2124
        %v2949 = vpack.c.b16 %v2129, %v2125
        %v2950 = vpack.c.b16 %v2134, %v2130
        %v2951 = vpack.c.b16 %v2135, %v2131
        %v2952 = vpack.c.b16 %v2136, %v2132
        %v2953 = vpack.c.b16 %v2137, %v2133
        %v2954 = vpack.c.b16 %v2142, %v2138
        %v2955 = vpack.c.b16 %v2143, %v2139
        %v2956 = vpack.c.b16 %v2144, %v2140
        %v2957 = vpack.c.b16 %v2145, %v2141
        %v2958 = vpack.c.b16 %v2150, %v2146
        %v2959 = vpack.c.b16 %v2151, %v2147
        %v2960 = vpack.c.b16 %v2152, %v2148
        %v2961 = vpack.c.b16 %v2153, %v2149
        %v2962 = vpack.c.b16 %v2158, %v2154
        %v2963 = vpack.c.b16 %v2159, %v2155
        %v2964 = vpack.c.b16 %v2160, %v2156
        %v2965 = vpack.c.b16 %v2161, %v2157
        %v2966 = vpack.c.b16 %v2166, %v2162
        %v2967 = vpack.c.b16 %v2167, %v2163
        %v2968 = vpack.c.b16 %v2168, %v2164
        %v2969 = vpack.c.b16 %v2169, %v2165
        %v2970 = vpack.c.b16 %v2174, %v2170
        %v2971 = vpack.c.b16 %v2175, %v2171
        %v2972 = vpack.c.b16 %v2176, %v2172
        %v2973 = vpack.c.b16 %v2177, %v2173
        %v2974 = vpack.c.b16 %v2182, %v2178
        %v2975 = vpack.c.b16 %v2183, %v2179
        %v2976 = vpack.c.b16 %v2184, %v2180
        %v2977 = vpack.c.b16 %v2185, %v2181
        %v2978 = vpack.c.b16 %v2190, %v2186
        %v2979 = vpack.c.b16 %v2191, %v2187
        %v2980 = vpack.c.b16 %v2192, %v2188
        %v2981 = vpack.c.b16 %v2193, %v2189
        %v2982 = vpack.c.b16 %v2198, %v2194
        %v2983 = vpack.c.b16 %v2199, %v2195
        %v2984 = vpack.c.b16 %v2200, %v2196
        %v2985 = vpack.c.b16 %v2201, %v2197
        %v2986 = vpack.c.b16 %v2206, %v2202
        %v2987 = vpack.c.b16 %v2207, %v2203
        %v2988 = vpack.c.b16 %v2208, %v2204
        %v2989 = vpack.c.b16 %v2209, %v2205
        %v2990 = vpack.c.b16 %v2214, %v2210
        %v2991 = vpack.c.b16 %v2215, %v2211
        %v2992 = vpack.c.b16 %v2216, %v2212
        %v2993 = vpack.c.b16 %v2217, %v2213
        %v2994 = vpack.c.b16 %v2222, %v2218
        %v2995 = vpack.c.b16 %v2223, %v2219
        %v2996 = vpack.c.b16 %v2224, %v2220
        %v2997 = vpack.c.b16 %v2225, %v2221
        %v2998 = vpack.c.b16 %v2230, %v2226
        %v2999 = vpack.c.b16 %v2231, %v2227
        %v3000 = vpack.c.b16 %v2232, %v2228
        %v3001 = vpack.c.b16 %v2233, %v2229
        %v3002 = vpack.c.b16 %v2238, %v2234
        %v3003 = vpack.c.b16 %v2239, %v2235
        %v3004 = vpack.c.b16 %v2240, %v2236
        %v3005 = vpack.c.b16 %v2241, %v2237
        %v3006 = vpack.c.b16 %v2246, %v2242
        %v3007 = vpack.c.b16 %v2247, %v2243
        %v3008 = vpack.c.b16 %v2248, %v2244
        %v3009 = vpack.c.b16 %v2249, %v2245
        %v3010 = vpack.c.b16 %v2254, %v2250
        %v3011 = vpack.c.b16 %v2255, %v2251
        %v3012 = vpack.c.b16 %v2256, %v2252
        %v3013 = vpack.c.b16 %v2257, %v2253
        %v3014 = vpack.c.b16 %v2262, %v2258
        %v3015 = vpack.c.b16 %v2263, %v2259
        %v3016 = vpack.c.b16 %v2264, %v2260
        %v3017 = vpack.c.b16 %v2265, %v2261
        %v3018 = vpack.c.b16 %v2270, %v2266
        %v3019 = vpack.c.b16 %v2271, %v2267
        %v3020 = vpack.c.b16 %v2272, %v2268
        %v3021 = vpack.c.b16 %v2273, %v2269
        %v3022 = vpack.c.b16 %v2278, %v2274
        %v3023 = vpack.c.b16 %v2279, %v2275
        %v3024 = vpack.c.b16 %v2280, %v2276
        %v3025 = vpack.c.b16 %v2281, %v2277
        %v3026 = vpack.c.b16 %v2286, %v2282
        %v3027 = vpack.c.b16 %v2287, %v2283
        %v3028 = vpack.c.b16 %v2288, %v2284
        %v3029 = vpack.c.b16 %v2289, %v2285
        %v3030 = vpack.c.b16 %v2294, %v2290
        %v3031 = vpack.c.b16 %v2295, %v2291
        %v3032 = vpack.c.b16 %v2296, %v2292
        %v3033 = vpack.c.b16 %v2297, %v2293
        %v3034 = vpack.c.b16 %v2302, %v2298
        %v3035 = vpack.c.b16 %v2303, %v2299
        %v3036 = vpack.c.b16 %v2304, %v2300
        %v3037 = vpack.c.b16 %v2305, %v2301
        %v3038 = vpack.c.b16 %v2310, %v2306
        %v3039 = vpack.c.b16 %v2311, %v2307
        %v3040 = vpack.c.b16 %v2312, %v2308
        %v3041 = vpack.c.b16 %v2313, %v2309
        %v3042 = vpack.c.b16 %v2318, %v2314
        %v3043 = vpack.c.b16 %v2319, %v2315
        %v3044 = vpack.c.b16 %v2320, %v2316
        %v3045 = vpack.c.b16 %v2321, %v2317
        %v3046 = vpack.c.b16 %v2326, %v2322
        %v3047 = vpack.c.b16 %v2327, %v2323
        %v3048 = vpack.c.b16 %v2328, %v2324
        %v3049 = vpack.c.b16 %v2329, %v2325
        %v3050 = vpack.c.b16 %v2334, %v2330
        %v3051 = vpack.c.b16 %v2335, %v2331
        %v3052 = vpack.c.b16 %v2336, %v2332
        %v3053 = vpack.c.b16 %v2337, %v2333
        %v3054 = vpack.c.b16 %v2342, %v2338
        %v3055 = vpack.c.b16 %v2343, %v2339
        %v3056 = vpack.c.b16 %v2344, %v2340
        %v3057 = vpack.c.b16 %v2345, %v2341
        %v3058 = vpack.c.b16 %v2350, %v2346
        %v3059 = vpack.c.b16 %v2351, %v2347
        %v3060 = vpack.c.b16 %v2352, %v2348
        %v3061 = vpack.c.b16 %v2353, %v2349
        %v3062 = vpack.c.b16 %v2358, %v2354
        %v3063 = vpack.c.b16 %v2359, %v2355
        %v3064 = vpack.c.b16 %v2360, %v2356
        %v3065 = vpack.c.b16 %v2361, %v2357
        %v3066 = vpack.c.b16 %v2366, %v2362
        %v3067 = vpack.c.b16 %v2367, %v2363
        %v3068 = vpack.c.b16 %v2368, %v2364
        %v3069 = vpack.c.b16 %v2369, %v2365
        %v3070 = vpack.c.b16 %v2374, %v2370
        %v3071 = vpack.c.b16 %v2375, %v2371
        %v3072 = vpack.c.b16 %v2376, %v2372
        %v3073 = vpack.c.b16 %v2377, %v2373
        %v3074 = vpack.c.b16 %v2382, %v2378
        %v3075 = vpack.c.b16 %v2383, %v2379
        %v3076 = vpack.c.b16 %v2384, %v2380
        %v3077 = vpack.c.b16 %v2385, %v2381
        %v3078 = vpack.c.b16 %v2390, %v2386
        %v3079 = vpack.c.b16 %v2391, %v2387
        %v3080 = vpack.c.b16 %v2392, %v2388
        %v3081 = vpack.c.b16 %v2393, %v2389
        %v3082 = vpack.c.b16 %v2398, %v2394
        %v3083 = vpack.c.b16 %v2399, %v2395
        %v3084 = vpack.c.b16 %v2400, %v2396
        %v3085 = vpack.c.b16 %v2401, %v2397
        %v3086 = vpack.c.b16 %v2406, %v2402
        %v3087 = vpack.c.b16 %v2407, %v2403
        %v3088 = vpack.c.b16 %v2408, %v2404
        %v3089 = vpack.c.b16 %v2409, %v2405
        %v3090 = vpack.c.b16 %v2414, %v2410
        %v3091 = vpack.c.b16 %v2415, %v2411
        %v3092 = vpack.c.b16 %v2416, %v2412
        %v3093 = vpack.c.b16 %v2417, %v2413
        %v3094 = vpack.c.b16 %v2422, %v2418
        %v3095 = vpack.c.b16 %v2423, %v2419
        %v3096 = vpack.c.b16 %v2424, %v2420
        %v3097 = vpack.c.b16 %v2425, %v2421
        %v3098 = vpack.c.b16 %v2430, %v2426
        %v3099 = vpack.c.b16 %v2431, %v2427
        %v3100 = vpack.c.b16 %v2432, %v2428
        %v3101 = vpack.c.b16 %v2433, %v2429
        %v3102 = vpack.c.b16 %v2438, %v2434
        %v3103 = vpack.c.b16 %v2439, %v2435
        %v3104 = vpack.c.b16 %v2440, %v2436
        %v3105 = vpack.c.b16 %v2441, %v2437
        %v3106 = vpack.c.b16 %v2446, %v2442
        %v3107 = vpack.c.b16 %v2447, %v2443
        %v3108 = vpack.c.b16 %v2448, %v2444
        %v3109 = vpack.c.b16 %v2449, %v2445
        %v3110 = vpack.c.b16 %v2454, %v2450
        %v3111 = vpack.c.b16 %v2455, %v2451
        %v3112 = vpack.c.b16 %v2456, %v2452
        %v3113 = vpack.c.b16 %v2457, %v2453
        %v3114 = vpack.c.b16 %v2462, %v2458
        %v3115 = vpack.c.b16 %v2463, %v2459
        %v3116 = vpack.c.b16 %v2464, %v2460
        %v3117 = vpack.c.b16 %v2465, %v2461
        %v3118 = vpack.c.b16 %v2470, %v2466
        %v3119 = vpack.c.b16 %v2471, %v2467
        %v3120 = vpack.c.b16 %v2472, %v2468
        %v3121 = vpack.c.b16 %v2473, %v2469
        %v3122 = vpack.c.b16 %v2478, %v2474
        %v3123 = vpack.c.b16 %v2479, %v2475
        %v3124 = vpack.c.b16 %v2480, %v2476
        %v3125 = vpack.c.b16 %v2481, %v2477
        %v3126 = vpack.c.b16 %v2486, %v2482
        %v3127 = vpack.c.b16 %v2487, %v2483
        %v3128 = vpack.c.b16 %v2488, %v2484
        %v3129 = vpack.c.b16 %v2489, %v2485
        %v3130 = vpack.c.b16 %v2494, %v2490
        %v3131 = vpack.c.b16 %v2495, %v2491
        %v3132 = vpack.c.b16 %v2496, %v2492
        %v3133 = vpack.c.b16 %v2497, %v2493
        %v3134 = vpack.c.b16 %v2502, %v2498
        %v3135 = vpack.c.b16 %v2503, %v2499
        %v3136 = vpack.c.b16 %v2504, %v2500
        %v3137 = vpack.c.b16 %v2505, %v2501
        %v3138 = vpack.c.b16 %v2510, %v2506
        %v3139 = vpack.c.b16 %v2511, %v2507
        %v3140 = vpack.c.b16 %v2512, %v2508
        %v3141 = vpack.c.b16 %v2513, %v2509
        %v3142 = vpack.c.b16 %v2518, %v2514
        %v3143 = vpack.c.b16 %v2519, %v2515
        %v3144 = vpack.c.b16 %v2520, %v2516
        %v3145 = vpack.c.b16 %v2521, %v2517
        %v3146 = vpack.c.b16 %v2526, %v2522
        %v3147 = vpack.c.b16 %v2527, %v2523
        %v3148 = vpack.c.b16 %v2528, %v2524
        %v3149 = vpack.c.b16 %v2529, %v2525
        %v3150 = vpack.c.b16 %v2534, %v2530
        %v3151 = vpack.c.b16 %v2535, %v2531
        %v3152 = vpack.c.b16 %v2536, %v2532
        %v3153 = vpack.c.b16 %v2537, %v2533
        %v3154 = vpack.c.b16 %v2542, %v2538
        %v3155 = vpack.c.b16 %v2543, %v2539
        %v3156 = vpack.c.b16 %v2544, %v2540
        %v3157 = vpack.c.b16 %v2545, %v2541
        %v3158 = vpack.c.b16 %v2550, %v2546
        %v3159 = vpack.c.b16 %v2551, %v2547
        %v3160 = vpack.c.b16 %v2552, %v2548
        %v3161 = vpack.c.b16 %v2553, %v2549
        %v3162 = vpack.c.b16 %v2558, %v2554
        %v3163 = vpack.c.b16 %v2559, %v2555
        %v3164 = vpack.c.b16 %v2560, %v2556
        %v3165 = vpack.c.b16 %v2561, %v2557
        %v3166 = vpack.c.b16 %v2566, %v2562
        %v3167 = vpack.c.b16 %v2567, %v2563
        %v3168 = vpack.c.b16 %v2568, %v2564
        %v3169 = vpack.c.b16 %v2569, %v2565
        %v3170 = vpack.c.b16 %v2574, %v2570
        %v3171 = vpack.c.b16 %v2575, %v2571
        %v3172 = vpack.c.b16 %v2576, %v2572
        %v3173 = vpack.c.b16 %v2577, %v2573
        %v3174 = vpack.c.b16 %v2582, %v2578
        %v3175 = vpack.c.b16 %v2583, %v2579
        %v3176 = vpack.c.b16 %v2584, %v2580
        %v3177 = vpack.c.b16 %v2585, %v2581
        %v3178 = vpack.c.b16 %v2590, %v2586
        %v3179 = vpack.c.b16 %v2591, %v2587
        %v3180 = vpack.c.b16 %v2592, %v2588
        %v3181 = vpack.c.b16 %v2593, %v2589
        %v3182 = vpack.c.b16 %v2598, %v2594
        %v3183 = vpack.c.b16 %v2599, %v2595
        %v3184 = vpack.c.b16 %v2600, %v2596
        %v3185 = vpack.c.b16 %v2601, %v2597
        %v3186 = vpack.c.b16 %v2606, %v2602
        %v3187 = vpack.c.b16 %v2607, %v2603
        %v3188 = vpack.c.b16 %v2608, %v2604
        %v3189 = vpack.c.b16 %v2609, %v2605
        %v3190 = vpack.c.b16 %v2614, %v2610
        %v3191 = vpack.c.b16 %v2615, %v2611
        %v3192 = vpack.c.b16 %v2616, %v2612
        %v3193 = vpack.c.b16 %v2617, %v2613
        %v3194 = vpack.c.b16 %v2622, %v2618
        %v3195 = vpack.c.b16 %v2623, %v2619
        %v3196 = vpack.c.b16 %v2624, %v2620
        %v3197 = vpack.c.b16 %v2625, %v2621
        %v3198 = vpack.c.b16 %v2630, %v2626
        %v3199 = vpack.c.b16 %v2631, %v2627
        %v3200 = vpack.c.b16 %v2632, %v2628
        %v3201 = vpack.c.b16 %v2633, %v2629
        %v3202 = vpack.c.b16 %v2638, %v2634
        %v3203 = vpack.c.b16 %v2639, %v2635
        %v3204 = vpack.c.b16 %v2640, %v2636
        %v3205 = vpack.c.b16 %v2641, %v2637
        %v3206 = vpack.c.b16 %v2646, %v2642
        %v3207 = vpack.c.b16 %v2647, %v2643
        %v3208 = vpack.c.b16 %v2648, %v2644
        %v3209 = vpack.c.b16 %v2649, %v2645
        %v3210 = vpack.c.b16 %v2654, %v2650
        %v3211 = vpack.c.b16 %v2655, %v2651
        %v3212 = vpack.c.b16 %v2656, %v2652
        %v3213 = vpack.c.b16 %v2657, %v2653
        %v3214 = vpack.c.b16 %v2662, %v2658
        %v3215 = vpack.c.b16 %v2663, %v2659
        %v3216 = vpack.c.b16 %v2664, %v2660
        %v3217 = vpack.c.b16 %v2665, %v2661
        %v3218 = vpack.c.b16 %v2670, %v2666
        %v3219 = vpack.c.b16 %v2671, %v2667
        %v3220 = vpack.c.b16 %v2672, %v2668
        %v3221 = vpack.c.b16 %v2673, %v2669
        %v3222 = vpack.c.b16 %v2678, %v2674
        %v3223 = vpack.c.b16 %v2679, %v2675
        %v3224 = vpack.c.b16 %v2680, %v2676
        %v3225 = vpack.c.b16 %v2681, %v2677
        %3770 = vmatprep.subr.bf16.mxu0 %v2683
        %3771 = vmatpush1.bf16.msra.mxu0 %v2682
        %3772 = vmatprep.subr.bf16.mxu0 %v2687
        %3773 = vmatpush1.bf16.msra.mxu0 %v2686
        %3774 = vmatprep.subr.bf16.mxu0 %v2691
        %3775 = vmatpush1.bf16.msra.mxu0 %v2690
        %3776 = vmatprep.subr.bf16.mxu0 %v2695
        %3777 = vmatpush1.bf16.msra.mxu0 %v2694
        %3778 = vmatprep.subr.bf16.mxu0 %v2699
        %3779 = vmatpush1.bf16.msra.mxu0 %v2698
        %3780 = vmatprep.subr.bf16.mxu0 %v2703
        %3781 = vmatpush1.bf16.msra.mxu0 %v2702
        %3782 = vmatprep.subr.bf16.mxu0 %v2707
        %3783 = vmatpush1.bf16.msra.mxu0 %v2706
        %3784 = vmatprep.subr.bf16.mxu0 %v2711
        %3785 = vmatpush1.bf16.msra.mxu0 %v2710
        %3786 = vmatprep.subr.bf16.mxu0 %v2715
        %3787 = vmatpush1.bf16.msra.mxu0 %v2714
        %3788 = vmatprep.subr.bf16.mxu0 %v2719
        %3789 = vmatpush1.bf16.msra.mxu0 %v2718
        %3790 = vmatprep.subr.bf16.mxu0 %v2723
        %3791 = vmatpush1.bf16.msra.mxu0 %v2722
        %3792 = vmatprep.subr.bf16.mxu0 %v2727
        %3793 = vmatpush1.bf16.msra.mxu0 %v2726
        %3794 = vmatprep.subr.bf16.mxu0 %v2731
        %3795 = vmatpush1.bf16.msra.mxu0 %v2730
        %3796 = vmatprep.subr.bf16.mxu0 %v2735
        %3797 = vmatpush1.bf16.msra.mxu0 %v2734
        %3798 = vmatprep.subr.bf16.mxu0 %v2739
        %3799 = vmatpush1.bf16.msra.mxu0 %v2738
        %3800 = vmatprep.subr.bf16.mxu0 %v2743
        %3801 = vmatpush1.bf16.msra.mxu0 %v2742
        %3802 = vmatprep.mubr.bf16.mxu0 %v1017
        %3803 = vmatmul.mubr.bf16.gmra.mrb[0].mxu0 %v1016
        %v3804 = vpop.f32.mrb[0].mxu0
        %v3805 = vadd.f32 %v973, %v3804
        %v3806 = vpop.f32.mrb[0].mxu0
        %v3807 = vadd.f32 %v977, %v3806
        %v3808 = vpop.f32.mrb[0].mxu0
        %v3809 = vpop.f32.mrb[0].mxu0
        %3810 = vdwg.mxu0
        %3811 = vmatprep.subr.bf16.mxu0 %v2747
        %3812 = vmatpush1.bf16.msra.mxu0 %v2746
        %3813 = vmatprep.subr.bf16.mxu0 %v2751
        %3814 = vmatpush1.bf16.msra.mxu0 %v2750
        %3815 = vmatprep.subr.bf16.mxu0 %v2755
        %3816 = vmatpush1.bf16.msra.mxu0 %v2754
        %3817 = vmatprep.subr.bf16.mxu0 %v2759
        %3818 = vmatpush1.bf16.msra.mxu0 %v2758
        %3819 = vmatprep.subr.bf16.mxu0 %v2763
        %3820 = vmatpush1.bf16.msra.mxu0 %v2762
        %3821 = vmatprep.subr.bf16.mxu0 %v2767
        %3822 = vmatpush1.bf16.msra.mxu0 %v2766
        %3823 = vmatprep.subr.bf16.mxu0 %v2771
        %3824 = vmatpush1.bf16.msra.mxu0 %v2770
        %3825 = vmatprep.subr.bf16.mxu0 %v2775
        %3826 = vmatpush1.bf16.msra.mxu0 %v2774
        %3827 = vmatprep.subr.bf16.mxu0 %v2779
        %3828 = vmatpush1.bf16.msra.mxu0 %v2778
        %3829 = vmatprep.subr.bf16.mxu0 %v2783
        %3830 = vmatpush1.bf16.msra.mxu0 %v2782
        %3831 = vmatprep.subr.bf16.mxu0 %v2787
        %3832 = vmatpush1.bf16.msra.mxu0 %v2786
        %3833 = vmatprep.subr.bf16.mxu0 %v2791
        %3834 = vmatpush1.bf16.msra.mxu0 %v2790
        %3835 = vmatprep.subr.bf16.mxu0 %v2795
        %3836 = vmatpush1.bf16.msra.mxu0 %v2794
        %3837 = vmatprep.subr.bf16.mxu0 %v2799
        %3838 = vmatpush1.bf16.msra.mxu0 %v2798
        %3839 = vmatprep.subr.bf16.mxu0 %v2803
        %3840 = vmatpush1.bf16.msra.mxu0 %v2802
        %3841 = vmatprep.subr.bf16.mxu0 %v2807
        %3842 = vmatpush1.bf16.msra.mxu0 %v2806
        %3843 = vmatprep.mubr.bf16.mxu0 %v1019
        %3844 = vmatmul.mubr.bf16.gmra.mrb[0].mxu0 %v1018
        %v3845 = vpop.f32.mrb[0].mxu0
        %v3846 = vadd.f32 %v3805, %v3845
        %v3847 = vpop.f32.mrb[0].mxu0
        %v3848 = vadd.f32 %v3807, %v3847
        %v3849 = vpop.f32.mrb[0].mxu0
        %v3850 = vpop.f32.mrb[0].mxu0
        %3851 = vdwg.mxu0
        %3852 = vmatprep.subr.bf16.mxu0 %v2811
        %3853 = vmatpush1.bf16.msra.mxu0 %v2810
        %3854 = vmatprep.subr.bf16.mxu0 %v2815
        %3855 = vmatpush1.bf16.msra.mxu0 %v2814
        %3856 = vmatprep.subr.bf16.mxu0 %v2819
        %3857 = vmatpush1.bf16.msra.mxu0 %v2818
        %3858 = vmatprep.subr.bf16.mxu0 %v2823
        %3859 = vmatpush1.bf16.msra.mxu0 %v2822
        %3860 = vmatprep.subr.bf16.mxu0 %v2827
        %3861 = vmatpush1.bf16.msra.mxu0 %v2826
        %3862 = vmatprep.subr.bf16.mxu0 %v2831
        %3863 = vmatpush1.bf16.msra.mxu0 %v2830
        %3864 = vmatprep.subr.bf16.mxu0 %v2835
        %3865 = vmatpush1.bf16.msra.mxu0 %v2834
        %3866 = vmatprep.subr.bf16.mxu0 %v2839
        %3867 = vmatpush1.bf16.msra.mxu0 %v2838
        %3868 = vmatprep.subr.bf16.mxu0 %v2843
        %3869 = vmatpush1.bf16.msra.mxu0 %v2842
        %3870 = vmatprep.subr.bf16.mxu0 %v2847
        %3871 = vmatpush1.bf16.msra.mxu0 %v2846
        %3872 = vmatprep.subr.bf16.mxu0 %v2851
        %3873 = vmatpush1.bf16.msra.mxu0 %v2850
        %3874 = vmatprep.subr.bf16.mxu0 %v2855
        %3875 = vmatpush1.bf16.msra.mxu0 %v2854
        %3876 = vmatprep.subr.bf16.mxu0 %v2859
        %3877 = vmatpush1.bf16.msra.mxu0 %v2858
        %3878 = vmatprep.subr.bf16.mxu0 %v2863
        %3879 = vmatpush1.bf16.msra.mxu0 %v2862
        %3880 = vmatprep.subr.bf16.mxu0 %v2867
        %3881 = vmatpush1.bf16.msra.mxu0 %v2866
        %3882 = vmatprep.subr.bf16.mxu0 %v2871
        %3883 = vmatpush1.bf16.msra.mxu0 %v2870
        %3884 = vmatprep.mubr.bf16.mxu0 %v1021
        %3885 = vmatmul.mubr.bf16.gmra.mrb[0].mxu0 %v1020
        %v3886 = vpop.f32.mrb[0].mxu0
        %v3887 = vadd.f32 %v3846, %v3886
        %v3888 = vpop.f32.mrb[0].mxu0
        %v3889 = vadd.f32 %v3848, %v3888
        %v3890 = vpop.f32.mrb[0].mxu0
        %v3891 = vpop.f32.mrb[0].mxu0
        %3892 = vdwg.mxu0
        %3893 = vmatprep.subr.bf16.mxu0 %v2875
        %3894 = vmatpush1.bf16.msra.mxu0 %v2874
        %3895 = vmatprep.subr.bf16.mxu0 %v2879
        %3896 = vmatpush1.bf16.msra.mxu0 %v2878
        %3897 = vmatprep.subr.bf16.mxu0 %v2883
        %3898 = vmatpush1.bf16.msra.mxu0 %v2882
        %3899 = vmatprep.subr.bf16.mxu0 %v2887
        %3900 = vmatpush1.bf16.msra.mxu0 %v2886
        %3901 = vmatprep.subr.bf16.mxu0 %v2891
        %3902 = vmatpush1.bf16.msra.mxu0 %v2890
        %3903 = vmatprep.subr.bf16.mxu0 %v2895
        %3904 = vmatpush1.bf16.msra.mxu0 %v2894
        %3905 = vmatprep.subr.bf16.mxu0 %v2899
        %3906 = vmatpush1.bf16.msra.mxu0 %v2898
        %3907 = vmatprep.subr.bf16.mxu0 %v2903
        %3908 = vmatpush1.bf16.msra.mxu0 %v2902
        %3909 = vmatprep.subr.bf16.mxu0 %v2907
        %3910 = vmatpush1.bf16.msra.mxu0 %v2906
        %3911 = vmatprep.subr.bf16.mxu0 %v2911
        %3912 = vmatpush1.bf16.msra.mxu0 %v2910
        %3913 = vmatprep.subr.bf16.mxu0 %v2915
        %3914 = vmatpush1.bf16.msra.mxu0 %v2914
        %3915 = vmatprep.subr.bf16.mxu0 %v2919
        %3916 = vmatpush1.bf16.msra.mxu0 %v2918
        %3917 = vmatprep.subr.bf16.mxu0 %v2923
        %3918 = vmatpush1.bf16.msra.mxu0 %v2922
        %3919 = vmatprep.subr.bf16.mxu0 %v2927
        %3920 = vmatpush1.bf16.msra.mxu0 %v2926
        %3921 = vmatprep.subr.bf16.mxu0 %v2931
        %3922 = vmatpush1.bf16.msra.mxu0 %v2930
        %3923 = vmatprep.subr.bf16.mxu0 %v2935
        %3924 = vmatpush1.bf16.msra.mxu0 %v2934
        %3925 = vmatprep.mubr.bf16.mxu0 %v1023
        %3926 = vmatmul.mubr.bf16.gmra.mrb[0].mxu0 %v1022
        %v3927 = vpop.f32.mrb[0].mxu0
        %v3928 = vadd.f32 %v3887, %v3927
        %v3929 = vpop.f32.mrb[0].mxu0
        %v3930 = vadd.f32 %v3889, %v3929
        %v3931 = vpop.f32.mrb[0].mxu0
        %v3932 = vpop.f32.mrb[0].mxu0
        %3933 = vdwg.mxu0
        %3934 = vmatprep.subr.bf16.mxu0 %v2939
        %3935 = vmatpush1.bf16.msra.mxu0 %v2938
        %3936 = vmatprep.subr.bf16.mxu0 %v2943
        %3937 = vmatpush1.bf16.msra.mxu0 %v2942
        %3938 = vmatprep.subr.bf16.mxu0 %v2947
        %3939 = vmatpush1.bf16.msra.mxu0 %v2946
        %3940 = vmatprep.subr.bf16.mxu0 %v2951
        %3941 = vmatpush1.bf16.msra.mxu0 %v2950
        %3942 = vmatprep.subr.bf16.mxu0 %v2955
        %3943 = vmatpush1.bf16.msra.mxu0 %v2954
        %3944 = vmatprep.subr.bf16.mxu0 %v2959
        %3945 = vmatpush1.bf16.msra.mxu0 %v2958
        %3946 = vmatprep.subr.bf16.mxu0 %v2963
        %3947 = vmatpush1.bf16.msra.mxu0 %v2962
        %3948 = vmatprep.subr.bf16.mxu0 %v2967
        %3949 = vmatpush1.bf16.msra.mxu0 %v2966
        %3950 = vmatprep.subr.bf16.mxu0 %v2971
        %3951 = vmatpush1.bf16.msra.mxu0 %v2970
        %3952 = vmatprep.subr.bf16.mxu0 %v2975
        %3953 = vmatpush1.bf16.msra.mxu0 %v2974
        %3954 = vmatprep.subr.bf16.mxu0 %v2979
        %3955 = vmatpush1.bf16.msra.mxu0 %v2978
        %3956 = vmatprep.subr.bf16.mxu0 %v2983
        %3957 = vmatpush1.bf16.msra.mxu0 %v2982
        %3958 = vmatprep.subr.bf16.mxu0 %v2987
        %3959 = vmatpush1.bf16.msra.mxu0 %v2986
        %3960 = vmatprep.subr.bf16.mxu0 %v2991
        %3961 = vmatpush1.bf16.msra.mxu0 %v2990
        %3962 = vmatprep.subr.bf16.mxu0 %v2995
        %3963 = vmatpush1.bf16.msra.mxu0 %v2994
        %3964 = vmatprep.subr.bf16.mxu0 %v2999
        %3965 = vmatpush1.bf16.msra.mxu0 %v2998
        %3966 = vmatprep.mubr.bf16.mxu0 %v1025
        %3967 = vmatmul.mubr.bf16.gmra.mrb[0].mxu0 %v1024
        %v3968 = vpop.f32.mrb[0].mxu0
        %v3969 = vadd.f32 %v3928, %v3968
        %v3970 = vpop.f32.mrb[0].mxu0
        %v3971 = vadd.f32 %v3930, %v3970
        %v3972 = vpop.f32.mrb[0].mxu0
        %v3973 = vpop.f32.mrb[0].mxu0
        %3974 = vdwg.mxu0
        %3975 = vmatprep.subr.bf16.mxu0 %v3003
        %3976 = vmatpush1.bf16.msra.mxu0 %v3002
        %3977 = vmatprep.subr.bf16.mxu0 %v3007
        %3978 = vmatpush1.bf16.msra.mxu0 %v3006
        %3979 = vmatprep.subr.bf16.mxu0 %v3011
        %3980 = vmatpush1.bf16.msra.mxu0 %v3010
        %3981 = vmatprep.subr.bf16.mxu0 %v3015
        %3982 = vmatpush1.bf16.msra.mxu0 %v3014
        %3983 = vmatprep.subr.bf16.mxu0 %v3019
        %3984 = vmatpush1.bf16.msra.mxu0 %v3018
        %3985 = vmatprep.subr.bf16.mxu0 %v3023
        %3986 = vmatpush1.bf16.msra.mxu0 %v3022
        %3987 = vmatprep.subr.bf16.mxu0 %v3027
        %3988 = vmatpush1.bf16.msra.mxu0 %v3026
        %3989 = vmatprep.subr.bf16.mxu0 %v3031
        %3990 = vmatpush1.bf16.msra.mxu0 %v3030
        %3991 = vmatprep.subr.bf16.mxu0 %v3035
        %3992 = vmatpush1.bf16.msra.mxu0 %v3034
        %3993 = vmatprep.subr.bf16.mxu0 %v3039
        %3994 = vmatpush1.bf16.msra.mxu0 %v3038
        %3995 = vmatprep.subr.bf16.mxu0 %v3043
        %3996 = vmatpush1.bf16.msra.mxu0 %v3042
        %3997 = vmatprep.subr.bf16.mxu0 %v3047
        %3998 = vmatpush1.bf16.msra.mxu0 %v3046
        %3999 = vmatprep.subr.bf16.mxu0 %v3051
        %4000 = vmatpush1.bf16.msra.mxu0 %v3050
        %4001 = vmatprep.subr.bf16.mxu0 %v3055
        %4002 = vmatpush1.bf16.msra.mxu0 %v3054
        %4003 = vmatprep.subr.bf16.mxu0 %v3059
        %4004 = vmatpush1.bf16.msra.mxu0 %v3058
        %4005 = vmatprep.subr.bf16.mxu0 %v3063
        %4006 = vmatpush1.bf16.msra.mxu0 %v3062
        %4007 = vmatprep.mubr.bf16.mxu0 %v1027
        %4008 = vmatmul.mubr.bf16.gmra.mrb[0].mxu0 %v1026
        %v4009 = vpop.f32.mrb[0].mxu0
        %v4010 = vadd.f32 %v3969, %v4009
        %v4011 = vpop.f32.mrb[0].mxu0
        %v4012 = vadd.f32 %v3971, %v4011
        %v4013 = vpop.f32.mrb[0].mxu0
        %v4014 = vpop.f32.mrb[0].mxu0
        %4015 = vdwg.mxu0
        %4016 = vmatprep.subr.bf16.mxu0 %v3067
        %4017 = vmatpush1.bf16.msra.mxu0 %v3066
        %4018 = vmatprep.subr.bf16.mxu0 %v3071
        %4019 = vmatpush1.bf16.msra.mxu0 %v3070
        %4020 = vmatprep.subr.bf16.mxu0 %v3075
        %4021 = vmatpush1.bf16.msra.mxu0 %v3074
        %4022 = vmatprep.subr.bf16.mxu0 %v3079
        %4023 = vmatpush1.bf16.msra.mxu0 %v3078
        %4024 = vmatprep.subr.bf16.mxu0 %v3083
        %4025 = vmatpush1.bf16.msra.mxu0 %v3082
        %4026 = vmatprep.subr.bf16.mxu0 %v3087
        %4027 = vmatpush1.bf16.msra.mxu0 %v3086
        %4028 = vmatprep.subr.bf16.mxu0 %v3091
        %4029 = vmatpush1.bf16.msra.mxu0 %v3090
        %4030 = vmatprep.subr.bf16.mxu0 %v3095
        %4031 = vmatpush1.bf16.msra.mxu0 %v3094
        %4032 = vmatprep.subr.bf16.mxu0 %v3099
        %4033 = vmatpush1.bf16.msra.mxu0 %v3098
        %4034 = vmatprep.subr.bf16.mxu0 %v3103
        %4035 = vmatpush1.bf16.msra.mxu0 %v3102
        %4036 = vmatprep.subr.bf16.mxu0 %v3107
        %4037 = vmatpush1.bf16.msra.mxu0 %v3106
        %4038 = vmatprep.subr.bf16.mxu0 %v3111
        %4039 = vmatpush1.bf16.msra.mxu0 %v3110
        %4040 = vmatprep.subr.bf16.mxu0 %v3115
        %4041 = vmatpush1.bf16.msra.mxu0 %v3114
        %4042 = vmatprep.subr.bf16.mxu0 %v3119
        %4043 = vmatpush1.bf16.msra.mxu0 %v3118
        %4044 = vmatprep.subr.bf16.mxu0 %v3123
        %4045 = vmatpush1.bf16.msra.mxu0 %v3122
        %4046 = vmatprep.subr.bf16.mxu0 %v3127
        %4047 = vmatpush1.bf16.msra.mxu0 %v3126
        %4048 = vmatprep.mubr.bf16.mxu0 %v1029
        %4049 = vmatmul.mubr.bf16.gmra.mrb[0].mxu0 %v1028
        %v4050 = vpop.f32.mrb[0].mxu0
        %v4051 = vadd.f32 %v4010, %v4050
        %v4052 = vpop.f32.mrb[0].mxu0
        %v4053 = vadd.f32 %v4012, %v4052
        %v4054 = vpop.f32.mrb[0].mxu0
        %v4055 = vpop.f32.mrb[0].mxu0
        %4056 = vdwg.mxu0
        %4057 = vmatprep.subr.bf16.mxu0 %v3131
        %4058 = vmatpush1.bf16.msra.mxu0 %v3130
        %4059 = vmatprep.subr.bf16.mxu0 %v3135
        %4060 = vmatpush1.bf16.msra.mxu0 %v3134
        %4061 = vmatprep.subr.bf16.mxu0 %v3139
        %4062 = vmatpush1.bf16.msra.mxu0 %v3138
        %4063 = vmatprep.subr.bf16.mxu0 %v3143
        %4064 = vmatpush1.bf16.msra.mxu0 %v3142
        %4065 = vmatprep.subr.bf16.mxu0 %v3147
        %4066 = vmatpush1.bf16.msra.mxu0 %v3146
        %4067 = vmatprep.subr.bf16.mxu0 %v3151
        %4068 = vmatpush1.bf16.msra.mxu0 %v3150
        %4069 = vmatprep.subr.bf16.mxu0 %v3155
        %4070 = vmatpush1.bf16.msra.mxu0 %v3154
        %4071 = vmatprep.subr.bf16.mxu0 %v3159
        %4072 = vmatpush1.bf16.msra.mxu0 %v3158
        %4073 = vmatprep.subr.bf16.mxu0 %v3163
        %4074 = vmatpush1.bf16.msra.mxu0 %v3162
        %4075 = vmatprep.subr.bf16.mxu0 %v3167
        %4076 = vmatpush1.bf16.msra.mxu0 %v3166
        %4077 = vmatprep.subr.bf16.mxu0 %v3171
        %4078 = vmatpush1.bf16.msra.mxu0 %v3170
        %4079 = vmatprep.subr.bf16.mxu0 %v3175
        %4080 = vmatpush1.bf16.msra.mxu0 %v3174
        %4081 = vmatprep.subr.bf16.mxu0 %v3179
        %4082 = vmatpush1.bf16.msra.mxu0 %v3178
        %4083 = vmatprep.subr.bf16.mxu0 %v3183
        %4084 = vmatpush1.bf16.msra.mxu0 %v3182
        %4085 = vmatprep.subr.bf16.mxu0 %v3187
        %4086 = vmatpush1.bf16.msra.mxu0 %v3186
        %4087 = vmatprep.subr.bf16.mxu0 %v3191
        %4088 = vmatpush1.bf16.msra.mxu0 %v3190
        %4089 = vmatprep.mubr.bf16.mxu0 %v1031
        %4090 = vmatmul.mubr.bf16.gmra.mrb[0].mxu0 %v1030
        %v4091 = vpop.f32.mrb[0].mxu0
        %v4092 = vadd.f32 %v4051, %v4091
        %v4093 = vpop.f32.mrb[0].mxu0
        %v4094 = vadd.f32 %v4053, %v4093
        %v4095 = vpop.f32.mrb[0].mxu0
        %v4096 = vpop.f32.mrb[0].mxu0
        %4097 = vdwg.mxu0
        %4098 = vmatprep.subr.bf16.mxu0 %v3195
        %4099 = vmatpush1.bf16.msra.mxu0 %v3194
        %4100 = vmatprep.subr.bf16.mxu0 %v3199
        %4101 = vmatpush1.bf16.msra.mxu0 %v3198
        %4102 = vmatprep.subr.bf16.mxu0 %v3203
        %4103 = vmatpush1.bf16.msra.mxu0 %v3202
        %4104 = vmatprep.subr.bf16.mxu0 %v3207
        %4105 = vmatpush1.bf16.msra.mxu0 %v3206
        %4106 = vmatprep.subr.bf16.mxu0 %v3211
        %4107 = vmatpush1.bf16.msra.mxu0 %v3210
        %4108 = vmatprep.subr.bf16.mxu0 %v3215
        %4109 = vmatpush1.bf16.msra.mxu0 %v3214
        %4110 = vmatprep.subr.bf16.mxu0 %v3219
        %4111 = vmatpush1.bf16.msra.mxu0 %v3218
        %4112 = vmatprep.subr.bf16.mxu0 %v3223
        %4113 = vmatpush1.bf16.msra.mxu0 %v3222
        %4114 = vmatprep.subr.bf16.mxu0 0
        %4115 = vmatpush1.bf16.msra.mxu0 0
        %4116 = vmatprep.subr.bf16.mxu0 0
        %4117 = vmatpush1.bf16.msra.mxu0 0
        %4118 = vmatprep.subr.bf16.mxu0 0
        %4119 = vmatpush1.bf16.msra.mxu0 0
        %4120 = vmatprep.subr.bf16.mxu0 0
        %4121 = vmatpush1.bf16.msra.mxu0 0
        %4122 = vmatprep.subr.bf16.mxu0 0
        %4123 = vmatpush1.bf16.msra.mxu0 0
        %4124 = vmatprep.subr.bf16.mxu0 0
        %4125 = vmatpush1.bf16.msra.mxu0 0
        %4126 = vmatprep.subr.bf16.mxu0 0
        %4127 = vmatpush1.bf16.msra.mxu0 0
        %4128 = vmatprep.subr.bf16.mxu0 0
        %4129 = vmatpush1.bf16.msra.mxu0 0
        %4130 = vmatprep.mubr.bf16.mxu0 0
        %4131 = vmatmul.mubr.bf16.gmra.mrb[0].mxu0 %v1032
        %v4132 = vpop.f32.mrb[0].mxu0
        %v4133 = vadd.f32 %v4092, %v4132
        %v4134 = vpop.f32.mrb[0].mxu0
        %v4135 = vadd.f32 %v4094, %v4134
        %v4136 = vpop.f32.mrb[0].mxu0
        %v4137 = vpop.f32.mrb[0].mxu0
        %4138 = vdwg.mxu0
        %4139 = vmatprep.subr.bf16.mxu0 %v2685
        %4140 = vmatpush1.bf16.msra.mxu0 %v2684
        %4141 = vmatprep.subr.bf16.mxu0 %v2689
        %4142 = vmatpush1.bf16.msra.mxu0 %v2688
        %4143 = vmatprep.subr.bf16.mxu0 %v2693
        %4144 = vmatpush1.bf16.msra.mxu0 %v2692
        %4145 = vmatprep.subr.bf16.mxu0 %v2697
        %4146 = vmatpush1.bf16.msra.mxu0 %v2696
        %4147 = vmatprep.subr.bf16.mxu0 %v2701
        %4148 = vmatpush1.bf16.msra.mxu0 %v2700
        %4149 = vmatprep.subr.bf16.mxu0 %v2705
        %4150 = vmatpush1.bf16.msra.mxu0 %v2704
        %4151 = vmatprep.subr.bf16.mxu0 %v2709
        %4152 = vmatpush1.bf16.msra.mxu0 %v2708
        %4153 = vmatprep.subr.bf16.mxu0 %v2713
        %4154 = vmatpush1.bf16.msra.mxu0 %v2712
        %4155 = vmatprep.subr.bf16.mxu0 %v2717
        %4156 = vmatpush1.bf16.msra.mxu0 %v2716
        %4157 = vmatprep.subr.bf16.mxu0 %v2721
        %4158 = vmatpush1.bf16.msra.mxu0 %v2720
        %4159 = vmatprep.subr.bf16.mxu0 %v2725
        %4160 = vmatpush1.bf16.msra.mxu0 %v2724
        %4161 = vmatprep.subr.bf16.mxu0 %v2729
        %4162 = vmatpush1.bf16.msra.mxu0 %v2728
        %4163 = vmatprep.subr.bf16.mxu0 %v2733
        %4164 = vmatpush1.bf16.msra.mxu0 %v2732
        %4165 = vmatprep.subr.bf16.mxu0 %v2737
        %4166 = vmatpush1.bf16.msra.mxu0 %v2736
        %4167 = vmatprep.subr.bf16.mxu0 %v2741
        %4168 = vmatpush1.bf16.msra.mxu0 %v2740
        %4169 = vmatprep.subr.bf16.mxu0 %v2745
        %4170 = vmatpush1.bf16.msra.mxu0 %v2744
        %4171 = vmatprep.mubr.bf16.mxu0 %v1017
        %4172 = vmatmul.mubr.bf16.gmra.mrb[0].mxu0 %v1016
        %v4173 = vpop.f32.mrb[0].mxu0
        %v4174 = vadd.f32 %v981, %v4173
        %v4175 = vpop.f32.mrb[0].mxu0
        %v4176 = vadd.f32 %v985, %v4175
        %v4177 = vpop.f32.mrb[0].mxu0
        %v4178 = vpop.f32.mrb[0].mxu0
        %4179 = vdwg.mxu0
        %4180 = vmatprep.subr.bf16.mxu0 %v2749
        %4181 = vmatpush1.bf16.msra.mxu0 %v2748
        %4182 = vmatprep.subr.bf16.mxu0 %v2753
        %4183 = vmatpush1.bf16.msra.mxu0 %v2752
        %4184 = vmatprep.subr.bf16.mxu0 %v2757
        %4185 = vmatpush1.bf16.msra.mxu0 %v2756
        %4186 = vmatprep.subr.bf16.mxu0 %v2761
        %4187 = vmatpush1.bf16.msra.mxu0 %v2760
        %4188 = vmatprep.subr.bf16.mxu0 %v2765
        %4189 = vmatpush1.bf16.msra.mxu0 %v2764
        %4190 = vmatprep.subr.bf16.mxu0 %v2769
        %4191 = vmatpush1.bf16.msra.mxu0 %v2768
        %4192 = vmatprep.subr.bf16.mxu0 %v2773
        %4193 = vmatpush1.bf16.msra.mxu0 %v2772
        %4194 = vmatprep.subr.bf16.mxu0 %v2777
        %4195 = vmatpush1.bf16.msra.mxu0 %v2776
        %4196 = vmatprep.subr.bf16.mxu0 %v2781
        %4197 = vmatpush1.bf16.msra.mxu0 %v2780
        %4198 = vmatprep.subr.bf16.mxu0 %v2785
        %4199 = vmatpush1.bf16.msra.mxu0 %v2784
        %4200 = vmatprep.subr.bf16.mxu0 %v2789
        %4201 = vmatpush1.bf16.msra.mxu0 %v2788
        %4202 = vmatprep.subr.bf16.mxu0 %v2793
        %4203 = vmatpush1.bf16.msra.mxu0 %v2792
        %4204 = vmatprep.subr.bf16.mxu0 %v2797
        %4205 = vmatpush1.bf16.msra.mxu0 %v2796
        %4206 = vmatprep.subr.bf16.mxu0 %v2801
        %4207 = vmatpush1.bf16.msra.mxu0 %v2800
        %4208 = vmatprep.subr.bf16.mxu0 %v2805
        %4209 = vmatpush1.bf16.msra.mxu0 %v2804
        %4210 = vmatprep.subr.bf16.mxu0 %v2809
        %4211 = vmatpush1.bf16.msra.mxu0 %v2808
        %4212 = vmatprep.mubr.bf16.mxu0 %v1019
        %4213 = vmatmul.mubr.bf16.gmra.mrb[0].mxu0 %v1018
        %v4214 = vpop.f32.mrb[0].mxu0
        %v4215 = vadd.f32 %v4174, %v4214
        %v4216 = vpop.f32.mrb[0].mxu0
        %v4217 = vadd.f32 %v4176, %v4216
        %v4218 = vpop.f32.mrb[0].mxu0
        %v4219 = vpop.f32.mrb[0].mxu0
        %4220 = vdwg.mxu0
        %4221 = vmatprep.subr.bf16.mxu0 %v2813
        %4222 = vmatpush1.bf16.msra.mxu0 %v2812
        %4223 = vmatprep.subr.bf16.mxu0 %v2817
        %4224 = vmatpush1.bf16.msra.mxu0 %v2816
        %4225 = vmatprep.subr.bf16.mxu0 %v2821
        %4226 = vmatpush1.bf16.msra.mxu0 %v2820
        %4227 = vmatprep.subr.bf16.mxu0 %v2825
        %4228 = vmatpush1.bf16.msra.mxu0 %v2824
        %4229 = vmatprep.subr.bf16.mxu0 %v2829
        %4230 = vmatpush1.bf16.msra.mxu0 %v2828
        %4231 = vmatprep.subr.bf16.mxu0 %v2833
        %4232 = vmatpush1.bf16.msra.mxu0 %v2832
        %4233 = vmatprep.subr.bf16.mxu0 %v2837
        %4234 = vmatpush1.bf16.msra.mxu0 %v2836
        %4235 = vmatprep.subr.bf16.mxu0 %v2841
        %4236 = vmatpush1.bf16.msra.mxu0 %v2840
        %4237 = vmatprep.subr.bf16.mxu0 %v2845
        %4238 = vmatpush1.bf16.msra.mxu0 %v2844
        %4239 = vmatprep.subr.bf16.mxu0 %v2849
        %4240 = vmatpush1.bf16.msra.mxu0 %v2848
        %4241 = vmatprep.subr.bf16.mxu0 %v2853
        %4242 = vmatpush1.bf16.msra.mxu0 %v2852
        %4243 = vmatprep.subr.bf16.mxu0 %v2857
        %4244 = vmatpush1.bf16.msra.mxu0 %v2856
        %4245 = vmatprep.subr.bf16.mxu0 %v2861
        %4246 = vmatpush1.bf16.msra.mxu0 %v2860
        %4247 = vmatprep.subr.bf16.mxu0 %v2865
        %4248 = vmatpush1.bf16.msra.mxu0 %v2864
        %4249 = vmatprep.subr.bf16.mxu0 %v2869
        %4250 = vmatpush1.bf16.msra.mxu0 %v2868
        %4251 = vmatprep.subr.bf16.mxu0 %v2873
        %4252 = vmatpush1.bf16.msra.mxu0 %v2872
        %4253 = vmatprep.mubr.bf16.mxu0 %v1021
        %4254 = vmatmul.mubr.bf16.gmra.mrb[0].mxu0 %v1020
        %v4255 = vpop.f32.mrb[0].mxu0
        %v4256 = vadd.f32 %v4215, %v4255
        %v4257 = vpop.f32.mrb[0].mxu0
        %v4258 = vadd.f32 %v4217, %v4257
        %v4259 = vpop.f32.mrb[0].mxu0
        %v4260 = vpop.f32.mrb[0].mxu0
        %4261 = vdwg.mxu0
        %4262 = vmatprep.subr.bf16.mxu0 %v2877
        %4263 = vmatpush1.bf16.msra.mxu0 %v2876
        %4264 = vmatprep.subr.bf16.mxu0 %v2881
        %4265 = vmatpush1.bf16.msra.mxu0 %v2880
        %4266 = vmatprep.subr.bf16.mxu0 %v2885
        %4267 = vmatpush1.bf16.msra.mxu0 %v2884
        %4268 = vmatprep.subr.bf16.mxu0 %v2889
        %4269 = vmatpush1.bf16.msra.mxu0 %v2888
        %4270 = vmatprep.subr.bf16.mxu0 %v2893
        %4271 = vmatpush1.bf16.msra.mxu0 %v2892
        %4272 = vmatprep.subr.bf16.mxu0 %v2897
        %4273 = vmatpush1.bf16.msra.mxu0 %v2896
        %4274 = vmatprep.subr.bf16.mxu0 %v2901
        %4275 = vmatpush1.bf16.msra.mxu0 %v2900
        %4276 = vmatprep.subr.bf16.mxu0 %v2905
        %4277 = vmatpush1.bf16.msra.mxu0 %v2904
        %4278 = vmatprep.subr.bf16.mxu0 %v2909
        %4279 = vmatpush1.bf16.msra.mxu0 %v2908
        %4280 = vmatprep.subr.bf16.mxu0 %v2913
        %4281 = vmatpush1.bf16.msra.mxu0 %v2912
        %4282 = vmatprep.subr.bf16.mxu0 %v2917
        %4283 = vmatpush1.bf16.msra.mxu0 %v2916
        %4284 = vmatprep.subr.bf16.mxu0 %v2921
        %4285 = vmatpush1.bf16.msra.mxu0 %v2920
        %4286 = vmatprep.subr.bf16.mxu0 %v2925
        %4287 = vmatpush1.bf16.msra.mxu0 %v2924
        %4288 = vmatprep.subr.bf16.mxu0 %v2929
        %4289 = vmatpush1.bf16.msra.mxu0 %v2928
        %4290 = vmatprep.subr.bf16.mxu0 %v2933
        %4291 = vmatpush1.bf16.msra.mxu0 %v2932
        %4292 = vmatprep.subr.bf16.mxu0 %v2937
        %4293 = vmatpush1.bf16.msra.mxu0 %v2936
        %4294 = vmatprep.mubr.bf16.mxu0 %v1023
        %4295 = vmatmul.mubr.bf16.gmra.mrb[0].mxu0 %v1022
        %v4296 = vpop.f32.mrb[0].mxu0
        %v4297 = vadd.f32 %v4256, %v4296
        %v4298 = vpop.f32.mrb[0].mxu0
        %v4299 = vadd.f32 %v4258, %v4298
        %v4300 = vpop.f32.mrb[0].mxu0
        %v4301 = vpop.f32.mrb[0].mxu0
        %4302 = vdwg.mxu0
        %4303 = vmatprep.subr.bf16.mxu0 %v2941
        %4304 = vmatpush1.bf16.msra.mxu0 %v2940
        %4305 = vmatprep.subr.bf16.mxu0 %v2945
        %4306 = vmatpush1.bf16.msra.mxu0 %v2944
        %4307 = vmatprep.subr.bf16.mxu0 %v2949
        %4308 = vmatpush1.bf16.msra.mxu0 %v2948
        %4309 = vmatprep.subr.bf16.mxu0 %v2953
        %4310 = vmatpush1.bf16.msra.mxu0 %v2952
        %4311 = vmatprep.subr.bf16.mxu0 %v2957
        %4312 = vmatpush1.bf16.msra.mxu0 %v2956
        %4313 = vmatprep.subr.bf16.mxu0 %v2961
        %4314 = vmatpush1.bf16.msra.mxu0 %v2960
        %4315 = vmatprep.subr.bf16.mxu0 %v2965
        %4316 = vmatpush1.bf16.msra.mxu0 %v2964
        %4317 = vmatprep.subr.bf16.mxu0 %v2969
        %4318 = vmatpush1.bf16.msra.mxu0 %v2968
        %4319 = vmatprep.subr.bf16.mxu0 %v2973
        %4320 = vmatpush1.bf16.msra.mxu0 %v2972
        %4321 = vmatprep.subr.bf16.mxu0 %v2977
        %4322 = vmatpush1.bf16.msra.mxu0 %v2976
        %4323 = vmatprep.subr.bf16.mxu0 %v2981
        %4324 = vmatpush1.bf16.msra.mxu0 %v2980
        %4325 = vmatprep.subr.bf16.mxu0 %v2985
        %4326 = vmatpush1.bf16.msra.mxu0 %v2984
        %4327 = vmatprep.subr.bf16.mxu0 %v2989
        %4328 = vmatpush1.bf16.msra.mxu0 %v2988
        %4329 = vmatprep.subr.bf16.mxu0 %v2993
        %4330 = vmatpush1.bf16.msra.mxu0 %v2992
        %4331 = vmatprep.subr.bf16.mxu0 %v2997
        %4332 = vmatpush1.bf16.msra.mxu0 %v2996
        %4333 = vmatprep.subr.bf16.mxu0 %v3001
        %4334 = vmatpush1.bf16.msra.mxu0 %v3000
        %4335 = vmatprep.mubr.bf16.mxu0 %v1025
        %4336 = vmatmul.mubr.bf16.gmra.mrb[0].mxu0 %v1024
        %v4337 = vpop.f32.mrb[0].mxu0
        %v4338 = vadd.f32 %v4297, %v4337
        %v4339 = vpop.f32.mrb[0].mxu0
        %v4340 = vadd.f32 %v4299, %v4339
        %v4341 = vpop.f32.mrb[0].mxu0
        %v4342 = vpop.f32.mrb[0].mxu0
        %4343 = vdwg.mxu0
        %4344 = vmatprep.subr.bf16.mxu0 %v3005
        %4345 = vmatpush1.bf16.msra.mxu0 %v3004
        %4346 = vmatprep.subr.bf16.mxu0 %v3009
        %4347 = vmatpush1.bf16.msra.mxu0 %v3008
        %4348 = vmatprep.subr.bf16.mxu0 %v3013
        %4349 = vmatpush1.bf16.msra.mxu0 %v3012
        %4350 = vmatprep.subr.bf16.mxu0 %v3017
        %4351 = vmatpush1.bf16.msra.mxu0 %v3016
        %4352 = vmatprep.subr.bf16.mxu0 %v3021
        %4353 = vmatpush1.bf16.msra.mxu0 %v3020
        %4354 = vmatprep.subr.bf16.mxu0 %v3025
        %4355 = vmatpush1.bf16.msra.mxu0 %v3024
        %4356 = vmatprep.subr.bf16.mxu0 %v3029
        %4357 = vmatpush1.bf16.msra.mxu0 %v3028
        %4358 = vmatprep.subr.bf16.mxu0 %v3033
        %4359 = vmatpush1.bf16.msra.mxu0 %v3032
        %4360 = vmatprep.subr.bf16.mxu0 %v3037
        %4361 = vmatpush1.bf16.msra.mxu0 %v3036
        %4362 = vmatprep.subr.bf16.mxu0 %v3041
        %4363 = vmatpush1.bf16.msra.mxu0 %v3040
        %4364 = vmatprep.subr.bf16.mxu0 %v3045
        %4365 = vmatpush1.bf16.msra.mxu0 %v3044
        %4366 = vmatprep.subr.bf16.mxu0 %v3049
        %4367 = vmatpush1.bf16.msra.mxu0 %v3048
        %4368 = vmatprep.subr.bf16.mxu0 %v3053
        %4369 = vmatpush1.bf16.msra.mxu0 %v3052
        %4370 = vmatprep.subr.bf16.mxu0 %v3057
        %4371 = vmatpush1.bf16.msra.mxu0 %v3056
        %4372 = vmatprep.subr.bf16.mxu0 %v3061
        %4373 = vmatpush1.bf16.msra.mxu0 %v3060
        %4374 = vmatprep.subr.bf16.mxu0 %v3065
        %4375 = vmatpush1.bf16.msra.mxu0 %v3064
        %4376 = vmatprep.mubr.bf16.mxu0 %v1027
        %4377 = vmatmul.mubr.bf16.gmra.mrb[0].mxu0 %v1026
        %v4378 = vpop.f32.mrb[0].mxu0
        %v4379 = vadd.f32 %v4338, %v4378
        %v4380 = vpop.f32.mrb[0].mxu0
        %v4381 = vadd.f32 %v4340, %v4380
        %v4382 = vpop.f32.mrb[0].mxu0
        %v4383 = vpop.f32.mrb[0].mxu0
        %4384 = vdwg.mxu0
        %4385 = vmatprep.subr.bf16.mxu0 %v3069
        %4386 = vmatpush1.bf16.msra.mxu0 %v3068
        %4387 = vmatprep.subr.bf16.mxu0 %v3073
        %4388 = vmatpush1.bf16.msra.mxu0 %v3072
        %4389 = vmatprep.subr.bf16.mxu0 %v3077
        %4390 = vmatpush1.bf16.msra.mxu0 %v3076
        %4391 = vmatprep.subr.bf16.mxu0 %v3081
        %4392 = vmatpush1.bf16.msra.mxu0 %v3080
        %4393 = vmatprep.subr.bf16.mxu0 %v3085
        %4394 = vmatpush1.bf16.msra.mxu0 %v3084
        %4395 = vmatprep.subr.bf16.mxu0 %v3089
        %4396 = vmatpush1.bf16.msra.mxu0 %v3088
        %4397 = vmatprep.subr.bf16.mxu0 %v3093
        %4398 = vmatpush1.bf16.msra.mxu0 %v3092
        %4399 = vmatprep.subr.bf16.mxu0 %v3097
        %4400 = vmatpush1.bf16.msra.mxu0 %v3096
        %4401 = vmatprep.subr.bf16.mxu0 %v3101
        %4402 = vmatpush1.bf16.msra.mxu0 %v3100
        %4403 = vmatprep.subr.bf16.mxu0 %v3105
        %4404 = vmatpush1.bf16.msra.mxu0 %v3104
        %4405 = vmatprep.subr.bf16.mxu0 %v3109
        %4406 = vmatpush1.bf16.msra.mxu0 %v3108
        %4407 = vmatprep.subr.bf16.mxu0 %v3113
        %4408 = vmatpush1.bf16.msra.mxu0 %v3112
        %4409 = vmatprep.subr.bf16.mxu0 %v3117
        %4410 = vmatpush1.bf16.msra.mxu0 %v3116
        %4411 = vmatprep.subr.bf16.mxu0 %v3121
        %4412 = vmatpush1.bf16.msra.mxu0 %v3120
        %4413 = vmatprep.subr.bf16.mxu0 %v3125
        %4414 = vmatpush1.bf16.msra.mxu0 %v3124
        %4415 = vmatprep.subr.bf16.mxu0 %v3129
        %4416 = vmatpush1.bf16.msra.mxu0 %v3128
        %4417 = vmatprep.mubr.bf16.mxu0 %v1029
        %4418 = vmatmul.mubr.bf16.gmra.mrb[0].mxu0 %v1028
        %v4419 = vpop.f32.mrb[0].mxu0
        %v4420 = vadd.f32 %v4379, %v4419
        %v4421 = vpop.f32.mrb[0].mxu0
        %v4422 = vadd.f32 %v4381, %v4421
        %v4423 = vpop.f32.mrb[0].mxu0
        %v4424 = vpop.f32.mrb[0].mxu0
        %4425 = vdwg.mxu0
        %4426 = vmatprep.subr.bf16.mxu0 %v3133
        %4427 = vmatpush1.bf16.msra.mxu0 %v3132
        %4428 = vmatprep.subr.bf16.mxu0 %v3137
        %4429 = vmatpush1.bf16.msra.mxu0 %v3136
        %4430 = vmatprep.subr.bf16.mxu0 %v3141
        %4431 = vmatpush1.bf16.msra.mxu0 %v3140
        %4432 = vmatprep.subr.bf16.mxu0 %v3145
        %4433 = vmatpush1.bf16.msra.mxu0 %v3144
        %4434 = vmatprep.subr.bf16.mxu0 %v3149
        %4435 = vmatpush1.bf16.msra.mxu0 %v3148
        %4436 = vmatprep.subr.bf16.mxu0 %v3153
        %4437 = vmatpush1.bf16.msra.mxu0 %v3152
        %4438 = vmatprep.subr.bf16.mxu0 %v3157
        %4439 = vmatpush1.bf16.msra.mxu0 %v3156
        %4440 = vmatprep.subr.bf16.mxu0 %v3161
        %4441 = vmatpush1.bf16.msra.mxu0 %v3160
        %4442 = vmatprep.subr.bf16.mxu0 %v3165
        %4443 = vmatpush1.bf16.msra.mxu0 %v3164
        %4444 = vmatprep.subr.bf16.mxu0 %v3169
        %4445 = vmatpush1.bf16.msra.mxu0 %v3168
        %4446 = vmatprep.subr.bf16.mxu0 %v3173
        %4447 = vmatpush1.bf16.msra.mxu0 %v3172
        %4448 = vmatprep.subr.bf16.mxu0 %v3177
        %4449 = vmatpush1.bf16.msra.mxu0 %v3176
        %4450 = vmatprep.subr.bf16.mxu0 %v3181
        %4451 = vmatpush1.bf16.msra.mxu0 %v3180
        %4452 = vmatprep.subr.bf16.mxu0 %v3185
        %4453 = vmatpush1.bf16.msra.mxu0 %v3184
        %4454 = vmatprep.subr.bf16.mxu0 %v3189
        %4455 = vmatpush1.bf16.msra.mxu0 %v3188
        %4456 = vmatprep.subr.bf16.mxu0 %v3193
        %4457 = vmatpush1.bf16.msra.mxu0 %v3192
        %4458 = vmatprep.mubr.bf16.mxu0 %v1031
        %4459 = vmatmul.mubr.bf16.gmra.mrb[0].mxu0 %v1030
        %v4460 = vpop.f32.mrb[0].mxu0
        %v4461 = vadd.f32 %v4420, %v4460
        %v4462 = vpop.f32.mrb[0].mxu0
        %v4463 = vadd.f32 %v4422, %v4462
        %v4464 = vpop.f32.mrb[0].mxu0
        %v4465 = vpop.f32.mrb[0].mxu0
        %4466 = vdwg.mxu0
        %4467 = vmatprep.subr.bf16.mxu0 %v3197
        %4468 = vmatpush1.bf16.msra.mxu0 %v3196
        %4469 = vmatprep.subr.bf16.mxu0 %v3201
        %4470 = vmatpush1.bf16.msra.mxu0 %v3200
        %4471 = vmatprep.subr.bf16.mxu0 %v3205
        %4472 = vmatpush1.bf16.msra.mxu0 %v3204
        %4473 = vmatprep.subr.bf16.mxu0 %v3209
        %4474 = vmatpush1.bf16.msra.mxu0 %v3208
        %4475 = vmatprep.subr.bf16.mxu0 %v3213
        %4476 = vmatpush1.bf16.msra.mxu0 %v3212
        %4477 = vmatprep.subr.bf16.mxu0 %v3217
        %4478 = vmatpush1.bf16.msra.mxu0 %v3216
        %4479 = vmatprep.subr.bf16.mxu0 %v3221
        %4480 = vmatpush1.bf16.msra.mxu0 %v3220
        %4481 = vmatprep.subr.bf16.mxu0 %v3225
        %4482 = vmatpush1.bf16.msra.mxu0 %v3224
        %4483 = vmatprep.subr.bf16.mxu0 0
        %4484 = vmatpush1.bf16.msra.mxu0 0
        %4485 = vmatprep.subr.bf16.mxu0 0
        %4486 = vmatpush1.bf16.msra.mxu0 0
        %4487 = vmatprep.subr.bf16.mxu0 0
        %4488 = vmatpush1.bf16.msra.mxu0 0
        %4489 = vmatprep.subr.bf16.mxu0 0
        %4490 = vmatpush1.bf16.msra.mxu0 0
        %4491 = vmatprep.subr.bf16.mxu0 0
        %4492 = vmatpush1.bf16.msra.mxu0 0
        %4493 = vmatprep.subr.bf16.mxu0 0
        %4494 = vmatpush1.bf16.msra.mxu0 0
        %4495 = vmatprep.subr.bf16.mxu0 0
        %4496 = vmatpush1.bf16.msra.mxu0 0
        %4497 = vmatprep.subr.bf16.mxu0 0
        %4498 = vmatpush1.bf16.msra.mxu0 0
        %4499 = vmatprep.mubr.bf16.mxu0 0
        %4500 = vmatmul.mubr.bf16.gmra.mrb[0].mxu0 %v1032
        %v4501 = vpop.f32.mrb[0].mxu0
        %v4502 = vadd.f32 %v4461, %v4501
        %v4503 = vpop.f32.mrb[0].mxu0
        %v4504 = vadd.f32 %v4463, %v4503
        %v4505 = vpop.f32.mrb[0].mxu0
        %v4506 = vpop.f32.mrb[0].mxu0
        %4507 = vdwg.mxu0
        %v4508 = vmax.f32 %v4133, 0.0
        %v4509 = vmax.f32 %v4135, 0.0
        %v4510 = vmax.f32 %v4502, 0.0
        %v4511 = vmax.f32 %v4504, 0.0
        %v4512 = vld [vmem:[#allocation2] sm:$0xff]
        %v4513 = vld [vmem:[#allocation2 + $0x8] sm:$0xff]
        %v4514 = vld [vmem:[#allocation2 + $0x10] sm:$0xff]
        %v4515 = vld [vmem:[#allocation2 + $0x18] sm:$0xff]
        %v4516 = vld [vmem:[#allocation2 + $0x20] sm:$0xff]
        %v4517 = vld [vmem:[#allocation2 + $0x28] sm:$0xff]
        %v4518 = vld [vmem:[#allocation2 + $0x30] sm:$0xff]
        %v4519 = vld [vmem:[#allocation2 + $0x38] sm:$0xff]
        %v4520 = vpack.c.bf16 %v4508, %v4508
        %v4521 = vpack.c.bf16 %v4509, %v4509
        %v4522 = vpack.c.bf16 %v4510, %v4510
        %v4523 = vpack.c.bf16 %v4511, %v4511
        %v4524 = vld [vmem:[%s355] sm:$0xff]
        %v4525 = vld [vmem:[%s355 + $0x8] sm:$0xff]
        %v4526 = vld [vmem:[%s355 + $0x10] sm:$0xff]
        %v4527 = vld [vmem:[%s355 + $0x18] sm:$0xff]
        %v4528 = vld [vmem:[%s355 + $0x20] sm:$0xff]
        %v4529 = vld [vmem:[%s355 + $0x28] sm:$0xff]
        %v4530 = vld [vmem:[%s355 + $0x30] sm:$0xff]
        %v4531 = vld [vmem:[%s355 + $0x38] sm:$0xff]
        %v4532 = vld [vmem:[%s355 + $0x40] sm:$0xff]
        %v4533 = vld [vmem:[%s355 + $0x48] sm:$0xff]
        %v4534 = vld [vmem:[%s355 + $0x50] sm:$0xff]
        %v4535 = vld [vmem:[%s355 + $0x58] sm:$0xff]
        %v4536 = vld [vmem:[%s355 + $0x60] sm:$0xff]
        %v4537 = vld [vmem:[%s355 + $0x68] sm:$0xff]
        %v4538 = vld [vmem:[%s355 + $0x70] sm:$0xff]
        %v4539 = vld [vmem:[%s355 + $0x78] sm:$0xff]
        %v4540 = vld [vmem:[%s355 + $0x80] sm:$0xff]
        %v4541 = vld [vmem:[%s355 + $0x88] sm:$0xff]
        %v4542 = vld [vmem:[%s355 + $0x90] sm:$0xff]
        %v4543 = vld [vmem:[%s355 + $0x98] sm:$0xff]
        %v4544 = vld [vmem:[%s355 + $0xa0] sm:$0xff]
        %v4545 = vld [vmem:[%s355 + $0xa8] sm:$0xff]
        %v4546 = vld [vmem:[%s355 + $0xb0] sm:$0xff]
        %v4547 = vld [vmem:[%s355 + $0xb8] sm:$0xff]
        %v4548 = vld [vmem:[%s355 + $0xc0] sm:$0xff]
        %v4549 = vld [vmem:[%s355 + $0xc8] sm:$0xff]
        %v4550 = vld [vmem:[%s355 + $0xd0] sm:$0xff]
        %v4551 = vld [vmem:[%s355 + $0xd8] sm:$0xff]
        %v4552 = vld [vmem:[%s355 + $0xe0] sm:$0xff]
        %v4553 = vld [vmem:[%s355 + $0xe8] sm:$0xff]
        %v4554 = vld [vmem:[%s355 + $0xf0] sm:$0xff]
        %v4555 = vld [vmem:[%s355 + $0xf8] sm:$0xff]
        %v4556 = vld [vmem:[%s355 + $0x100] sm:$0xff]
        %v4557 = vld [vmem:[%s355 + $0x108] sm:$0xff]
        %v4558 = vld [vmem:[%s355 + $0x110] sm:$0xff]
        %v4559 = vld [vmem:[%s355 + $0x118] sm:$0xff]
        %v4560 = vld [vmem:[%s355 + $0x120] sm:$0xff]
        %v4561 = vld [vmem:[%s355 + $0x128] sm:$0xff]
        %v4562 = vld [vmem:[%s355 + $0x130] sm:$0xff]
        %v4563 = vld [vmem:[%s355 + $0x138] sm:$0xff]
        %v4564 = vld [vmem:[%s355 + $0x140] sm:$0xff]
        %v4565 = vld [vmem:[%s355 + $0x148] sm:$0xff]
        %v4566 = vld [vmem:[%s355 + $0x150] sm:$0xff]
        %v4567 = vld [vmem:[%s355 + $0x158] sm:$0xff]
        %v4568 = vld [vmem:[%s355 + $0x160] sm:$0xff]
        %v4569 = vld [vmem:[%s355 + $0x168] sm:$0xff]
        %v4570 = vld [vmem:[%s355 + $0x170] sm:$0xff]
        %v4571 = vld [vmem:[%s355 + $0x178] sm:$0xff]
        %v4572 = vld [vmem:[%s355 + $0x180] sm:$0xff]
        %v4573 = vld [vmem:[%s355 + $0x188] sm:$0xff]
        %v4574 = vld [vmem:[%s355 + $0x190] sm:$0xff]
        %v4575 = vld [vmem:[%s355 + $0x198] sm:$0xff]
        %v4576 = vld [vmem:[%s355 + $0x1a0] sm:$0xff]
        %v4577 = vld [vmem:[%s355 + $0x1a8] sm:$0xff]
        %v4578 = vld [vmem:[%s355 + $0x1b0] sm:$0xff]
        %v4579 = vld [vmem:[%s355 + $0x1b8] sm:$0xff]
        %v4580 = vld [vmem:[%s355 + $0x1c0] sm:$0xff]
        %v4581 = vld [vmem:[%s355 + $0x1c8] sm:$0xff]
        %v4582 = vld [vmem:[%s355 + $0x1d0] sm:$0xff]
        %v4583 = vld [vmem:[%s355 + $0x1d8] sm:$0xff]
        %v4584 = vld [vmem:[%s355 + $0x1e0] sm:$0xff]
        %v4585 = vld [vmem:[%s355 + $0x1e8] sm:$0xff]
        %v4586 = vld [vmem:[%s355 + $0x1f0] sm:$0xff]
        %v4587 = vld [vmem:[%s355 + $0x1f8] sm:$0xff]
        %v4588 = vld [vmem:[%s355 + $0x200] sm:$0xff]
        %v4589 = vld [vmem:[%s355 + $0x208] sm:$0xff]
        %v4590 = vld [vmem:[%s355 + $0x210] sm:$0xff]
        %v4591 = vld [vmem:[%s355 + $0x218] sm:$0xff]
        %v4592 = vld [vmem:[%s355 + $0x220] sm:$0xff]
        %v4593 = vld [vmem:[%s355 + $0x228] sm:$0xff]
        %v4594 = vld [vmem:[%s355 + $0x230] sm:$0xff]
        %v4595 = vld [vmem:[%s355 + $0x238] sm:$0xff]
        %v4596 = vld [vmem:[%s355 + $0x240] sm:$0xff]
        %v4597 = vld [vmem:[%s355 + $0x248] sm:$0xff]
        %v4598 = vld [vmem:[%s355 + $0x250] sm:$0xff]
        %v4599 = vld [vmem:[%s355 + $0x258] sm:$0xff]
        %v4600 = vld [vmem:[%s355 + $0x260] sm:$0xff]
        %v4601 = vld [vmem:[%s355 + $0x268] sm:$0xff]
        %v4602 = vld [vmem:[%s355 + $0x270] sm:$0xff]
        %v4603 = vld [vmem:[%s355 + $0x278] sm:$0xff]
        %v4604 = vld [vmem:[%s355 + $0x280] sm:$0xff]
        %v4605 = vld [vmem:[%s355 + $0x288] sm:$0xff]
        %v4606 = vld [vmem:[%s355 + $0x290] sm:$0xff]
        %v4607 = vld [vmem:[%s355 + $0x298] sm:$0xff]
        %v4608 = vld [vmem:[%s355 + $0x2a0] sm:$0xff]
        %v4609 = vld [vmem:[%s355 + $0x2a8] sm:$0xff]
        %v4610 = vld [vmem:[%s355 + $0x2b0] sm:$0xff]
        %v4611 = vld [vmem:[%s355 + $0x2b8] sm:$0xff]
        %v4612 = vld [vmem:[%s355 + $0x2c0] sm:$0xff]
        %v4613 = vld [vmem:[%s355 + $0x2c8] sm:$0xff]
        %v4614 = vld [vmem:[%s355 + $0x2d0] sm:$0xff]
        %v4615 = vld [vmem:[%s355 + $0x2d8] sm:$0xff]
        %v4616 = vld [vmem:[%s355 + $0x2e0] sm:$0xff]
        %v4617 = vld [vmem:[%s355 + $0x2e8] sm:$0xff]
        %v4618 = vld [vmem:[%s355 + $0x2f0] sm:$0xff]
        %v4619 = vld [vmem:[%s355 + $0x2f8] sm:$0xff]
        %v4620 = vld [vmem:[%s355 + $0x300] sm:$0xff]
        %v4621 = vld [vmem:[%s355 + $0x308] sm:$0xff]
        %v4622 = vld [vmem:[%s355 + $0x310] sm:$0xff]
        %v4623 = vld [vmem:[%s355 + $0x318] sm:$0xff]
        %v4624 = vld [vmem:[%s355 + $0x320] sm:$0xff]
        %v4625 = vld [vmem:[%s355 + $0x328] sm:$0xff]
        %v4626 = vld [vmem:[%s355 + $0x330] sm:$0xff]
        %v4627 = vld [vmem:[%s355 + $0x338] sm:$0xff]
        %v4628 = vld [vmem:[%s355 + $0x340] sm:$0xff]
        %v4629 = vld [vmem:[%s355 + $0x348] sm:$0xff]
        %v4630 = vld [vmem:[%s355 + $0x350] sm:$0xff]
        %v4631 = vld [vmem:[%s355 + $0x358] sm:$0xff]
        %v4632 = vld [vmem:[%s355 + $0x360] sm:$0xff]
        %v4633 = vld [vmem:[%s355 + $0x368] sm:$0xff]
        %v4634 = vld [vmem:[%s355 + $0x370] sm:$0xff]
        %v4635 = vld [vmem:[%s355 + $0x378] sm:$0xff]
        %v4636 = vld [vmem:[%s355 + $0x380] sm:$0xff]
        %v4637 = vld [vmem:[%s355 + $0x388] sm:$0xff]
        %v4638 = vld [vmem:[%s355 + $0x390] sm:$0xff]
        %v4639 = vld [vmem:[%s355 + $0x398] sm:$0xff]
        %v4640 = vld [vmem:[%s355 + $0x3a0] sm:$0xff]
        %v4641 = vld [vmem:[%s355 + $0x3a8] sm:$0xff]
        %v4642 = vld [vmem:[%s355 + $0x3b0] sm:$0xff]
        %v4643 = vld [vmem:[%s355 + $0x3b8] sm:$0xff]
        %v4644 = vld [vmem:[%s355 + $0x3c0] sm:$0xff]
        %v4645 = vld [vmem:[%s355 + $0x3c8] sm:$0xff]
        %v4646 = vld [vmem:[%s355 + $0x3d0] sm:$0xff]
        %v4647 = vld [vmem:[%s355 + $0x3d8] sm:$0xff]
        %v4648 = vld [vmem:[%s355 + $0x3e0] sm:$0xff]
        %v4649 = vld [vmem:[%s355 + $0x3e8] sm:$0xff]
        %v4650 = vld [vmem:[%s355 + $0x3f0] sm:$0xff]
        %v4651 = vld [vmem:[%s355 + $0x3f8] sm:$0xff]
        %v4652 = vld [vmem:[%s355 + $0x400] sm:$0xff]
        %v4653 = vld [vmem:[%s355 + $0x408] sm:$0xff]
        %v4654 = vld [vmem:[%s355 + $0x410] sm:$0xff]
        %v4655 = vld [vmem:[%s355 + $0x418] sm:$0xff]
        %v4656 = vld [vmem:[%s355 + $0x420] sm:$0xff]
        %v4657 = vld [vmem:[%s355 + $0x428] sm:$0xff]
        %v4658 = vld [vmem:[%s355 + $0x430] sm:$0xff]
        %v4659 = vld [vmem:[%s355 + $0x438] sm:$0xff]
        %v4660 = vld [vmem:[%s355 + $0x440] sm:$0xff]
        %v4661 = vld [vmem:[%s355 + $0x448] sm:$0xff]
        %v4662 = vld [vmem:[%s355 + $0x450] sm:$0xff]
        %v4663 = vld [vmem:[%s355 + $0x458] sm:$0xff]
        %v4664 = vld [vmem:[%s355 + $0x460] sm:$0xff]
        %v4665 = vld [vmem:[%s355 + $0x468] sm:$0xff]
        %v4666 = vld [vmem:[%s355 + $0x470] sm:$0xff]
        %v4667 = vld [vmem:[%s355 + $0x478] sm:$0xff]
        %v4668 = vld [vmem:[%s355 + $0x480] sm:$0xff]
        %v4669 = vld [vmem:[%s355 + $0x488] sm:$0xff]
        %v4670 = vld [vmem:[%s355 + $0x490] sm:$0xff]
        %v4671 = vld [vmem:[%s355 + $0x498] sm:$0xff]
        %v4672 = vld [vmem:[%s355 + $0x4a0] sm:$0xff]
        %v4673 = vld [vmem:[%s355 + $0x4a8] sm:$0xff]
        %v4674 = vld [vmem:[%s355 + $0x4b0] sm:$0xff]
        %v4675 = vld [vmem:[%s355 + $0x4b8] sm:$0xff]
        %v4676 = vld [vmem:[%s355 + $0x4c0] sm:$0xff]
        %v4677 = vld [vmem:[%s355 + $0x4c8] sm:$0xff]
        %v4678 = vld [vmem:[%s355 + $0x4d0] sm:$0xff]
        %v4679 = vld [vmem:[%s355 + $0x4d8] sm:$0xff]
        %v4680 = vld [vmem:[%s355 + $0x4e0] sm:$0xff]
        %v4681 = vld [vmem:[%s355 + $0x4e8] sm:$0xff]
        %v4682 = vld [vmem:[%s355 + $0x4f0] sm:$0xff]
        %v4683 = vld [vmem:[%s355 + $0x4f8] sm:$0xff]
        %v4684 = vld [vmem:[%s355 + $0x500] sm:$0xff]
        %v4685 = vld [vmem:[%s355 + $0x508] sm:$0xff]
        %v4686 = vld [vmem:[%s355 + $0x510] sm:$0xff]
        %v4687 = vld [vmem:[%s355 + $0x518] sm:$0xff]
        %v4688 = vld [vmem:[%s355 + $0x520] sm:$0xff]
        %v4689 = vld [vmem:[%s355 + $0x528] sm:$0xff]
        %v4690 = vld [vmem:[%s355 + $0x530] sm:$0xff]
        %v4691 = vld [vmem:[%s355 + $0x538] sm:$0xff]
        %v4692 = vld [vmem:[%s355 + $0x540] sm:$0xff]
        %v4693 = vld [vmem:[%s355 + $0x548] sm:$0xff]
        %v4694 = vld [vmem:[%s355 + $0x550] sm:$0xff]
        %v4695 = vld [vmem:[%s355 + $0x558] sm:$0xff]
        %v4696 = vld [vmem:[%s355 + $0x560] sm:$0xff]
        %v4697 = vld [vmem:[%s355 + $0x568] sm:$0xff]
        %v4698 = vld [vmem:[%s355 + $0x570] sm:$0xff]
        %v4699 = vld [vmem:[%s355 + $0x578] sm:$0xff]
        %v4700 = vld [vmem:[%s355 + $0x580] sm:$0xff]
        %v4701 = vld [vmem:[%s355 + $0x588] sm:$0xff]
        %v4702 = vld [vmem:[%s355 + $0x590] sm:$0xff]
        %v4703 = vld [vmem:[%s355 + $0x598] sm:$0xff]
        %v4704 = vld [vmem:[%s355 + $0x5a0] sm:$0xff]
        %v4705 = vld [vmem:[%s355 + $0x5a8] sm:$0xff]
        %v4706 = vld [vmem:[%s355 + $0x5b0] sm:$0xff]
        %v4707 = vld [vmem:[%s355 + $0x5b8] sm:$0xff]
        %v4708 = vld [vmem:[%s355 + $0x5c0] sm:$0xff]
        %v4709 = vld [vmem:[%s355 + $0x5c8] sm:$0xff]
        %v4710 = vld [vmem:[%s355 + $0x5d0] sm:$0xff]
        %v4711 = vld [vmem:[%s355 + $0x5d8] sm:$0xff]
        %v4712 = vld [vmem:[%s355 + $0x5e0] sm:$0xff]
        %v4713 = vld [vmem:[%s355 + $0x5e8] sm:$0xff]
        %v4714 = vld [vmem:[%s355 + $0x5f0] sm:$0xff]
        %v4715 = vld [vmem:[%s355 + $0x5f8] sm:$0xff]
        %v4716 = vld [vmem:[%s355 + $0x600] sm:$0xff]
        %v4717 = vld [vmem:[%s355 + $0x608] sm:$0xff]
        %v4718 = vld [vmem:[%s355 + $0x610] sm:$0xff]
        %v4719 = vld [vmem:[%s355 + $0x618] sm:$0xff]
        %v4720 = vld [vmem:[%s355 + $0x620] sm:$0xff]
        %v4721 = vld [vmem:[%s355 + $0x628] sm:$0xff]
        %v4722 = vld [vmem:[%s355 + $0x630] sm:$0xff]
        %v4723 = vld [vmem:[%s355 + $0x638] sm:$0xff]
        %v4724 = vld [vmem:[%s355 + $0x640] sm:$0xff]
        %v4725 = vld [vmem:[%s355 + $0x648] sm:$0xff]
        %v4726 = vld [vmem:[%s355 + $0x650] sm:$0xff]
        %v4727 = vld [vmem:[%s355 + $0x658] sm:$0xff]
        %v4728 = vld [vmem:[%s355 + $0x660] sm:$0xff]
        %v4729 = vld [vmem:[%s355 + $0x668] sm:$0xff]
        %v4730 = vld [vmem:[%s355 + $0x670] sm:$0xff]
        %v4731 = vld [vmem:[%s355 + $0x678] sm:$0xff]
        %v4732 = vld [vmem:[%s355 + $0x680] sm:$0xff]
        %v4733 = vld [vmem:[%s355 + $0x688] sm:$0xff]
        %v4734 = vld [vmem:[%s355 + $0x690] sm:$0xff]
        %v4735 = vld [vmem:[%s355 + $0x698] sm:$0xff]
        %v4736 = vld [vmem:[%s355 + $0x6a0] sm:$0xff]
        %v4737 = vld [vmem:[%s355 + $0x6a8] sm:$0xff]
        %v4738 = vld [vmem:[%s355 + $0x6b0] sm:$0xff]
        %v4739 = vld [vmem:[%s355 + $0x6b8] sm:$0xff]
        %v4740 = vld [vmem:[%s355 + $0x6c0] sm:$0xff]
        %v4741 = vld [vmem:[%s355 + $0x6c8] sm:$0xff]
        %v4742 = vld [vmem:[%s355 + $0x6d0] sm:$0xff]
        %v4743 = vld [vmem:[%s355 + $0x6d8] sm:$0xff]
        %v4744 = vld [vmem:[%s355 + $0x6e0] sm:$0xff]
        %v4745 = vld [vmem:[%s355 + $0x6e8] sm:$0xff]
        %v4746 = vld [vmem:[%s355 + $0x6f0] sm:$0xff]
        %v4747 = vld [vmem:[%s355 + $0x6f8] sm:$0xff]
        %v4748 = vld [vmem:[%s355 + $0x700] sm:$0xff]
        %v4749 = vld [vmem:[%s355 + $0x708] sm:$0xff]
        %v4750 = vld [vmem:[%s355 + $0x710] sm:$0xff]
        %v4751 = vld [vmem:[%s355 + $0x718] sm:$0xff]
        %v4752 = vld [vmem:[%s355 + $0x720] sm:$0xff]
        %v4753 = vld [vmem:[%s355 + $0x728] sm:$0xff]
        %v4754 = vld [vmem:[%s355 + $0x730] sm:$0xff]
        %v4755 = vld [vmem:[%s355 + $0x738] sm:$0xff]
        %v4756 = vld [vmem:[%s355 + $0x740] sm:$0xff]
        %v4757 = vld [vmem:[%s355 + $0x748] sm:$0xff]
        %v4758 = vld [vmem:[%s355 + $0x750] sm:$0xff]
        %v4759 = vld [vmem:[%s355 + $0x758] sm:$0xff]
        %v4760 = vld [vmem:[%s355 + $0x760] sm:$0xff]
        %v4761 = vld [vmem:[%s355 + $0x768] sm:$0xff]
        %v4762 = vld [vmem:[%s355 + $0x770] sm:$0xff]
        %v4763 = vld [vmem:[%s355 + $0x778] sm:$0xff]
        %v4764 = vld [vmem:[%s355 + $0x780] sm:$0xff]
        %v4765 = vld [vmem:[%s355 + $0x788] sm:$0xff]
        %v4766 = vld [vmem:[%s355 + $0x790] sm:$0xff]
        %v4767 = vld [vmem:[%s355 + $0x798] sm:$0xff]
        %v4768 = vld [vmem:[%s355 + $0x7a0] sm:$0xff]
        %v4769 = vld [vmem:[%s355 + $0x7a8] sm:$0xff]
        %v4770 = vld [vmem:[%s355 + $0x7b0] sm:$0xff]
        %v4771 = vld [vmem:[%s355 + $0x7b8] sm:$0xff]
        %v4772 = vld [vmem:[%s355 + $0x7c0] sm:$0xff]
        %v4773 = vld [vmem:[%s355 + $0x7c8] sm:$0xff]
        %v4774 = vld [vmem:[%s355 + $0x7d0] sm:$0xff]
        %v4775 = vld [vmem:[%s355 + $0x7d8] sm:$0xff]
        %v4776 = vld [vmem:[%s355 + $0x7e0] sm:$0xff]
        %v4777 = vld [vmem:[%s355 + $0x7e8] sm:$0xff]
        %v4778 = vld [vmem:[%s355 + $0x7f0] sm:$0xff]
        %v4779 = vld [vmem:[%s355 + $0x7f8] sm:$0xff]
        %v5036 = vunpack.c.l.b16 %v4524
        %v5037 = vunpack.c.h.b16 %v4524
        %v5038 = vunpack.c.l.b16 %v4525
        %v5039 = vunpack.c.h.b16 %v4525
        %v5040 = vunpack.c.l.b16 %v4526
        %v5041 = vunpack.c.h.b16 %v4526
        %v5042 = vunpack.c.l.b16 %v4527
        %v5043 = vunpack.c.h.b16 %v4527
        %v5044 = vunpack.c.l.b16 %v4528
        %v5045 = vunpack.c.h.b16 %v4528
        %v5046 = vunpack.c.l.b16 %v4529
        %v5047 = vunpack.c.h.b16 %v4529
        %v5048 = vunpack.c.l.b16 %v4530
        %v5049 = vunpack.c.h.b16 %v4530
        %v5050 = vunpack.c.l.b16 %v4531
        %v5051 = vunpack.c.h.b16 %v4531
        %v5052 = vunpack.c.l.b16 %v4532
        %v5053 = vunpack.c.h.b16 %v4532
        %v5054 = vunpack.c.l.b16 %v4533
        %v5055 = vunpack.c.h.b16 %v4533
        %v5056 = vunpack.c.l.b16 %v4534
        %v5057 = vunpack.c.h.b16 %v4534
        %v5058 = vunpack.c.l.b16 %v4535
        %v5059 = vunpack.c.h.b16 %v4535
        %v5060 = vunpack.c.l.b16 %v4536
        %v5061 = vunpack.c.h.b16 %v4536
        %v5062 = vunpack.c.l.b16 %v4537
        %v5063 = vunpack.c.h.b16 %v4537
        %v5064 = vunpack.c.l.b16 %v4538
        %v5065 = vunpack.c.h.b16 %v4538
        %v5066 = vunpack.c.l.b16 %v4539
        %v5067 = vunpack.c.h.b16 %v4539
        %v5068 = vunpack.c.l.b16 %v4540
        %v5069 = vunpack.c.h.b16 %v4540
        %v5070 = vunpack.c.l.b16 %v4541
        %v5071 = vunpack.c.h.b16 %v4541
        %v5072 = vunpack.c.l.b16 %v4542
        %v5073 = vunpack.c.h.b16 %v4542
        %v5074 = vunpack.c.l.b16 %v4543
        %v5075 = vunpack.c.h.b16 %v4543
        %v5076 = vunpack.c.l.b16 %v4544
        %v5077 = vunpack.c.h.b16 %v4544
        %v5078 = vunpack.c.l.b16 %v4545
        %v5079 = vunpack.c.h.b16 %v4545
        %v5080 = vunpack.c.l.b16 %v4546
        %v5081 = vunpack.c.h.b16 %v4546
        %v5082 = vunpack.c.l.b16 %v4547
        %v5083 = vunpack.c.h.b16 %v4547
        %v5084 = vunpack.c.l.b16 %v4548
        %v5085 = vunpack.c.h.b16 %v4548
        %v5086 = vunpack.c.l.b16 %v4549
        %v5087 = vunpack.c.h.b16 %v4549
        %v5088 = vunpack.c.l.b16 %v4550
        %v5089 = vunpack.c.h.b16 %v4550
        %v5090 = vunpack.c.l.b16 %v4551
        %v5091 = vunpack.c.h.b16 %v4551
        %v5092 = vunpack.c.l.b16 %v4552
        %v5093 = vunpack.c.h.b16 %v4552
        %v5094 = vunpack.c.l.b16 %v4553
        %v5095 = vunpack.c.h.b16 %v4553
        %v5096 = vunpack.c.l.b16 %v4554
        %v5097 = vunpack.c.h.b16 %v4554
        %v5098 = vunpack.c.l.b16 %v4555
        %v5099 = vunpack.c.h.b16 %v4555
        %v5100 = vunpack.c.l.b16 %v4556
        %v5101 = vunpack.c.h.b16 %v4556
        %v5102 = vunpack.c.l.b16 %v4557
        %v5103 = vunpack.c.h.b16 %v4557
        %v5104 = vunpack.c.l.b16 %v4558
        %v5105 = vunpack.c.h.b16 %v4558
        %v5106 = vunpack.c.l.b16 %v4559
        %v5107 = vunpack.c.h.b16 %v4559
        %v5108 = vunpack.c.l.b16 %v4560
        %v5109 = vunpack.c.h.b16 %v4560
        %v5110 = vunpack.c.l.b16 %v4561
        %v5111 = vunpack.c.h.b16 %v4561
        %v5112 = vunpack.c.l.b16 %v4562
        %v5113 = vunpack.c.h.b16 %v4562
        %v5114 = vunpack.c.l.b16 %v4563
        %v5115 = vunpack.c.h.b16 %v4563
        %v5116 = vunpack.c.l.b16 %v4564
        %v5117 = vunpack.c.h.b16 %v4564
        %v5118 = vunpack.c.l.b16 %v4565
        %v5119 = vunpack.c.h.b16 %v4565
        %v5120 = vunpack.c.l.b16 %v4566
        %v5121 = vunpack.c.h.b16 %v4566
        %v5122 = vunpack.c.l.b16 %v4567
        %v5123 = vunpack.c.h.b16 %v4567
        %v5124 = vunpack.c.l.b16 %v4568
        %v5125 = vunpack.c.h.b16 %v4568
        %v5126 = vunpack.c.l.b16 %v4569
        %v5127 = vunpack.c.h.b16 %v4569
        %v5128 = vunpack.c.l.b16 %v4570
        %v5129 = vunpack.c.h.b16 %v4570
        %v5130 = vunpack.c.l.b16 %v4571
        %v5131 = vunpack.c.h.b16 %v4571
        %v5132 = vunpack.c.l.b16 %v4572
        %v5133 = vunpack.c.h.b16 %v4572
        %v5134 = vunpack.c.l.b16 %v4573
        %v5135 = vunpack.c.h.b16 %v4573
        %v5136 = vunpack.c.l.b16 %v4574
        %v5137 = vunpack.c.h.b16 %v4574
        %v5138 = vunpack.c.l.b16 %v4575
        %v5139 = vunpack.c.h.b16 %v4575
        %v5140 = vunpack.c.l.b16 %v4576
        %v5141 = vunpack.c.h.b16 %v4576
        %v5142 = vunpack.c.l.b16 %v4577
        %v5143 = vunpack.c.h.b16 %v4577
        %v5144 = vunpack.c.l.b16 %v4578
        %v5145 = vunpack.c.h.b16 %v4578
        %v5146 = vunpack.c.l.b16 %v4579
        %v5147 = vunpack.c.h.b16 %v4579
        %v5148 = vunpack.c.l.b16 %v4580
        %v5149 = vunpack.c.h.b16 %v4580
        %v5150 = vunpack.c.l.b16 %v4581
        %v5151 = vunpack.c.h.b16 %v4581
        %v5152 = vunpack.c.l.b16 %v4582
        %v5153 = vunpack.c.h.b16 %v4582
        %v5154 = vunpack.c.l.b16 %v4583
        %v5155 = vunpack.c.h.b16 %v4583
        %v5156 = vunpack.c.l.b16 %v4584
        %v5157 = vunpack.c.h.b16 %v4584
        %v5158 = vunpack.c.l.b16 %v4585
        %v5159 = vunpack.c.h.b16 %v4585
        %v5160 = vunpack.c.l.b16 %v4586
        %v5161 = vunpack.c.h.b16 %v4586
        %v5162 = vunpack.c.l.b16 %v4587
        %v5163 = vunpack.c.h.b16 %v4587
        %v5164 = vunpack.c.l.b16 %v4588
        %v5165 = vunpack.c.h.b16 %v4588
        %v5166 = vunpack.c.l.b16 %v4589
        %v5167 = vunpack.c.h.b16 %v4589
        %v5168 = vunpack.c.l.b16 %v4590
        %v5169 = vunpack.c.h.b16 %v4590
        %v5170 = vunpack.c.l.b16 %v4591
        %v5171 = vunpack.c.h.b16 %v4591
        %v5172 = vunpack.c.l.b16 %v4592
        %v5173 = vunpack.c.h.b16 %v4592
        %v5174 = vunpack.c.l.b16 %v4593
        %v5175 = vunpack.c.h.b16 %v4593
        %v5176 = vunpack.c.l.b16 %v4594
        %v5177 = vunpack.c.h.b16 %v4594
        %v5178 = vunpack.c.l.b16 %v4595
        %v5179 = vunpack.c.h.b16 %v4595
        %v5180 = vunpack.c.l.b16 %v4596
        %v5181 = vunpack.c.h.b16 %v4596
        %v5182 = vunpack.c.l.b16 %v4597
        %v5183 = vunpack.c.h.b16 %v4597
        %v5184 = vunpack.c.l.b16 %v4598
        %v5185 = vunpack.c.h.b16 %v4598
        %v5186 = vunpack.c.l.b16 %v4599
        %v5187 = vunpack.c.h.b16 %v4599
        %v5188 = vunpack.c.l.b16 %v4600
        %v5189 = vunpack.c.h.b16 %v4600
        %v5190 = vunpack.c.l.b16 %v4601
        %v5191 = vunpack.c.h.b16 %v4601
        %v5192 = vunpack.c.l.b16 %v4602
        %v5193 = vunpack.c.h.b16 %v4602
        %v5194 = vunpack.c.l.b16 %v4603
        %v5195 = vunpack.c.h.b16 %v4603
        %v5196 = vunpack.c.l.b16 %v4604
        %v5197 = vunpack.c.h.b16 %v4604
        %v5198 = vunpack.c.l.b16 %v4605
        %v5199 = vunpack.c.h.b16 %v4605
        %v5200 = vunpack.c.l.b16 %v4606
        %v5201 = vunpack.c.h.b16 %v4606
        %v5202 = vunpack.c.l.b16 %v4607
        %v5203 = vunpack.c.h.b16 %v4607
        %v5204 = vunpack.c.l.b16 %v4608
        %v5205 = vunpack.c.h.b16 %v4608
        %v5206 = vunpack.c.l.b16 %v4609
        %v5207 = vunpack.c.h.b16 %v4609
        %v5208 = vunpack.c.l.b16 %v4610
        %v5209 = vunpack.c.h.b16 %v4610
        %v5210 = vunpack.c.l.b16 %v4611
        %v5211 = vunpack.c.h.b16 %v4611
        %v5212 = vunpack.c.l.b16 %v4612
        %v5213 = vunpack.c.h.b16 %v4612
        %v5214 = vunpack.c.l.b16 %v4613
        %v5215 = vunpack.c.h.b16 %v4613
        %v5216 = vunpack.c.l.b16 %v4614
        %v5217 = vunpack.c.h.b16 %v4614
        %v5218 = vunpack.c.l.b16 %v4615
        %v5219 = vunpack.c.h.b16 %v4615
        %v5220 = vunpack.c.l.b16 %v4616
        %v5221 = vunpack.c.h.b16 %v4616
        %v5222 = vunpack.c.l.b16 %v4617
        %v5223 = vunpack.c.h.b16 %v4617
        %v5224 = vunpack.c.l.b16 %v4618
        %v5225 = vunpack.c.h.b16 %v4618
        %v5226 = vunpack.c.l.b16 %v4619
        %v5227 = vunpack.c.h.b16 %v4619
        %v5228 = vunpack.c.l.b16 %v4620
        %v5229 = vunpack.c.h.b16 %v4620
        %v5230 = vunpack.c.l.b16 %v4621
        %v5231 = vunpack.c.h.b16 %v4621
        %v5232 = vunpack.c.l.b16 %v4622
        %v5233 = vunpack.c.h.b16 %v4622
        %v5234 = vunpack.c.l.b16 %v4623
        %v5235 = vunpack.c.h.b16 %v4623
        %v5236 = vunpack.c.l.b16 %v4624
        %v5237 = vunpack.c.h.b16 %v4624
        %v5238 = vunpack.c.l.b16 %v4625
        %v5239 = vunpack.c.h.b16 %v4625
        %v5240 = vunpack.c.l.b16 %v4626
        %v5241 = vunpack.c.h.b16 %v4626
        %v5242 = vunpack.c.l.b16 %v4627
        %v5243 = vunpack.c.h.b16 %v4627
        %v5244 = vunpack.c.l.b16 %v4628
        %v5245 = vunpack.c.h.b16 %v4628
        %v5246 = vunpack.c.l.b16 %v4629
        %v5247 = vunpack.c.h.b16 %v4629
        %v5248 = vunpack.c.l.b16 %v4630
        %v5249 = vunpack.c.h.b16 %v4630
        %v5250 = vunpack.c.l.b16 %v4631
        %v5251 = vunpack.c.h.b16 %v4631
        %v5252 = vunpack.c.l.b16 %v4632
        %v5253 = vunpack.c.h.b16 %v4632
        %v5254 = vunpack.c.l.b16 %v4633
        %v5255 = vunpack.c.h.b16 %v4633
        %v5256 = vunpack.c.l.b16 %v4634
        %v5257 = vunpack.c.h.b16 %v4634
        %v5258 = vunpack.c.l.b16 %v4635
        %v5259 = vunpack.c.h.b16 %v4635
        %v5260 = vunpack.c.l.b16 %v4636
        %v5261 = vunpack.c.h.b16 %v4636
        %v5262 = vunpack.c.l.b16 %v4637
        %v5263 = vunpack.c.h.b16 %v4637
        %v5264 = vunpack.c.l.b16 %v4638
        %v5265 = vunpack.c.h.b16 %v4638
        %v5266 = vunpack.c.l.b16 %v4639
        %v5267 = vunpack.c.h.b16 %v4639
        %v5268 = vunpack.c.l.b16 %v4640
        %v5269 = vunpack.c.h.b16 %v4640
        %v5270 = vunpack.c.l.b16 %v4641
        %v5271 = vunpack.c.h.b16 %v4641
        %v5272 = vunpack.c.l.b16 %v4642
        %v5273 = vunpack.c.h.b16 %v4642
        %v5274 = vunpack.c.l.b16 %v4643
        %v5275 = vunpack.c.h.b16 %v4643
        %v5276 = vunpack.c.l.b16 %v4644
        %v5277 = vunpack.c.h.b16 %v4644
        %v5278 = vunpack.c.l.b16 %v4645
        %v5279 = vunpack.c.h.b16 %v4645
        %v5280 = vunpack.c.l.b16 %v4646
        %v5281 = vunpack.c.h.b16 %v4646
        %v5282 = vunpack.c.l.b16 %v4647
        %v5283 = vunpack.c.h.b16 %v4647
        %v5284 = vunpack.c.l.b16 %v4648
        %v5285 = vunpack.c.h.b16 %v4648
        %v5286 = vunpack.c.l.b16 %v4649
        %v5287 = vunpack.c.h.b16 %v4649
        %v5288 = vunpack.c.l.b16 %v4650
        %v5289 = vunpack.c.h.b16 %v4650
        %v5290 = vunpack.c.l.b16 %v4651
        %v5291 = vunpack.c.h.b16 %v4651
        %v5292 = vunpack.c.l.b16 %v4652
        %v5293 = vunpack.c.h.b16 %v4652
        %v5294 = vunpack.c.l.b16 %v4653
        %v5295 = vunpack.c.h.b16 %v4653
        %v5296 = vunpack.c.l.b16 %v4654
        %v5297 = vunpack.c.h.b16 %v4654
        %v5298 = vunpack.c.l.b16 %v4655
        %v5299 = vunpack.c.h.b16 %v4655
        %v5300 = vunpack.c.l.b16 %v4656
        %v5301 = vunpack.c.h.b16 %v4656
        %v5302 = vunpack.c.l.b16 %v4657
        %v5303 = vunpack.c.h.b16 %v4657
        %v5304 = vunpack.c.l.b16 %v4658
        %v5305 = vunpack.c.h.b16 %v4658
        %v5306 = vunpack.c.l.b16 %v4659
        %v5307 = vunpack.c.h.b16 %v4659
        %v5308 = vunpack.c.l.b16 %v4660
        %v5309 = vunpack.c.h.b16 %v4660
        %v5310 = vunpack.c.l.b16 %v4661
        %v5311 = vunpack.c.h.b16 %v4661
        %v5312 = vunpack.c.l.b16 %v4662
        %v5313 = vunpack.c.h.b16 %v4662
        %v5314 = vunpack.c.l.b16 %v4663
        %v5315 = vunpack.c.h.b16 %v4663
        %v5316 = vunpack.c.l.b16 %v4664
        %v5317 = vunpack.c.h.b16 %v4664
        %v5318 = vunpack.c.l.b16 %v4665
        %v5319 = vunpack.c.h.b16 %v4665
        %v5320 = vunpack.c.l.b16 %v4666
        %v5321 = vunpack.c.h.b16 %v4666
        %v5322 = vunpack.c.l.b16 %v4667
        %v5323 = vunpack.c.h.b16 %v4667
        %v5324 = vunpack.c.l.b16 %v4668
        %v5325 = vunpack.c.h.b16 %v4668
        %v5326 = vunpack.c.l.b16 %v4669
        %v5327 = vunpack.c.h.b16 %v4669
        %v5328 = vunpack.c.l.b16 %v4670
        %v5329 = vunpack.c.h.b16 %v4670
        %v5330 = vunpack.c.l.b16 %v4671
        %v5331 = vunpack.c.h.b16 %v4671
        %v5332 = vunpack.c.l.b16 %v4672
        %v5333 = vunpack.c.h.b16 %v4672
        %v5334 = vunpack.c.l.b16 %v4673
        %v5335 = vunpack.c.h.b16 %v4673
        %v5336 = vunpack.c.l.b16 %v4674
        %v5337 = vunpack.c.h.b16 %v4674
        %v5338 = vunpack.c.l.b16 %v4675
        %v5339 = vunpack.c.h.b16 %v4675
        %v5340 = vunpack.c.l.b16 %v4676
        %v5341 = vunpack.c.h.b16 %v4676
        %v5342 = vunpack.c.l.b16 %v4677
        %v5343 = vunpack.c.h.b16 %v4677
        %v5344 = vunpack.c.l.b16 %v4678
        %v5345 = vunpack.c.h.b16 %v4678
        %v5346 = vunpack.c.l.b16 %v4679
        %v5347 = vunpack.c.h.b16 %v4679
        %v5348 = vunpack.c.l.b16 %v4680
        %v5349 = vunpack.c.h.b16 %v4680
        %v5350 = vunpack.c.l.b16 %v4681
        %v5351 = vunpack.c.h.b16 %v4681
        %v5352 = vunpack.c.l.b16 %v4682
        %v5353 = vunpack.c.h.b16 %v4682
        %v5354 = vunpack.c.l.b16 %v4683
        %v5355 = vunpack.c.h.b16 %v4683
        %v5356 = vunpack.c.l.b16 %v4684
        %v5357 = vunpack.c.h.b16 %v4684
        %v5358 = vunpack.c.l.b16 %v4685
        %v5359 = vunpack.c.h.b16 %v4685
        %v5360 = vunpack.c.l.b16 %v4686
        %v5361 = vunpack.c.h.b16 %v4686
        %v5362 = vunpack.c.l.b16 %v4687
        %v5363 = vunpack.c.h.b16 %v4687
        %v5364 = vunpack.c.l.b16 %v4688
        %v5365 = vunpack.c.h.b16 %v4688
        %v5366 = vunpack.c.l.b16 %v4689
        %v5367 = vunpack.c.h.b16 %v4689
        %v5368 = vunpack.c.l.b16 %v4690
        %v5369 = vunpack.c.h.b16 %v4690
        %v5370 = vunpack.c.l.b16 %v4691
        %v5371 = vunpack.c.h.b16 %v4691
        %v5372 = vunpack.c.l.b16 %v4692
        %v5373 = vunpack.c.h.b16 %v4692
        %v5374 = vunpack.c.l.b16 %v4693
        %v5375 = vunpack.c.h.b16 %v4693
        %v5376 = vunpack.c.l.b16 %v4694
        %v5377 = vunpack.c.h.b16 %v4694
        %v5378 = vunpack.c.l.b16 %v4695
        %v5379 = vunpack.c.h.b16 %v4695
        %v5380 = vunpack.c.l.b16 %v4696
        %v5381 = vunpack.c.h.b16 %v4696
        %v5382 = vunpack.c.l.b16 %v4697
        %v5383 = vunpack.c.h.b16 %v4697
        %v5384 = vunpack.c.l.b16 %v4698
        %v5385 = vunpack.c.h.b16 %v4698
        %v5386 = vunpack.c.l.b16 %v4699
        %v5387 = vunpack.c.h.b16 %v4699
        %v5388 = vunpack.c.l.b16 %v4700
        %v5389 = vunpack.c.h.b16 %v4700
        %v5390 = vunpack.c.l.b16 %v4701
        %v5391 = vunpack.c.h.b16 %v4701
        %v5392 = vunpack.c.l.b16 %v4702
        %v5393 = vunpack.c.h.b16 %v4702
        %v5394 = vunpack.c.l.b16 %v4703
        %v5395 = vunpack.c.h.b16 %v4703
        %v5396 = vunpack.c.l.b16 %v4704
        %v5397 = vunpack.c.h.b16 %v4704
        %v5398 = vunpack.c.l.b16 %v4705
        %v5399 = vunpack.c.h.b16 %v4705
        %v5400 = vunpack.c.l.b16 %v4706
        %v5401 = vunpack.c.h.b16 %v4706
        %v5402 = vunpack.c.l.b16 %v4707
        %v5403 = vunpack.c.h.b16 %v4707
        %v5404 = vunpack.c.l.b16 %v4708
        %v5405 = vunpack.c.h.b16 %v4708
        %v5406 = vunpack.c.l.b16 %v4709
        %v5407 = vunpack.c.h.b16 %v4709
        %v5408 = vunpack.c.l.b16 %v4710
        %v5409 = vunpack.c.h.b16 %v4710
        %v5410 = vunpack.c.l.b16 %v4711
        %v5411 = vunpack.c.h.b16 %v4711
        %v5412 = vunpack.c.l.b16 %v4712
        %v5413 = vunpack.c.h.b16 %v4712
        %v5414 = vunpack.c.l.b16 %v4713
        %v5415 = vunpack.c.h.b16 %v4713
        %v5416 = vunpack.c.l.b16 %v4714
        %v5417 = vunpack.c.h.b16 %v4714
        %v5418 = vunpack.c.l.b16 %v4715
        %v5419 = vunpack.c.h.b16 %v4715
        %v5420 = vunpack.c.l.b16 %v4716
        %v5421 = vunpack.c.h.b16 %v4716
        %v5422 = vunpack.c.l.b16 %v4717
        %v5423 = vunpack.c.h.b16 %v4717
        %v5424 = vunpack.c.l.b16 %v4718
        %v5425 = vunpack.c.h.b16 %v4718
        %v5426 = vunpack.c.l.b16 %v4719
        %v5427 = vunpack.c.h.b16 %v4719
        %v5428 = vunpack.c.l.b16 %v4720
        %v5429 = vunpack.c.h.b16 %v4720
        %v5430 = vunpack.c.l.b16 %v4721
        %v5431 = vunpack.c.h.b16 %v4721
        %v5432 = vunpack.c.l.b16 %v4722
        %v5433 = vunpack.c.h.b16 %v4722
        %v5434 = vunpack.c.l.b16 %v4723
        %v5435 = vunpack.c.h.b16 %v4723
        %v5436 = vunpack.c.l.b16 %v4724
        %v5437 = vunpack.c.h.b16 %v4724
        %v5438 = vunpack.c.l.b16 %v4725
        %v5439 = vunpack.c.h.b16 %v4725
        %v5440 = vunpack.c.l.b16 %v4726
        %v5441 = vunpack.c.h.b16 %v4726
        %v5442 = vunpack.c.l.b16 %v4727
        %v5443 = vunpack.c.h.b16 %v4727
        %v5444 = vunpack.c.l.b16 %v4728
        %v5445 = vunpack.c.h.b16 %v4728
        %v5446 = vunpack.c.l.b16 %v4729
        %v5447 = vunpack.c.h.b16 %v4729
        %v5448 = vunpack.c.l.b16 %v4730
        %v5449 = vunpack.c.h.b16 %v4730
        %v5450 = vunpack.c.l.b16 %v4731
        %v5451 = vunpack.c.h.b16 %v4731
        %v5452 = vunpack.c.l.b16 %v4732
        %v5453 = vunpack.c.h.b16 %v4732
        %v5454 = vunpack.c.l.b16 %v4733
        %v5455 = vunpack.c.h.b16 %v4733
        %v5456 = vunpack.c.l.b16 %v4734
        %v5457 = vunpack.c.h.b16 %v4734
        %v5458 = vunpack.c.l.b16 %v4735
        %v5459 = vunpack.c.h.b16 %v4735
        %v5460 = vunpack.c.l.b16 %v4736
        %v5461 = vunpack.c.h.b16 %v4736
        %v5462 = vunpack.c.l.b16 %v4737
        %v5463 = vunpack.c.h.b16 %v4737
        %v5464 = vunpack.c.l.b16 %v4738
        %v5465 = vunpack.c.h.b16 %v4738
        %v5466 = vunpack.c.l.b16 %v4739
        %v5467 = vunpack.c.h.b16 %v4739
        %v5468 = vunpack.c.l.b16 %v4740
        %v5469 = vunpack.c.h.b16 %v4740
        %v5470 = vunpack.c.l.b16 %v4741
        %v5471 = vunpack.c.h.b16 %v4741
        %v5472 = vunpack.c.l.b16 %v4742
        %v5473 = vunpack.c.h.b16 %v4742
        %v5474 = vunpack.c.l.b16 %v4743
        %v5475 = vunpack.c.h.b16 %v4743
        %v5476 = vunpack.c.l.b16 %v4744
        %v5477 = vunpack.c.h.b16 %v4744
        %v5478 = vunpack.c.l.b16 %v4745
        %v5479 = vunpack.c.h.b16 %v4745
        %v5480 = vunpack.c.l.b16 %v4746
        %v5481 = vunpack.c.h.b16 %v4746
        %v5482 = vunpack.c.l.b16 %v4747
        %v5483 = vunpack.c.h.b16 %v4747
        %v5484 = vunpack.c.l.b16 %v4748
        %v5485 = vunpack.c.h.b16 %v4748
        %v5486 = vunpack.c.l.b16 %v4749
        %v5487 = vunpack.c.h.b16 %v4749
        %v5488 = vunpack.c.l.b16 %v4750
        %v5489 = vunpack.c.h.b16 %v4750
        %v5490 = vunpack.c.l.b16 %v4751
        %v5491 = vunpack.c.h.b16 %v4751
        %v5492 = vunpack.c.l.b16 %v4752
        %v5493 = vunpack.c.h.b16 %v4752
        %v5494 = vunpack.c.l.b16 %v4753
        %v5495 = vunpack.c.h.b16 %v4753
        %v5496 = vunpack.c.l.b16 %v4754
        %v5497 = vunpack.c.h.b16 %v4754
        %v5498 = vunpack.c.l.b16 %v4755
        %v5499 = vunpack.c.h.b16 %v4755
        %v5500 = vunpack.c.l.b16 %v4756
        %v5501 = vunpack.c.h.b16 %v4756
        %v5502 = vunpack.c.l.b16 %v4757
        %v5503 = vunpack.c.h.b16 %v4757
        %v5504 = vunpack.c.l.b16 %v4758
        %v5505 = vunpack.c.h.b16 %v4758
        %v5506 = vunpack.c.l.b16 %v4759
        %v5507 = vunpack.c.h.b16 %v4759
        %v5508 = vunpack.c.l.b16 %v4760
        %v5509 = vunpack.c.h.b16 %v4760
        %v5510 = vunpack.c.l.b16 %v4761
        %v5511 = vunpack.c.h.b16 %v4761
        %v5512 = vunpack.c.l.b16 %v4762
        %v5513 = vunpack.c.h.b16 %v4762
        %v5514 = vunpack.c.l.b16 %v4763
        %v5515 = vunpack.c.h.b16 %v4763
        %v5516 = vunpack.c.l.b16 %v4764
        %v5517 = vunpack.c.h.b16 %v4764
        %v5518 = vunpack.c.l.b16 %v4765
        %v5519 = vunpack.c.h.b16 %v4765
        %v5520 = vunpack.c.l.b16 %v4766
        %v5521 = vunpack.c.h.b16 %v4766
        %v5522 = vunpack.c.l.b16 %v4767
        %v5523 = vunpack.c.h.b16 %v4767
        %v5524 = vunpack.c.l.b16 %v4768
        %v5525 = vunpack.c.h.b16 %v4768
        %v5526 = vunpack.c.l.b16 %v4769
        %v5527 = vunpack.c.h.b16 %v4769
        %v5528 = vunpack.c.l.b16 %v4770
        %v5529 = vunpack.c.h.b16 %v4770
        %v5530 = vunpack.c.l.b16 %v4771
        %v5531 = vunpack.c.h.b16 %v4771
        %v5532 = vunpack.c.l.b16 %v4772
        %v5533 = vunpack.c.h.b16 %v4772
        %v5534 = vunpack.c.l.b16 %v4773
        %v5535 = vunpack.c.h.b16 %v4773
        %v5536 = vunpack.c.l.b16 %v4774
        %v5537 = vunpack.c.h.b16 %v4774
        %v5538 = vunpack.c.l.b16 %v4775
        %v5539 = vunpack.c.h.b16 %v4775
        %v5540 = vunpack.c.l.b16 %v4776
        %v5541 = vunpack.c.h.b16 %v4776
        %v5542 = vunpack.c.l.b16 %v4777
        %v5543 = vunpack.c.h.b16 %v4777
        %v5544 = vunpack.c.l.b16 %v4778
        %v5545 = vunpack.c.h.b16 %v4778
        %v5546 = vunpack.c.l.b16 %v4779
        %v5547 = vunpack.c.h.b16 %v4779
        %v5548 = vpack.c.b16 %v5044, %v5036
        %v5549 = vpack.c.b16 %v5045, %v5037
        %v5550 = vpack.c.b16 %v5046, %v5038
        %v5551 = vpack.c.b16 %v5047, %v5039
        %v5552 = vpack.c.b16 %v5048, %v5040
        %v5553 = vpack.c.b16 %v5049, %v5041
        %v5554 = vpack.c.b16 %v5050, %v5042
        %v5555 = vpack.c.b16 %v5051, %v5043
        %v5556 = vpack.c.b16 %v5060, %v5052
        %v5557 = vpack.c.b16 %v5061, %v5053
        %v5558 = vpack.c.b16 %v5062, %v5054
        %v5559 = vpack.c.b16 %v5063, %v5055
        %v5560 = vpack.c.b16 %v5064, %v5056
        %v5561 = vpack.c.b16 %v5065, %v5057
        %v5562 = vpack.c.b16 %v5066, %v5058
        %v5563 = vpack.c.b16 %v5067, %v5059
        %v5564 = vpack.c.b16 %v5076, %v5068
        %v5565 = vpack.c.b16 %v5077, %v5069
        %v5566 = vpack.c.b16 %v5078, %v5070
        %v5567 = vpack.c.b16 %v5079, %v5071
        %v5568 = vpack.c.b16 %v5080, %v5072
        %v5569 = vpack.c.b16 %v5081, %v5073
        %v5570 = vpack.c.b16 %v5082, %v5074
        %v5571 = vpack.c.b16 %v5083, %v5075
        %v5572 = vpack.c.b16 %v5092, %v5084
        %v5573 = vpack.c.b16 %v5093, %v5085
        %v5574 = vpack.c.b16 %v5094, %v5086
        %v5575 = vpack.c.b16 %v5095, %v5087
        %v5576 = vpack.c.b16 %v5096, %v5088
        %v5577 = vpack.c.b16 %v5097, %v5089
        %v5578 = vpack.c.b16 %v5098, %v5090
        %v5579 = vpack.c.b16 %v5099, %v5091
        %v5580 = vpack.c.b16 %v5108, %v5100
        %v5581 = vpack.c.b16 %v5109, %v5101
        %v5582 = vpack.c.b16 %v5110, %v5102
        %v5583 = vpack.c.b16 %v5111, %v5103
        %v5584 = vpack.c.b16 %v5112, %v5104
        %v5585 = vpack.c.b16 %v5113, %v5105
        %v5586 = vpack.c.b16 %v5114, %v5106
        %v5587 = vpack.c.b16 %v5115, %v5107
        %v5588 = vpack.c.b16 %v5124, %v5116
        %v5589 = vpack.c.b16 %v5125, %v5117
        %v5590 = vpack.c.b16 %v5126, %v5118
        %v5591 = vpack.c.b16 %v5127, %v5119
        %v5592 = vpack.c.b16 %v5128, %v5120
        %v5593 = vpack.c.b16 %v5129, %v5121
        %v5594 = vpack.c.b16 %v5130, %v5122
        %v5595 = vpack.c.b16 %v5131, %v5123
        %v5596 = vpack.c.b16 %v5140, %v5132
        %v5597 = vpack.c.b16 %v5141, %v5133
        %v5598 = vpack.c.b16 %v5142, %v5134
        %v5599 = vpack.c.b16 %v5143, %v5135
        %v5600 = vpack.c.b16 %v5144, %v5136
        %v5601 = vpack.c.b16 %v5145, %v5137
        %v5602 = vpack.c.b16 %v5146, %v5138
        %v5603 = vpack.c.b16 %v5147, %v5139
        %v5604 = vpack.c.b16 %v5156, %v5148
        %v5605 = vpack.c.b16 %v5157, %v5149
        %v5606 = vpack.c.b16 %v5158, %v5150
        %v5607 = vpack.c.b16 %v5159, %v5151
        %v5608 = vpack.c.b16 %v5160, %v5152
        %v5609 = vpack.c.b16 %v5161, %v5153
        %v5610 = vpack.c.b16 %v5162, %v5154
        %v5611 = vpack.c.b16 %v5163, %v5155
        %v5612 = vpack.c.b16 %v5172, %v5164
        %v5613 = vpack.c.b16 %v5173, %v5165
        %v5614 = vpack.c.b16 %v5174, %v5166
        %v5615 = vpack.c.b16 %v5175, %v5167
        %v5616 = vpack.c.b16 %v5176, %v5168
        %v5617 = vpack.c.b16 %v5177, %v5169
        %v5618 = vpack.c.b16 %v5178, %v5170
        %v5619 = vpack.c.b16 %v5179, %v5171
        %v5620 = vpack.c.b16 %v5188, %v5180
        %v5621 = vpack.c.b16 %v5189, %v5181
        %v5622 = vpack.c.b16 %v5190, %v5182
        %v5623 = vpack.c.b16 %v5191, %v5183
        %v5624 = vpack.c.b16 %v5192, %v5184
        %v5625 = vpack.c.b16 %v5193, %v5185
        %v5626 = vpack.c.b16 %v5194, %v5186
        %v5627 = vpack.c.b16 %v5195, %v5187
        %v5628 = vpack.c.b16 %v5204, %v5196
        %v5629 = vpack.c.b16 %v5205, %v5197
        %v5630 = vpack.c.b16 %v5206, %v5198
        %v5631 = vpack.c.b16 %v5207, %v5199
        %v5632 = vpack.c.b16 %v5208, %v5200
        %v5633 = vpack.c.b16 %v5209, %v5201
        %v5634 = vpack.c.b16 %v5210, %v5202
        %v5635 = vpack.c.b16 %v5211, %v5203
        %v5636 = vpack.c.b16 %v5220, %v5212
        %v5637 = vpack.c.b16 %v5221, %v5213
        %v5638 = vpack.c.b16 %v5222, %v5214
        %v5639 = vpack.c.b16 %v5223, %v5215
        %v5640 = vpack.c.b16 %v5224, %v5216
        %v5641 = vpack.c.b16 %v5225, %v5217
        %v5642 = vpack.c.b16 %v5226, %v5218
        %v5643 = vpack.c.b16 %v5227, %v5219
        %v5644 = vpack.c.b16 %v5236, %v5228
        %v5645 = vpack.c.b16 %v5237, %v5229
        %v5646 = vpack.c.b16 %v5238, %v5230
        %v5647 = vpack.c.b16 %v5239, %v5231
        %v5648 = vpack.c.b16 %v5240, %v5232
        %v5649 = vpack.c.b16 %v5241, %v5233
        %v5650 = vpack.c.b16 %v5242, %v5234
        %v5651 = vpack.c.b16 %v5243, %v5235
        %v5652 = vpack.c.b16 %v5252, %v5244
        %v5653 = vpack.c.b16 %v5253, %v5245
        %v5654 = vpack.c.b16 %v5254, %v5246
        %v5655 = vpack.c.b16 %v5255, %v5247
        %v5656 = vpack.c.b16 %v5256, %v5248
        %v5657 = vpack.c.b16 %v5257, %v5249
        %v5658 = vpack.c.b16 %v5258, %v5250
        %v5659 = vpack.c.b16 %v5259, %v5251
        %v5660 = vpack.c.b16 %v5268, %v5260
        %v5661 = vpack.c.b16 %v5269, %v5261
        %v5662 = vpack.c.b16 %v5270, %v5262
        %v5663 = vpack.c.b16 %v5271, %v5263
        %v5664 = vpack.c.b16 %v5272, %v5264
        %v5665 = vpack.c.b16 %v5273, %v5265
        %v5666 = vpack.c.b16 %v5274, %v5266
        %v5667 = vpack.c.b16 %v5275, %v5267
        %v5668 = vpack.c.b16 %v5284, %v5276
        %v5669 = vpack.c.b16 %v5285, %v5277
        %v5670 = vpack.c.b16 %v5286, %v5278
        %v5671 = vpack.c.b16 %v5287, %v5279
        %v5672 = vpack.c.b16 %v5288, %v5280
        %v5673 = vpack.c.b16 %v5289, %v5281
        %v5674 = vpack.c.b16 %v5290, %v5282
        %v5675 = vpack.c.b16 %v5291, %v5283
        %v5676 = vpack.c.b16 %v5300, %v5292
        %v5677 = vpack.c.b16 %v5301, %v5293
        %v5678 = vpack.c.b16 %v5302, %v5294
        %v5679 = vpack.c.b16 %v5303, %v5295
        %v5680 = vpack.c.b16 %v5304, %v5296
        %v5681 = vpack.c.b16 %v5305, %v5297
        %v5682 = vpack.c.b16 %v5306, %v5298
        %v5683 = vpack.c.b16 %v5307, %v5299
        %v5684 = vpack.c.b16 %v5316, %v5308
        %v5685 = vpack.c.b16 %v5317, %v5309
        %v5686 = vpack.c.b16 %v5318, %v5310
        %v5687 = vpack.c.b16 %v5319, %v5311
        %v5688 = vpack.c.b16 %v5320, %v5312
        %v5689 = vpack.c.b16 %v5321, %v5313
        %v5690 = vpack.c.b16 %v5322, %v5314
        %v5691 = vpack.c.b16 %v5323, %v5315
        %v5692 = vpack.c.b16 %v5332, %v5324
        %v5693 = vpack.c.b16 %v5333, %v5325
        %v5694 = vpack.c.b16 %v5334, %v5326
        %v5695 = vpack.c.b16 %v5335, %v5327
        %v5696 = vpack.c.b16 %v5336, %v5328
        %v5697 = vpack.c.b16 %v5337, %v5329
        %v5698 = vpack.c.b16 %v5338, %v5330
        %v5699 = vpack.c.b16 %v5339, %v5331
        %v5700 = vpack.c.b16 %v5348, %v5340
        %v5701 = vpack.c.b16 %v5349, %v5341
        %v5702 = vpack.c.b16 %v5350, %v5342
        %v5703 = vpack.c.b16 %v5351, %v5343
        %v5704 = vpack.c.b16 %v5352, %v5344
        %v5705 = vpack.c.b16 %v5353, %v5345
        %v5706 = vpack.c.b16 %v5354, %v5346
        %v5707 = vpack.c.b16 %v5355, %v5347
        %v5708 = vpack.c.b16 %v5364, %v5356
        %v5709 = vpack.c.b16 %v5365, %v5357
        %v5710 = vpack.c.b16 %v5366, %v5358
        %v5711 = vpack.c.b16 %v5367, %v5359
        %v5712 = vpack.c.b16 %v5368, %v5360
        %v5713 = vpack.c.b16 %v5369, %v5361
        %v5714 = vpack.c.b16 %v5370, %v5362
        %v5715 = vpack.c.b16 %v5371, %v5363
        %v5716 = vpack.c.b16 %v5380, %v5372
        %v5717 = vpack.c.b16 %v5381, %v5373
        %v5718 = vpack.c.b16 %v5382, %v5374
        %v5719 = vpack.c.b16 %v5383, %v5375
        %v5720 = vpack.c.b16 %v5384, %v5376
        %v5721 = vpack.c.b16 %v5385, %v5377
        %v5722 = vpack.c.b16 %v5386, %v5378
        %v5723 = vpack.c.b16 %v5387, %v5379
        %v5724 = vpack.c.b16 %v5396, %v5388
        %v5725 = vpack.c.b16 %v5397, %v5389
        %v5726 = vpack.c.b16 %v5398, %v5390
        %v5727 = vpack.c.b16 %v5399, %v5391
        %v5728 = vpack.c.b16 %v5400, %v5392
        %v5729 = vpack.c.b16 %v5401, %v5393
        %v5730 = vpack.c.b16 %v5402, %v5394
        %v5731 = vpack.c.b16 %v5403, %v5395
        %v5732 = vpack.c.b16 %v5412, %v5404
        %v5733 = vpack.c.b16 %v5413, %v5405
        %v5734 = vpack.c.b16 %v5414, %v5406
        %v5735 = vpack.c.b16 %v5415, %v5407
        %v5736 = vpack.c.b16 %v5416, %v5408
        %v5737 = vpack.c.b16 %v5417, %v5409
        %v5738 = vpack.c.b16 %v5418, %v5410
        %v5739 = vpack.c.b16 %v5419, %v5411
        %v5740 = vpack.c.b16 %v5428, %v5420
        %v5741 = vpack.c.b16 %v5429, %v5421
        %v5742 = vpack.c.b16 %v5430, %v5422
        %v5743 = vpack.c.b16 %v5431, %v5423
        %v5744 = vpack.c.b16 %v5432, %v5424
        %v5745 = vpack.c.b16 %v5433, %v5425
        %v5746 = vpack.c.b16 %v5434, %v5426
        %v5747 = vpack.c.b16 %v5435, %v5427
        %v5748 = vpack.c.b16 %v5444, %v5436
        %v5749 = vpack.c.b16 %v5445, %v5437
        %v5750 = vpack.c.b16 %v5446, %v5438
        %v5751 = vpack.c.b16 %v5447, %v5439
        %v5752 = vpack.c.b16 %v5448, %v5440
        %v5753 = vpack.c.b16 %v5449, %v5441
        %v5754 = vpack.c.b16 %v5450, %v5442
        %v5755 = vpack.c.b16 %v5451, %v5443
        %v5756 = vpack.c.b16 %v5460, %v5452
        %v5757 = vpack.c.b16 %v5461, %v5453
        %v5758 = vpack.c.b16 %v5462, %v5454
        %v5759 = vpack.c.b16 %v5463, %v5455
        %v5760 = vpack.c.b16 %v5464, %v5456
        %v5761 = vpack.c.b16 %v5465, %v5457
        %v5762 = vpack.c.b16 %v5466, %v5458
        %v5763 = vpack.c.b16 %v5467, %v5459
        %v5764 = vpack.c.b16 %v5476, %v5468
        %v5765 = vpack.c.b16 %v5477, %v5469
        %v5766 = vpack.c.b16 %v5478, %v5470
        %v5767 = vpack.c.b16 %v5479, %v5471
        %v5768 = vpack.c.b16 %v5480, %v5472
        %v5769 = vpack.c.b16 %v5481, %v5473
        %v5770 = vpack.c.b16 %v5482, %v5474
        %v5771 = vpack.c.b16 %v5483, %v5475
        %v5772 = vpack.c.b16 %v5492, %v5484
        %v5773 = vpack.c.b16 %v5493, %v5485
        %v5774 = vpack.c.b16 %v5494, %v5486
        %v5775 = vpack.c.b16 %v5495, %v5487
        %v5776 = vpack.c.b16 %v5496, %v5488
        %v5777 = vpack.c.b16 %v5497, %v5489
        %v5778 = vpack.c.b16 %v5498, %v5490
        %v5779 = vpack.c.b16 %v5499, %v5491
        %v5780 = vpack.c.b16 %v5508, %v5500
        %v5781 = vpack.c.b16 %v5509, %v5501
        %v5782 = vpack.c.b16 %v5510, %v5502
        %v5783 = vpack.c.b16 %v5511, %v5503
        %v5784 = vpack.c.b16 %v5512, %v5504
        %v5785 = vpack.c.b16 %v5513, %v5505
        %v5786 = vpack.c.b16 %v5514, %v5506
        %v5787 = vpack.c.b16 %v5515, %v5507
        %v5788 = vpack.c.b16 %v5524, %v5516
        %v5789 = vpack.c.b16 %v5525, %v5517
        %v5790 = vpack.c.b16 %v5526, %v5518
        %v5791 = vpack.c.b16 %v5527, %v5519
        %v5792 = vpack.c.b16 %v5528, %v5520
        %v5793 = vpack.c.b16 %v5529, %v5521
        %v5794 = vpack.c.b16 %v5530, %v5522
        %v5795 = vpack.c.b16 %v5531, %v5523
        %v5796 = vpack.c.b16 %v5540, %v5532
        %v5797 = vpack.c.b16 %v5541, %v5533
        %v5798 = vpack.c.b16 %v5542, %v5534
        %v5799 = vpack.c.b16 %v5543, %v5535
        %v5800 = vpack.c.b16 %v5544, %v5536
        %v5801 = vpack.c.b16 %v5545, %v5537
        %v5802 = vpack.c.b16 %v5546, %v5538
        %v5803 = vpack.c.b16 %v5547, %v5539
        %6060 = vmatprep.subr.bf16.mxu0 %v5549
        %6061 = vmatpush1.bf16.msra.mxu0 %v5548
        %6062 = vmatprep.subr.bf16.mxu0 %v5557
        %6063 = vmatpush1.bf16.msra.mxu0 %v5556
        %6064 = vmatprep.subr.bf16.mxu0 %v5565
        %6065 = vmatpush1.bf16.msra.mxu0 %v5564
        %6066 = vmatprep.subr.bf16.mxu0 %v5573
        %6067 = vmatpush1.bf16.msra.mxu0 %v5572
        %6068 = vmatprep.subr.bf16.mxu0 %v5581
        %6069 = vmatpush1.bf16.msra.mxu0 %v5580
        %6070 = vmatprep.subr.bf16.mxu0 %v5589
        %6071 = vmatpush1.bf16.msra.mxu0 %v5588
        %6072 = vmatprep.subr.bf16.mxu0 %v5597
        %6073 = vmatpush1.bf16.msra.mxu0 %v5596
        %6074 = vmatprep.subr.bf16.mxu0 %v5605
        %6075 = vmatpush1.bf16.msra.mxu0 %v5604
        %6076 = vmatprep.subr.bf16.mxu0 %v5613
        %6077 = vmatpush1.bf16.msra.mxu0 %v5612
        %6078 = vmatprep.subr.bf16.mxu0 %v5621
        %6079 = vmatpush1.bf16.msra.mxu0 %v5620
        %6080 = vmatprep.subr.bf16.mxu0 %v5629
        %6081 = vmatpush1.bf16.msra.mxu0 %v5628
        %6082 = vmatprep.subr.bf16.mxu0 %v5637
        %6083 = vmatpush1.bf16.msra.mxu0 %v5636
        %6084 = vmatprep.subr.bf16.mxu0 %v5645
        %6085 = vmatpush1.bf16.msra.mxu0 %v5644
        %6086 = vmatprep.subr.bf16.mxu0 %v5653
        %6087 = vmatpush1.bf16.msra.mxu0 %v5652
        %6088 = vmatprep.subr.bf16.mxu0 %v5661
        %6089 = vmatpush1.bf16.msra.mxu0 %v5660
        %6090 = vmatprep.subr.bf16.mxu0 %v5669
        %6091 = vmatpush1.bf16.msra.mxu0 %v5668
        %6092 = vmatprep.mubr.bf16.mxu0 %v4521
        %6093 = vmatmul.mubr.bf16.gmra.mrb[0].mxu0 %v4520
        %v6094 = vpop.f32.mrb[0].mxu0
        %v6095 = vadd.f32 0.0, %v6094
        %v6096 = vpop.f32.mrb[0].mxu0
        %v6097 = vadd.f32 0.0, %v6096
        %v6098 = vpop.f32.mrb[0].mxu0
        %v6099 = vpop.f32.mrb[0].mxu0
        %6100 = vdwg.mxu0
        %6101 = vmatprep.subr.bf16.mxu0 %v5677
        %6102 = vmatpush1.bf16.msra.mxu0 %v5676
        %6103 = vmatprep.subr.bf16.mxu0 %v5685
        %6104 = vmatpush1.bf16.msra.mxu0 %v5684
        %6105 = vmatprep.subr.bf16.mxu0 %v5693
        %6106 = vmatpush1.bf16.msra.mxu0 %v5692
        %6107 = vmatprep.subr.bf16.mxu0 %v5701
        %6108 = vmatpush1.bf16.msra.mxu0 %v5700
        %6109 = vmatprep.subr.bf16.mxu0 %v5709
        %6110 = vmatpush1.bf16.msra.mxu0 %v5708
        %6111 = vmatprep.subr.bf16.mxu0 %v5717
        %6112 = vmatpush1.bf16.msra.mxu0 %v5716
        %6113 = vmatprep.subr.bf16.mxu0 %v5725
        %6114 = vmatpush1.bf16.msra.mxu0 %v5724
        %6115 = vmatprep.subr.bf16.mxu0 %v5733
        %6116 = vmatpush1.bf16.msra.mxu0 %v5732
        %6117 = vmatprep.subr.bf16.mxu0 %v5741
        %6118 = vmatpush1.bf16.msra.mxu0 %v5740
        %6119 = vmatprep.subr.bf16.mxu0 %v5749
        %6120 = vmatpush1.bf16.msra.mxu0 %v5748
        %6121 = vmatprep.subr.bf16.mxu0 %v5757
        %6122 = vmatpush1.bf16.msra.mxu0 %v5756
        %6123 = vmatprep.subr.bf16.mxu0 %v5765
        %6124 = vmatpush1.bf16.msra.mxu0 %v5764
        %6125 = vmatprep.subr.bf16.mxu0 %v5773
        %6126 = vmatpush1.bf16.msra.mxu0 %v5772
        %6127 = vmatprep.subr.bf16.mxu0 %v5781
        %6128 = vmatpush1.bf16.msra.mxu0 %v5780
        %6129 = vmatprep.subr.bf16.mxu0 %v5789
        %6130 = vmatpush1.bf16.msra.mxu0 %v5788
        %6131 = vmatprep.subr.bf16.mxu0 %v5797
        %6132 = vmatpush1.bf16.msra.mxu0 %v5796
        %6133 = vmatprep.mubr.bf16.mxu0 %v4523
        %6134 = vmatmul.mubr.bf16.gmra.mrb[0].mxu0 %v4522
        %v6135 = vpop.f32.mrb[0].mxu0
        %v6136 = vadd.f32 %v6095, %v6135
        %v6137 = vpop.f32.mrb[0].mxu0
        %v6138 = vadd.f32 %v6097, %v6137
        %v6139 = vpop.f32.mrb[0].mxu0
        %v6140 = vpop.f32.mrb[0].mxu0
        %6141 = vdwg.mxu0
        %6142 = vmatprep.subr.bf16.mxu0 %v5551
        %6143 = vmatpush1.bf16.msra.mxu0 %v5550
        %6144 = vmatprep.subr.bf16.mxu0 %v5559
        %6145 = vmatpush1.bf16.msra.mxu0 %v5558
        %6146 = vmatprep.subr.bf16.mxu0 %v5567
        %6147 = vmatpush1.bf16.msra.mxu0 %v5566
        %6148 = vmatprep.subr.bf16.mxu0 %v5575
        %6149 = vmatpush1.bf16.msra.mxu0 %v5574
        %6150 = vmatprep.subr.bf16.mxu0 %v5583
        %6151 = vmatpush1.bf16.msra.mxu0 %v5582
        %6152 = vmatprep.subr.bf16.mxu0 %v5591
        %6153 = vmatpush1.bf16.msra.mxu0 %v5590
        %6154 = vmatprep.subr.bf16.mxu0 %v5599
        %6155 = vmatpush1.bf16.msra.mxu0 %v5598
        %6156 = vmatprep.subr.bf16.mxu0 %v5607
        %6157 = vmatpush1.bf16.msra.mxu0 %v5606
        %6158 = vmatprep.subr.bf16.mxu0 %v5615
        %6159 = vmatpush1.bf16.msra.mxu0 %v5614
        %6160 = vmatprep.subr.bf16.mxu0 %v5623
        %6161 = vmatpush1.bf16.msra.mxu0 %v5622
        %6162 = vmatprep.subr.bf16.mxu0 %v5631
        %6163 = vmatpush1.bf16.msra.mxu0 %v5630
        %6164 = vmatprep.subr.bf16.mxu0 %v5639
        %6165 = vmatpush1.bf16.msra.mxu0 %v5638
        %6166 = vmatprep.subr.bf16.mxu0 %v5647
        %6167 = vmatpush1.bf16.msra.mxu0 %v5646
        %6168 = vmatprep.subr.bf16.mxu0 %v5655
        %6169 = vmatpush1.bf16.msra.mxu0 %v5654
        %6170 = vmatprep.subr.bf16.mxu0 %v5663
        %6171 = vmatpush1.bf16.msra.mxu0 %v5662
        %6172 = vmatprep.subr.bf16.mxu0 %v5671
        %6173 = vmatpush1.bf16.msra.mxu0 %v5670
        %6174 = vmatprep.mubr.bf16.mxu0 %v4521
        %6175 = vmatmul.mubr.bf16.gmra.mrb[0].mxu0 %v4520
        %v6176 = vpop.f32.mrb[0].mxu0
        %v6177 = vadd.f32 0.0, %v6176
        %v6178 = vpop.f32.mrb[0].mxu0
        %v6179 = vadd.f32 0.0, %v6178
        %v6180 = vpop.f32.mrb[0].mxu0
        %v6181 = vpop.f32.mrb[0].mxu0
        %6182 = vdwg.mxu0
        %6183 = vmatprep.subr.bf16.mxu0 %v5679
        %6184 = vmatpush1.bf16.msra.mxu0 %v5678
        %6185 = vmatprep.subr.bf16.mxu0 %v5687
        %6186 = vmatpush1.bf16.msra.mxu0 %v5686
        %6187 = vmatprep.subr.bf16.mxu0 %v5695
        %6188 = vmatpush1.bf16.msra.mxu0 %v5694
        %6189 = vmatprep.subr.bf16.mxu0 %v5703
        %6190 = vmatpush1.bf16.msra.mxu0 %v5702
        %6191 = vmatprep.subr.bf16.mxu0 %v5711
        %6192 = vmatpush1.bf16.msra.mxu0 %v5710
        %6193 = vmatprep.subr.bf16.mxu0 %v5719
        %6194 = vmatpush1.bf16.msra.mxu0 %v5718
        %6195 = vmatprep.subr.bf16.mxu0 %v5727
        %6196 = vmatpush1.bf16.msra.mxu0 %v5726
        %6197 = vmatprep.subr.bf16.mxu0 %v5735
        %6198 = vmatpush1.bf16.msra.mxu0 %v5734
        %6199 = vmatprep.subr.bf16.mxu0 %v5743
        %6200 = vmatpush1.bf16.msra.mxu0 %v5742
        %6201 = vmatprep.subr.bf16.mxu0 %v5751
        %6202 = vmatpush1.bf16.msra.mxu0 %v5750
        %6203 = vmatprep.subr.bf16.mxu0 %v5759
        %6204 = vmatpush1.bf16.msra.mxu0 %v5758
        %6205 = vmatprep.subr.bf16.mxu0 %v5767
        %6206 = vmatpush1.bf16.msra.mxu0 %v5766
        %6207 = vmatprep.subr.bf16.mxu0 %v5775
        %6208 = vmatpush1.bf16.msra.mxu0 %v5774
        %6209 = vmatprep.subr.bf16.mxu0 %v5783
        %6210 = vmatpush1.bf16.msra.mxu0 %v5782
        %6211 = vmatprep.subr.bf16.mxu0 %v5791
        %6212 = vmatpush1.bf16.msra.mxu0 %v5790
        %6213 = vmatprep.subr.bf16.mxu0 %v5799
        %6214 = vmatpush1.bf16.msra.mxu0 %v5798
        %6215 = vmatprep.mubr.bf16.mxu0 %v4523
        %6216 = vmatmul.mubr.bf16.gmra.mrb[0].mxu0 %v4522
        %v6217 = vpop.f32.mrb[0].mxu0
        %v6218 = vadd.f32 %v6177, %v6217
        %v6219 = vpop.f32.mrb[0].mxu0
        %v6220 = vadd.f32 %v6179, %v6219
        %v6221 = vpop.f32.mrb[0].mxu0
        %v6222 = vpop.f32.mrb[0].mxu0
        %6223 = vdwg.mxu0
        %6224 = vmatprep.subr.bf16.mxu0 %v5553
        %6225 = vmatpush1.bf16.msra.mxu0 %v5552
        %6226 = vmatprep.subr.bf16.mxu0 %v5561
        %6227 = vmatpush1.bf16.msra.mxu0 %v5560
        %6228 = vmatprep.subr.bf16.mxu0 %v5569
        %6229 = vmatpush1.bf16.msra.mxu0 %v5568
        %6230 = vmatprep.subr.bf16.mxu0 %v5577
        %6231 = vmatpush1.bf16.msra.mxu0 %v5576
        %6232 = vmatprep.subr.bf16.mxu0 %v5585
        %6233 = vmatpush1.bf16.msra.mxu0 %v5584
        %6234 = vmatprep.subr.bf16.mxu0 %v5593
        %6235 = vmatpush1.bf16.msra.mxu0 %v5592
        %6236 = vmatprep.subr.bf16.mxu0 %v5601
        %6237 = vmatpush1.bf16.msra.mxu0 %v5600
        %6238 = vmatprep.subr.bf16.mxu0 %v5609
        %6239 = vmatpush1.bf16.msra.mxu0 %v5608
        %6240 = vmatprep.subr.bf16.mxu0 %v5617
        %6241 = vmatpush1.bf16.msra.mxu0 %v5616
        %6242 = vmatprep.subr.bf16.mxu0 %v5625
        %6243 = vmatpush1.bf16.msra.mxu0 %v5624
        %6244 = vmatprep.subr.bf16.mxu0 %v5633
        %6245 = vmatpush1.bf16.msra.mxu0 %v5632
        %6246 = vmatprep.subr.bf16.mxu0 %v5641
        %6247 = vmatpush1.bf16.msra.mxu0 %v5640
        %6248 = vmatprep.subr.bf16.mxu0 %v5649
        %6249 = vmatpush1.bf16.msra.mxu0 %v5648
        %6250 = vmatprep.subr.bf16.mxu0 %v5657
        %6251 = vmatpush1.bf16.msra.mxu0 %v5656
        %6252 = vmatprep.subr.bf16.mxu0 %v5665
        %6253 = vmatpush1.bf16.msra.mxu0 %v5664
        %6254 = vmatprep.subr.bf16.mxu0 %v5673
        %6255 = vmatpush1.bf16.msra.mxu0 %v5672
        %6256 = vmatprep.mubr.bf16.mxu0 %v4521
        %6257 = vmatmul.mubr.bf16.gmra.mrb[0].mxu0 %v4520
        %v6258 = vpop.f32.mrb[0].mxu0
        %v6259 = vadd.f32 0.0, %v6258
        %v6260 = vpop.f32.mrb[0].mxu0
        %v6261 = vadd.f32 0.0, %v6260
        %v6262 = vpop.f32.mrb[0].mxu0
        %v6263 = vpop.f32.mrb[0].mxu0
        %6264 = vdwg.mxu0
        %6265 = vmatprep.subr.bf16.mxu0 %v5681
        %6266 = vmatpush1.bf16.msra.mxu0 %v5680
        %6267 = vmatprep.subr.bf16.mxu0 %v5689
        %6268 = vmatpush1.bf16.msra.mxu0 %v5688
        %6269 = vmatprep.subr.bf16.mxu0 %v5697
        %6270 = vmatpush1.bf16.msra.mxu0 %v5696
        %6271 = vmatprep.subr.bf16.mxu0 %v5705
        %6272 = vmatpush1.bf16.msra.mxu0 %v5704
        %6273 = vmatprep.subr.bf16.mxu0 %v5713
        %6274 = vmatpush1.bf16.msra.mxu0 %v5712
        %6275 = vmatprep.subr.bf16.mxu0 %v5721
        %6276 = vmatpush1.bf16.msra.mxu0 %v5720
        %6277 = vmatprep.subr.bf16.mxu0 %v5729
        %6278 = vmatpush1.bf16.msra.mxu0 %v5728
        %6279 = vmatprep.subr.bf16.mxu0 %v5737
        %6280 = vmatpush1.bf16.msra.mxu0 %v5736
        %6281 = vmatprep.subr.bf16.mxu0 %v5745
        %6282 = vmatpush1.bf16.msra.mxu0 %v5744
        %6283 = vmatprep.subr.bf16.mxu0 %v5753
        %6284 = vmatpush1.bf16.msra.mxu0 %v5752
        %6285 = vmatprep.subr.bf16.mxu0 %v5761
        %6286 = vmatpush1.bf16.msra.mxu0 %v5760
        %6287 = vmatprep.subr.bf16.mxu0 %v5769
        %6288 = vmatpush1.bf16.msra.mxu0 %v5768
        %6289 = vmatprep.subr.bf16.mxu0 %v5777
        %6290 = vmatpush1.bf16.msra.mxu0 %v5776
        %6291 = vmatprep.subr.bf16.mxu0 %v5785
        %6292 = vmatpush1.bf16.msra.mxu0 %v5784
        %6293 = vmatprep.subr.bf16.mxu0 %v5793
        %6294 = vmatpush1.bf16.msra.mxu0 %v5792
        %6295 = vmatprep.subr.bf16.mxu0 %v5801
        %6296 = vmatpush1.bf16.msra.mxu0 %v5800
        %6297 = vmatprep.mubr.bf16.mxu0 %v4523
        %6298 = vmatmul.mubr.bf16.gmra.mrb[0].mxu0 %v4522
        %v6299 = vpop.f32.mrb[0].mxu0
        %v6300 = vadd.f32 %v6259, %v6299
        %v6301 = vpop.f32.mrb[0].mxu0
        %v6302 = vadd.f32 %v6261, %v6301
        %v6303 = vpop.f32.mrb[0].mxu0
        %v6304 = vpop.f32.mrb[0].mxu0
        %6305 = vdwg.mxu0
        %6306 = vmatprep.subr.bf16.mxu0 %v5555
        %6307 = vmatpush1.bf16.msra.mxu0 %v5554
        %6308 = vmatprep.subr.bf16.mxu0 %v5563
        %6309 = vmatpush1.bf16.msra.mxu0 %v5562
        %6310 = vmatprep.subr.bf16.mxu0 %v5571
        %6311 = vmatpush1.bf16.msra.mxu0 %v5570
        %6312 = vmatprep.subr.bf16.mxu0 %v5579
        %6313 = vmatpush1.bf16.msra.mxu0 %v5578
        %6314 = vmatprep.subr.bf16.mxu0 %v5587
        %6315 = vmatpush1.bf16.msra.mxu0 %v5586
        %6316 = vmatprep.subr.bf16.mxu0 %v5595
        %6317 = vmatpush1.bf16.msra.mxu0 %v5594
        %6318 = vmatprep.subr.bf16.mxu0 %v5603
        %6319 = vmatpush1.bf16.msra.mxu0 %v5602
        %6320 = vmatprep.subr.bf16.mxu0 %v5611
        %6321 = vmatpush1.bf16.msra.mxu0 %v5610
        %6322 = vmatprep.subr.bf16.mxu0 %v5619
        %6323 = vmatpush1.bf16.msra.mxu0 %v5618
        %6324 = vmatprep.subr.bf16.mxu0 %v5627
        %6325 = vmatpush1.bf16.msra.mxu0 %v5626
        %6326 = vmatprep.subr.bf16.mxu0 %v5635
        %6327 = vmatpush1.bf16.msra.mxu0 %v5634
        %6328 = vmatprep.subr.bf16.mxu0 %v5643
        %6329 = vmatpush1.bf16.msra.mxu0 %v5642
        %6330 = vmatprep.subr.bf16.mxu0 %v5651
        %6331 = vmatpush1.bf16.msra.mxu0 %v5650
        %6332 = vmatprep.subr.bf16.mxu0 %v5659
        %6333 = vmatpush1.bf16.msra.mxu0 %v5658
        %6334 = vmatprep.subr.bf16.mxu0 %v5667
        %6335 = vmatpush1.bf16.msra.mxu0 %v5666
        %6336 = vmatprep.subr.bf16.mxu0 %v5675
        %6337 = vmatpush1.bf16.msra.mxu0 %v5674
        %6338 = vmatprep.mubr.bf16.mxu0 %v4521
        %6339 = vmatmul.mubr.bf16.gmra.mrb[0].mxu0 %v4520
        %v6340 = vpop.f32.mrb[0].mxu0
        %v6341 = vadd.f32 0.0, %v6340
        %v6342 = vpop.f32.mrb[0].mxu0
        %v6343 = vadd.f32 0.0, %v6342
        %v6344 = vpop.f32.mrb[0].mxu0
        %v6345 = vpop.f32.mrb[0].mxu0
        %6346 = vdwg.mxu0
        %6347 = vmatprep.subr.bf16.mxu0 %v5683
        %6348 = vmatpush1.bf16.msra.mxu0 %v5682
        %6349 = vmatprep.subr.bf16.mxu0 %v5691
        %6350 = vmatpush1.bf16.msra.mxu0 %v5690
        %6351 = vmatprep.subr.bf16.mxu0 %v5699
        %6352 = vmatpush1.bf16.msra.mxu0 %v5698
        %6353 = vmatprep.subr.bf16.mxu0 %v5707
        %6354 = vmatpush1.bf16.msra.mxu0 %v5706
        %6355 = vmatprep.subr.bf16.mxu0 %v5715
        %6356 = vmatpush1.bf16.msra.mxu0 %v5714
        %6357 = vmatprep.subr.bf16.mxu0 %v5723
        %6358 = vmatpush1.bf16.msra.mxu0 %v5722
        %6359 = vmatprep.subr.bf16.mxu0 %v5731
        %6360 = vmatpush1.bf16.msra.mxu0 %v5730
        %6361 = vmatprep.subr.bf16.mxu0 %v5739
        %6362 = vmatpush1.bf16.msra.mxu0 %v5738
        %6363 = vmatprep.subr.bf16.mxu0 %v5747
        %6364 = vmatpush1.bf16.msra.mxu0 %v5746
        %6365 = vmatprep.subr.bf16.mxu0 %v5755
        %6366 = vmatpush1.bf16.msra.mxu0 %v5754
        %6367 = vmatprep.subr.bf16.mxu0 %v5763
        %6368 = vmatpush1.bf16.msra.mxu0 %v5762
        %6369 = vmatprep.subr.bf16.mxu0 %v5771
        %6370 = vmatpush1.bf16.msra.mxu0 %v5770
        %6371 = vmatprep.subr.bf16.mxu0 %v5779
        %6372 = vmatpush1.bf16.msra.mxu0 %v5778
        %6373 = vmatprep.subr.bf16.mxu0 %v5787
        %6374 = vmatpush1.bf16.msra.mxu0 %v5786
        %6375 = vmatprep.subr.bf16.mxu0 %v5795
        %6376 = vmatpush1.bf16.msra.mxu0 %v5794
        %6377 = vmatprep.subr.bf16.mxu0 %v5803
        %6378 = vmatpush1.bf16.msra.mxu0 %v5802
        %6379 = vmatprep.mubr.bf16.mxu0 %v4523
        %6380 = vmatmul.mubr.bf16.gmra.mrb[0].mxu0 %v4522
        %v6381 = vpop.f32.mrb[0].mxu0
        %v6382 = vadd.f32 %v6341, %v6381
        %v6383 = vpop.f32.mrb[0].mxu0
        %v6384 = vadd.f32 %v6343, %v6383
        %v6385 = vpop.f32.mrb[0].mxu0
        %v6386 = vpop.f32.mrb[0].mxu0
        %6387 = vdwg.mxu0
        %v6388 = vadd.f32 %v4512, %v6136
        %v6389 = vadd.f32 %v4513, %v6138
        %v6390 = vadd.f32 %v4514, %v6218
        %v6391 = vadd.f32 %v4515, %v6220
        %v6392 = vadd.f32 %v4516, %v6300
        %v6393 = vadd.f32 %v4517, %v6302
        %v6394 = vadd.f32 %v4518, %v6382
        %v6395 = vadd.f32 %v4519, %v6384
        %6396 = vst [vmem:[#allocation2] sm:$0xff] %v6388
        %6397 = vst [vmem:[#allocation2 + $0x8] sm:$0xff] %v6389
        %6398 = vst [vmem:[#allocation2 + $0x10] sm:$0xff] %v6390
        %6399 = vst [vmem:[#allocation2 + $0x18] sm:$0xff] %v6391
        %6400 = vst [vmem:[#allocation2 + $0x20] sm:$0xff] %v6392
        %6401 = vst [vmem:[#allocation2 + $0x28] sm:$0xff] %v6393
        %6402 = vst [vmem:[#allocation2 + $0x30] sm:$0xff] %v6394
        %6403 = vst [vmem:[#allocation2 + $0x38] sm:$0xff] %v6395
        %p6404 = scmp.eq.s32.totalorder %s27, 3
        // Predicated region
        $region77: #{tpu_custom_call.1} parent=47 // pred_check
          %p6405 = pneg %p6404
        $region78: #{tpu_custom_call.1} parent=47 // pred_check_branch
          %6407 = sbr.rel (%p6405) target = $region80
        $region79: #{tpu_custom_call.1} parent=47 // pred_region
          %v6408 = vld [vmem:[#allocation2] sm:$0xff]
          %v6409 = vld [vmem:[#allocation2 + $0x8] sm:$0xff]
          %v6410 = vld [vmem:[#allocation2 + $0x10] sm:$0xff]
          %v6411 = vld [vmem:[#allocation2 + $0x18] sm:$0xff]
          %v6412 = vld [vmem:[#allocation2 + $0x20] sm:$0xff]
          %v6413 = vld [vmem:[#allocation2 + $0x28] sm:$0xff]
          %v6414 = vld [vmem:[#allocation2 + $0x30] sm:$0xff]
          %v6415 = vld [vmem:[#allocation2 + $0x38] sm:$0xff]
          %v6416 = vld [vmem:[#allocation11] sm:$0xff]
          %v6418 = vlaneseq
          %v6419 = vshrl.u32 %v6418, 7
          %v6420 = vsub.s32 0, %v6419
          %v6421 = vrot.slane %v6416, %v6420
          %v6422 = vlaneseq
          %v6423 = vshrl.u32 %v6422, 7
          %v6424 = vsub.s32 1, %v6423
          %v6425 = vrot.slane %v6416, %v6424
          %v6426 = vlaneseq
          %v6427 = vshrl.u32 %v6426, 7
          %v6428 = vsub.s32 2, %v6427
          %v6429 = vrot.slane %v6416, %v6428
          %v6430 = vlaneseq
          %v6431 = vshrl.u32 %v6430, 7
          %v6432 = vsub.s32 3, %v6431
          %v6433 = vrot.slane %v6416, %v6432
          %v6434 = vlaneseq
          %v6435 = vshrl.u32 %v6434, 7
          %v6436 = vsub.s32 4, %v6435
          %v6437 = vrot.slane %v6416, %v6436
          %v6438 = vlaneseq
          %v6439 = vshrl.u32 %v6438, 7
          %v6440 = vsub.s32 5, %v6439
          %v6441 = vrot.slane %v6416, %v6440
          %v6442 = vlaneseq
          %v6443 = vshrl.u32 %v6442, 7
          %v6444 = vsub.s32 6, %v6443
          %v6445 = vrot.slane %v6416, %v6444
          %v6446 = vlaneseq
          %v6447 = vshrl.u32 %v6446, 7
          %v6448 = vsub.s32 7, %v6447
          %v6449 = vrot.slane %v6416, %v6448
          %v6458 = vadd.f32 %v6408, %v6421
          %v6459 = vadd.f32 %v6409, %v6425
          %v6460 = vadd.f32 %v6410, %v6429
          %v6461 = vadd.f32 %v6411, %v6433
          %v6462 = vadd.f32 %v6412, %v6437
          %v6463 = vadd.f32 %v6413, %v6441
          %v6464 = vadd.f32 %v6414, %v6445
          %v6465 = vadd.f32 %v6415, %v6449
          %v6466 = vmax.f32 %v6458, 0.0
          %v6467 = vmax.f32 %v6459, 0.0
          %v6468 = vmax.f32 %v6460, 0.0
          %v6469 = vmax.f32 %v6461, 0.0
          %v6470 = vmax.f32 %v6462, 0.0
          %v6471 = vmax.f32 %v6463, 0.0
          %v6472 = vmax.f32 %v6464, 0.0
          %v6473 = vmax.f32 %v6465, 0.0
          %v6474 = vld [vmem:[#allocation12] sm:$0xff]
          %v6476 = vlaneseq
          %v6477 = vshrl.u32 %v6476, 7
          %v6478 = vsub.s32 0, %v6477
          %v6479 = vrot.slane %v6474, %v6478
          %v6480 = vlaneseq
          %v6481 = vshrl.u32 %v6480, 7
          %v6482 = vsub.s32 1, %v6481
          %v6483 = vrot.slane %v6474, %v6482
          %v6484 = vlaneseq
          %v6485 = vshrl.u32 %v6484, 7
          %v6486 = vsub.s32 2, %v6485
          %v6487 = vrot.slane %v6474, %v6486
          %v6488 = vlaneseq
          %v6489 = vshrl.u32 %v6488, 7
          %v6490 = vsub.s32 3, %v6489
          %v6491 = vrot.slane %v6474, %v6490
          %v6492 = vlaneseq
          %v6493 = vshrl.u32 %v6492, 7
          %v6494 = vsub.s32 4, %v6493
          %v6495 = vrot.slane %v6474, %v6494
          %v6496 = vlaneseq
          %v6497 = vshrl.u32 %v6496, 7
          %v6498 = vsub.s32 5, %v6497
          %v6499 = vrot.slane %v6474, %v6498
          %v6500 = vlaneseq
          %v6501 = vshrl.u32 %v6500, 7
          %v6502 = vsub.s32 6, %v6501
          %v6503 = vrot.slane %v6474, %v6502
          %v6504 = vlaneseq
          %v6505 = vshrl.u32 %v6504, 7
          %v6506 = vsub.s32 7, %v6505
          %v6507 = vrot.slane %v6474, %v6506
          %v6516 = vmul.f32 %v6466, %v6479
          %v6517 = vmul.f32 %v6467, %v6483
          %v6518 = vmul.f32 %v6468, %v6487
          %v6519 = vmul.f32 %v6469, %v6491
          %v6520 = vmul.f32 %v6470, %v6495
          %v6521 = vmul.f32 %v6471, %v6499
          %v6522 = vmul.f32 %v6472, %v6503
          %v6523 = vmul.f32 %v6473, %v6507
          %v6524 = vadd.f32 %v6516, %v6517
          %v6525 = vadd.f32 %v6524, %v6518
          %v6526 = vadd.f32 %v6525, %v6519
          %v6527 = vadd.f32 %v6526, %v6520
          %v6528 = vadd.f32 %v6527, %v6521
          %v6529 = vadd.f32 %v6528, %v6522
          %v6530 = vadd.f32 %v6529, %v6523
          %6531 = vadd.xlane.f32.xlu0 %v6530
          %v6532 = vpop.xlane.xlu0 %6531
          %s6533 = sld [smem:[#allocation3]]
          %v6534 = vstv %s6533
          %v6535 = vadd.f32 %v6532, %v6534
          %vm6536 = vcmask 7168
          %6537 = vst.msk [vmem:[%s7] sm:$0xff] %vm6536, %v6535
        $region80: #{tpu_custom_call.1} parent=47 // pred_fallthru
          _
        // Predicated region
        $region81: #{tpu_custom_call.1} parent=47 // pred_check
          %p6538 = pneg %p202
        $region82: #{tpu_custom_call.1} parent=47 // pred_check_branch
          %6540 = sbr.rel (%p6538) target = $region84
        $region83: #{tpu_custom_call.1} parent=47 // pred_region
          _
        $region84: #{tpu_custom_call.1} parent=47 // pred_fallthru
          _
        // Predicated region
        $region85: #{tpu_custom_call.1} parent=47 // pred_check
          %p6541 = pneg %p202
        $region86: #{tpu_custom_call.1} parent=47 // pred_check_branch
          %6543 = sbr.rel (%p6541) target = $region88
        $region87: #{tpu_custom_call.1} parent=47 // pred_region
          _
        $region88: #{tpu_custom_call.1} parent=47 // pred_fallthru
          _
      $region48: #{tpu_custom_call.1} parent=5 // pred_fallthru
        _
      %p6544 = scmp.le.s32.totalorder 2, %s22
      // Predicated region
      $region89: #{tpu_custom_call.1} parent=5 // pred_check
        %p6545 = pneg %p6544
      $region90: #{tpu_custom_call.1} parent=5 // pred_check_branch
        %6547 = sbr.rel (%p6545) target = $region92
      $region91: #{tpu_custom_call.1} parent=5 // pred_region
        %s6548 = ssub.s32 %s22, 2
      $region92: #{tpu_custom_call.1} parent=5 // pred_fallthru
        _
    $region6: #{tpu_custom_call.1} parent=1 // loop_footer
      %s26 = sadd.s32 1, %s22
    $region7: #{tpu_custom_call.1} parent=1 // loop_footer_branch
      %21 = sbr.rel target = $region3
    $region8: #{tpu_custom_call.1} parent=1 // loop_exit
      _
    %6549 = vsyncpa [#allocation5], 1
    %s6550 = scalar_lea.sflag [#allocation5], 1
    %6551 = vsyncpa %s6550, 1
    %6552 = vsyncpa [#allocation7], 1
    %s6553 = scalar_lea.sflag [#allocation7], 1
    %6554 = vsyncpa %s6553, 1
    %6555 = vsyncpa [#allocation10], 1
    %s6556 = scalar_lea.sflag [#allocation10], 1
    %6557 = vsyncpa %s6556, 1
    %6558 = vsyncpa [#allocation13], 1

</llo_original>
